<compile_context>
chip_gen: v5e
topology: v5e:2x2
jax: 0.10.0
libtpu: 0.0.40
codegen_flags: <defaults>
</compile_context>

<pallas_src>
import functools
import math

import jax
import jax.numpy as jnp
from jax.experimental import pallas as pl
from jax.experimental.pallas import tpu as pltpu


def _layernorm(x, gamma, beta, eps=1e-5):
    # x: (R, D); gamma/beta: (1, D). Always in f32 (matches nn.LayerNorm defaults).
    mean = jnp.mean(x, axis=-1, keepdims=True)
    var = jnp.mean((x - mean) ** 2, axis=-1, keepdims=True)
    return (x - mean) * jax.lax.rsqrt(var + eps) * gamma + beta


def _cross_attn_kernel(
    q_ref, k_ref, v_ref,
    gq_ref, bq_ref, gk_ref, bk_ref, gv_ref, bv_ref,
    wq_ref, wk_ref, wv_ref, biq_ref, bik_ref, biv_ref,
    wo_ref, bo_ref,
    o_ref,
    *, n_head: int, exact_softmax: bool,
):
    # One grid step == TB batch elements.
    TB, L, D = q_ref.shape
    R = TB * L
    Dh = D // n_head
    cdt = wq_ref.dtype                       # MXU input dtype (bf16 fast path, f32 validation)

    # --- pre-LayerNorms (ln_q, ln_k, ln_v), f32 statistics ---
    qn = _layernorm(q_ref[...].reshape(R, D), gq_ref[...], bq_ref[...]).astype(cdt)
    kn = _layernorm(k_ref[...].reshape(R, D), gk_ref[...], bk_ref[...]).astype(cdt)
    vn = _layernorm(v_ref[...].reshape(R, D), gv_ref[...], bv_ref[...]).astype(cdt)

    # --- input projections: full-depth (R,D)@(D,D) MXU matmuls with f32 accumulation ---
    # Weights are pre-transposed (y = x @ W^T + b) and the 1/sqrt(Dh) scale is pre-folded
    # into wq/bq by the wrapper. Cast to the compute dtype ONCE, before the head loop.
    qp = (jnp.dot(qn, wq_ref[...], preferred_element_type=jnp.float32)
          + biq_ref[...]).reshape(TB, L, D).astype(cdt)
    kp = (jnp.dot(kn, wk_ref[...], preferred_element_type=jnp.float32)
          + bik_ref[...]).reshape(TB, L, D).astype(cdt)
    vp = (jnp.dot(vn, wv_ref[...], preferred_element_type=jnp.float32)
          + biv_ref[...]).reshape(TB, L, D).astype(cdt)

    # --- per-head attention (full scores; softmax stats in f32) ---
    # TODO(synk): attn_mask / key_padding_mask (forward default None) and attention dropout
    #             are not implemented.
    # TODO(synk): for large L switch to flash-style online-softmax KV tiling instead of
    #             materializing (TB, L, L) scores per head.
    # TODO(synk): with production Dh % 128 == 0, fold heads into a dot_general batch dim
    #             to remove the per-head lane slices below.
    heads = []
    for h in range(n_head):
        sl = slice(h * Dh, (h + 1) * Dh)
        qh, kh, vh = qp[:, :, sl], kp[:, :, sl], vp[:, :, sl]
        # scores without materializing a K transpose (contract last dims)
        s = jnp.einsum("bld,bmd->blm", qh, kh, preferred_element_type=jnp.float32)
        s = s - jnp.max(s, axis=-1, keepdims=True)
        p = jnp.exp(s)
        denom = jnp.sum(p, axis=-1, keepdims=True)
        p = (p / denom) if exact_softmax else (p * pl.reciprocal(denom, approx=True))
        heads.append(jnp.einsum("blm,bmd->bld", p.astype(cdt), vh,
                                preferred_element_type=jnp.float32))   # (TB, L, Dh) f32

    # --- concat heads along lanes once, then ONE full-depth Wo matmul ---
    attn = jnp.concatenate(heads, axis=-1).reshape(R, D).astype(cdt)
    out = jnp.dot(attn, wo_ref[...], preferred_element_type=jnp.float32) + bo_ref[...]

    # --- residual: re-read the resident q block instead of keeping a live f32 copy ---
    y = q_ref[...].reshape(R, D) + out
    # TODO(synk): if production D < 128, present a lane-dense output (e.g. (TB, L*D) block)
    #             and undo the packing in the wrapper to avoid masked vst partial stores.
    o_ref[...] = y.reshape(TB, L, D).astype(o_ref.dtype)


def _vmem_budget_bytes():
    cap = 64 * 1024 * 1024  # conservative default: v7x per-TensorCore VMEM
    try:
        cap = pltpu.get_tpu_info().vmem_capacity_bytes
    except Exception:
        pass
    return int(0.75 * cap)


def _per_step_vmem_bytes(tb, seq_len, d_model, cdt_bytes):
    """Rough per-grid-step VMEM estimate used to bound TB."""
    rows = tb * seq_len
    act_f32 = rows * d_model * 4
    act_cdt = rows * d_model * cdt_bytes
    pipelined = 2 * 4 * act_f32                                 # 3 inputs + 1 output, double-buffered
    weights = 2 * (4 * d_model * d_model * cdt_bytes + 10 * d_model * 4)  # conservative x2
    live = 6 * act_cdt + 4 * act_f32                            # qn/kn/vn, qp/kp/vp, heads/out/residual
    scores = 2 * tb * seq_len * seq_len * 4                     # scores + probs, one head at a time
    return pipelined + weights + live + scores


def _pick_batch_block(batch, seq_len, d_model, cdt_bytes, budget):
    """Largest divisor TB of `batch` whose per-step VMEM fits the budget, preferring an even
    (ideally >= 4) grid step count so v7x's two TensorCores stay balanced."""
    divisors = [d for d in range(1, batch + 1) if batch % d == 0]
    fits = [d for d in divisors
            if _per_step_vmem_bytes(d, seq_len, d_model, cdt_bytes) <= budget] or [1]
    steps = lambda d: batch // d
    for ok in (lambda d: steps(d) >= 4 and steps(d) % 2 == 0,
               lambda d: steps(d) >= 2 and steps(d) % 2 == 0,
               lambda d: steps(d) >= 2):
        cands = [d for d in fits if ok(d)]
        if cands:
            return max(cands)
    return max(fits)


def cross_attention_block(q, k, v, params, n_head, *,
                          compute_dtype=jnp.bfloat16, batch_block=None):
    """q, k, v: (L, B, D) float32 (PyTorch seq-first convention). Returns (L, B, D).

    compute_dtype=bfloat16 (default, MXU-native on v5e/v6e/v7x) keeps LayerNorm / softmax /
    accumulation in f32; compute_dtype=float32 is the tight-validation path (exact softmax).
    """
    L, B, D = q.shape
    assert D % n_head == 0, "d_model must be divisible by n_head"
    Dh = D // n_head
    cdt = jnp.dtype(compute_dtype)
    exact_softmax = cdt == jnp.dtype(jnp.float32)

    budget = _vmem_budget_bytes()
    TB = batch_block if batch_block is not None else \
        _pick_batch_block(B, L, D, cdt.itemsize, budget)
    assert B % TB == 0, "batch_block must divide the batch size"

    qb = jnp.transpose(q, (1, 0, 2))  # (B, L, D)
    kb = jnp.transpose(k, (1, 0, 2))
    vb = jnp.transpose(v, (1, 0, 2))

    # One-time param prep in the wrapper (XLA): transpose weights, fold 1/sqrt(Dh) into the
    # q projection, cast matmul weights to the MXU dtype. The kernel never transposes weights.
    scale = 1.0 / math.sqrt(Dh)
    wq_t = (params["w_q"] * scale).T.astype(cdt)
    wk_t = params["w_k"].T.astype(cdt)
    wv_t = params["w_v"].T.astype(cdt)
    wo_t = params["w_o"].T.astype(cdt)   # rows [h*Dh:(h+1)*Dh] multiply head h

    vec = lambda a: a.reshape(1, D).astype(jnp.float32)  # keep 1-D params as (1, D) f32 rows
    args = (
        qb, kb, vb,
        vec(params["ln_q_g"]), vec(params["ln_q_b"]),
        vec(params["ln_k_g"]), vec(params["ln_k_b"]),
        vec(params["ln_v_g"]), vec(params["ln_v_b"]),
        wq_t, wk_t, wv_t,
        vec(params["b_q"] * scale), vec(params["b_k"]), vec(params["b_v"]),
        wo_t, vec(params["b_o"]),
    )

    tok_spec = pl.BlockSpec((TB, L, D), lambda b: (b, 0, 0))
    kernel = functools.partial(_cross_attn_kernel, n_head=n_head,
                               exact_softmax=exact_softmax)

    def build(single_buffer_weights):
        # Grid-invariant weights/biases: single-buffer them (their index_map is constant so
        # they are fetched once; default double-buffering just wastes VMEM on v7x).
        pm = dict(pipeline_mode=pl.Buffered(1)) if single_buffer_weights else {}
        mat_spec = pl.BlockSpec((D, D), lambda b: (0, 0), **pm)
        row_spec = pl.BlockSpec((1, D), lambda b: (0, 0), **pm)
        in_specs = [tok_spec, tok_spec, tok_spec] + [row_spec] * 6 \
            + [mat_spec, mat_spec, mat_spec] + [row_spec] * 3 + [mat_spec, row_spec]
        return pl.pallas_call(
            kernel,
            out_shape=jax.ShapeDtypeStruct((B, L, D), q.dtype),
            grid_spec=pltpu.PrefetchScalarGridSpec(
                num_scalar_prefetch=0,
                grid=(B // TB,),
                in_specs=in_specs,
                out_specs=tok_spec,
            ),
            compiler_params=pltpu.CompilerParams(
                dimension_semantics=("parallel",),
                vmem_limit_bytes=budget,
            ),
        )

    try:
        out = build(True)(*args)
    except Exception:
        # pl.Buffered(1) (single-buffered weights) unsupported on this jax version;
        # fall back to default double-buffering. Semantics are identical.
        out = build(False)(*args)

    return jnp.transpose(out, (1, 0, 2))  # back to (L, B, D)


def _reference(q, k, v, params, n_head):
    """Pure-JAX f32 reference of the PyTorch forward for validation."""
    def ln(x, g, b, eps=1e-5):
        m = jnp.mean(x, -1, keepdims=True)
        var = jnp.mean((x - m) ** 2, -1, keepdims=True)
        return (x - m) * jax.lax.rsqrt(var + eps) * g + b

    L, B, D = q.shape
    Dh = D // n_head
    qn = ln(q, params["ln_q_g"], params["ln_q_b"])
    kn = ln(k, params["ln_k_g"], params["ln_k_b"])
    vn = ln(v, params["ln_v_g"], params["ln_v_b"])
    qp = qn @ params["w_q"].T + params["b_q"]
    kp = kn @ params["w_k"].T + params["b_k"]
    vp = vn @ params["w_v"].T + params["b_v"]

    def split(x):  # (L, B, D) -> (B, H, L, Dh)
        return jnp.transpose(x.reshape(L, B, n_head, Dh), (1, 2, 0, 3))

    qh, kh, vh = split(qp), split(kp), split(vp)
    s = jnp.einsum("bhld,bhmd->bhlm", qh, kh) / jnp.sqrt(jnp.float32(Dh))
    p = jax.nn.softmax(s, axis=-1)
    o = jnp.einsum("bhlm,bhmd->bhld", p, vh)          # (B, H, L, Dh)
    o = jnp.transpose(o, (2, 0, 1, 3)).reshape(L, B, D)
    o = o @ params["w_o"].T + params["b_o"]
    return q + o


if __name__ == "__main__":
    L, B, D, H = 8, 4, 32, 4
    key = jax.random.PRNGKey(0)
    keys = jax.random.split(key, 16)

    params = {
        "ln_q_g": jnp.ones((D,), jnp.float32),
        "ln_q_b": jnp.zeros((D,), jnp.float32),
        "ln_k_g": jnp.ones((D,), jnp.float32),
        "ln_k_b": jnp.zeros((D,), jnp.float32),
        "ln_v_g": jnp.ones((D,), jnp.float32),
        "ln_v_b": jnp.zeros((D,), jnp.float32),
        # nn.MultiheadAttention in_proj_weight split into Wq/Wk/Wv, plus biases.
        "w_q": 0.1 * jax.random.normal(keys[0], (D, D), jnp.float32),
        "w_k": 0.1 * jax.random.normal(keys[1], (D, D), jnp.float32),
        "w_v": 0.1 * jax.random.normal(keys[2], (D, D), jnp.float32),
        "b_q": 0.01 * jax.random.normal(keys[3], (D,), jnp.float32),
        "b_k": 0.01 * jax.random.normal(keys[4], (D,), jnp.float32),
        "b_v": 0.01 * jax.random.normal(keys[5], (D,), jnp.float32),
        "w_o": 0.1 * jax.random.normal(keys[6], (D, D), jnp.float32),
        "b_o": 0.01 * jax.random.normal(keys[7], (D,), jnp.float32),
    }

    q = jax.random.normal(keys[8], (L, B, D), jnp.float32)
    k = jax.random.normal(keys[9], (L, B, D), jnp.float32)
    v = jax.random.normal(keys[10], (L, B, D), jnp.float32)

    ref = _reference(q, k, v, params, H)

    # f32 MXU path (exact softmax): tight check against the pure-JAX reference.
    out_f32 = jax.block_until_ready(
        cross_attention_block(q, k, v, params, H, compute_dtype=jnp.float32))
    assert out_f32.shape == (L, B, D)
    assert jnp.allclose(out_f32, ref, atol=2e-3, rtol=2e-3), "f32 path mismatch vs reference"

    # Default bf16 MXU path; batch_block=2 also exercises the multi-batch-per-step blocks.
    out_bf16 = jax.block_until_ready(
        cross_attention_block(q, k, v, params, H, batch_block=2))
    assert out_bf16.shape == (L, B, D)
    assert jnp.allclose(out_bf16, ref, atol=5e-2, rtol=5e-2), "bf16 path mismatch vs reference"

    print("KERNEL_OK")
</pallas_src>

<mosaic_0001>
module attributes {stable_mosaic.version = 11 : i64} {
  func.func @_cross_attn_kernel(%arg0: i32, %arg1: memref<1x8x32xf32, #tpu.memory_space<vmem>>, %arg2: memref<1x8x32xf32, #tpu.memory_space<vmem>>, %arg3: memref<1x8x32xf32, #tpu.memory_space<vmem>>, %arg4: memref<1x32xf32, #tpu.memory_space<vmem>>, %arg5: memref<1x32xf32, #tpu.memory_space<vmem>>, %arg6: memref<1x32xf32, #tpu.memory_space<vmem>>, %arg7: memref<1x32xf32, #tpu.memory_space<vmem>>, %arg8: memref<1x32xf32, #tpu.memory_space<vmem>>, %arg9: memref<1x32xf32, #tpu.memory_space<vmem>>, %arg10: memref<32x32xf32, #tpu.memory_space<vmem>>, %arg11: memref<32x32xf32, #tpu.memory_space<vmem>>, %arg12: memref<32x32xf32, #tpu.memory_space<vmem>>, %arg13: memref<1x32xf32, #tpu.memory_space<vmem>>, %arg14: memref<1x32xf32, #tpu.memory_space<vmem>>, %arg15: memref<1x32xf32, #tpu.memory_space<vmem>>, %arg16: memref<32x32xf32, #tpu.memory_space<vmem>>, %arg17: memref<1x32xf32, #tpu.memory_space<vmem>>, %arg18: memref<1x8x32xf32, #tpu.memory_space<vmem>>) attributes {dimension_semantics = [#tpu.dimension_semantics<parallel>], iteration_bounds = array<i64: 4>, scalar_prefetch = 0 : i64, scratch_operands = 0 : i64, tpu.core_type = #tpu.core_type<tc>, window_params = [{transform_indices = @transform_0, window_bounds = array<i64: 1, 8, 32>}, {transform_indices = @transform_1, window_bounds = array<i64: 1, 8, 32>}, {transform_indices = @transform_2, window_bounds = array<i64: 1, 8, 32>}, {pipeline_mode = #tpu.pipeline_mode<synchronous>, transform_indices = @transform_3, window_bounds = array<i64: 1, 32>}, {pipeline_mode = #tpu.pipeline_mode<synchronous>, transform_indices = @transform_4, window_bounds = array<i64: 1, 32>}, {pipeline_mode = #tpu.pipeline_mode<synchronous>, transform_indices = @transform_5, window_bounds = array<i64: 1, 32>}, {pipeline_mode = #tpu.pipeline_mode<synchronous>, transform_indices = @transform_6, window_bounds = array<i64: 1, 32>}, {pipeline_mode = #tpu.pipeline_mode<synchronous>, transform_indices = @transform_7, window_bounds = array<i64: 1, 32>}, {pipeline_mode = #tpu.pipeline_mode<synchronous>, transform_indices = @transform_8, window_bounds = array<i64: 1, 32>}, {pipeline_mode = #tpu.pipeline_mode<synchronous>, transform_indices = @transform_9, window_bounds = array<i64: 32, 32>}, {pipeline_mode = #tpu.pipeline_mode<synchronous>, transform_indices = @transform_10, window_bounds = array<i64: 32, 32>}, {pipeline_mode = #tpu.pipeline_mode<synchronous>, transform_indices = @transform_11, window_bounds = array<i64: 32, 32>}, {pipeline_mode = #tpu.pipeline_mode<synchronous>, transform_indices = @transform_12, window_bounds = array<i64: 1, 32>}, {pipeline_mode = #tpu.pipeline_mode<synchronous>, transform_indices = @transform_13, window_bounds = array<i64: 1, 32>}, {pipeline_mode = #tpu.pipeline_mode<synchronous>, transform_indices = @transform_14, window_bounds = array<i64: 1, 32>}, {pipeline_mode = #tpu.pipeline_mode<synchronous>, transform_indices = @transform_15, window_bounds = array<i64: 32, 32>}, {pipeline_mode = #tpu.pipeline_mode<synchronous>, transform_indices = @transform_16, window_bounds = array<i64: 1, 32>}, {transform_indices = @transform_17, window_bounds = array<i64: 1, 8, 32>}]} {
    %c0 = arith.constant 0 : index
    %c0_0 = arith.constant 0 : index
    %c0_1 = arith.constant 0 : index
    %0 = vector.load %arg1[%c0, %c0_0, %c0_1] : memref<1x8x32xf32, #tpu.memory_space<vmem>>, vector<1x8x32xf32>
    %1 = vector.shape_cast %0 : vector<1x8x32xf32> to vector<8x32xf32>
    %c0_2 = arith.constant 0 : index
    %c0_3 = arith.constant 0 : index
    %2 = vector.load %arg4[%c0_2, %c0_3] : memref<1x32xf32, #tpu.memory_space<vmem>>, vector<1x32xf32>
    %c0_4 = arith.constant 0 : index
    %c0_5 = arith.constant 0 : index
    %3 = vector.load %arg5[%c0_4, %c0_5] : memref<1x32xf32, #tpu.memory_space<vmem>>, vector<1x32xf32>
    %cst = arith.constant dense<0.000000e+00> : vector<8xf32>
    %4 = vector.multi_reduction <add>, %1, %cst [1] : vector<8x32xf32> to vector<8xf32>
    %5 = vector.shape_cast %4 : vector<8xf32> to vector<8x1xf32>
    %cst_6 = arith.constant 3.200000e+01 : f32
    %6 = vector.broadcast %cst_6 : f32 to vector<8x1xf32>
    %7 = arith.divf %5, %6 : vector<8x1xf32>
    %8 = vector.broadcast %7 : vector<8x1xf32> to vector<8x32xf32>
    %9 = arith.subf %1, %8 : vector<8x32xf32>
    %10 = arith.mulf %9, %9 : vector<8x32xf32>
    %cst_7 = arith.constant dense<0.000000e+00> : vector<8xf32>
    %11 = vector.multi_reduction <add>, %10, %cst_7 [1] : vector<8x32xf32> to vector<8xf32>
    %12 = vector.shape_cast %11 : vector<8xf32> to vector<8x1xf32>
    %cst_8 = arith.constant 3.200000e+01 : f32
    %13 = vector.broadcast %cst_8 : f32 to vector<8x1xf32>
    %14 = arith.divf %12, %13 : vector<8x1xf32>
    %15 = vector.broadcast %7 : vector<8x1xf32> to vector<8x32xf32>
    %16 = arith.subf %1, %15 : vector<8x32xf32>
    %cst_9 = arith.constant 9.99999974E-6 : f32
    %17 = vector.broadcast %cst_9 : f32 to vector<8x1xf32>
    %18 = arith.addf %14, %17 : vector<8x1xf32>
    %19 = math.rsqrt %18 : vector<8x1xf32>
    %20 = vector.broadcast %19 : vector<8x1xf32> to vector<8x32xf32>
    %21 = arith.mulf %16, %20 : vector<8x32xf32>
    %22 = vector.broadcast %2 : vector<1x32xf32> to vector<8x32xf32>
    %23 = arith.mulf %21, %22 : vector<8x32xf32>
    %24 = vector.broadcast %3 : vector<1x32xf32> to vector<8x32xf32>
    %25 = arith.addf %23, %24 : vector<8x32xf32>
    %c0_10 = arith.constant 0 : index
    %c0_11 = arith.constant 0 : index
    %c0_12 = arith.constant 0 : index
    %26 = vector.load %arg2[%c0_10, %c0_11, %c0_12] : memref<1x8x32xf32, #tpu.memory_space<vmem>>, vector<1x8x32xf32>
    %27 = vector.shape_cast %26 : vector<1x8x32xf32> to vector<8x32xf32>
    %c0_13 = arith.constant 0 : index
    %c0_14 = arith.constant 0 : index
    %28 = vector.load %arg6[%c0_13, %c0_14] : memref<1x32xf32, #tpu.memory_space<vmem>>, vector<1x32xf32>
    %c0_15 = arith.constant 0 : index
    %c0_16 = arith.constant 0 : index
    %29 = vector.load %arg7[%c0_15, %c0_16] : memref<1x32xf32, #tpu.memory_space<vmem>>, vector<1x32xf32>
    %cst_17 = arith.constant dense<0.000000e+00> : vector<8xf32>
    %30 = vector.multi_reduction <add>, %27, %cst_17 [1] : vector<8x32xf32> to vector<8xf32>
    %31 = vector.shape_cast %30 : vector<8xf32> to vector<8x1xf32>
    %cst_18 = arith.constant 3.200000e+01 : f32
    %32 = vector.broadcast %cst_18 : f32 to vector<8x1xf32>
    %33 = arith.divf %31, %32 : vector<8x1xf32>
    %34 = vector.broadcast %33 : vector<8x1xf32> to vector<8x32xf32>
    %35 = arith.subf %27, %34 : vector<8x32xf32>
    %36 = arith.mulf %35, %35 : vector<8x32xf32>
    %cst_19 = arith.constant dense<0.000000e+00> : vector<8xf32>
    %37 = vector.multi_reduction <add>, %36, %cst_19 [1] : vector<8x32xf32> to vector<8xf32>
    %38 = vector.shape_cast %37 : vector<8xf32> to vector<8x1xf32>
    %cst_20 = arith.constant 3.200000e+01 : f32
    %39 = vector.broadcast %cst_20 : f32 to vector<8x1xf32>
    %40 = arith.divf %38, %39 : vector<8x1xf32>
    %41 = vector.broadcast %33 : vector<8x1xf32> to vector<8x32xf32>
    %42 = arith.subf %27, %41 : vector<8x32xf32>
    %cst_21 = arith.constant 9.99999974E-6 : f32
    %43 = vector.broadcast %cst_21 : f32 to vector<8x1xf32>
    %44 = arith.addf %40, %43 : vector<8x1xf32>
    %45 = math.rsqrt %44 : vector<8x1xf32>
    %46 = vector.broadcast %45 : vector<8x1xf32> to vector<8x32xf32>
    %47 = arith.mulf %42, %46 : vector<8x32xf32>
    %48 = vector.broadcast %28 : vector<1x32xf32> to vector<8x32xf32>
    %49 = arith.mulf %47, %48 : vector<8x32xf32>
    %50 = vector.broadcast %29 : vector<1x32xf32> to vector<8x32xf32>
    %51 = arith.addf %49, %50 : vector<8x32xf32>
    %c0_22 = arith.constant 0 : index
    %c0_23 = arith.constant 0 : index
    %c0_24 = arith.constant 0 : index
    %52 = vector.load %arg3[%c0_22, %c0_23, %c0_24] : memref<1x8x32xf32, #tpu.memory_space<vmem>>, vector<1x8x32xf32>
    %53 = vector.shape_cast %52 : vector<1x8x32xf32> to vector<8x32xf32>
    %c0_25 = arith.constant 0 : index
    %c0_26 = arith.constant 0 : index
    %54 = vector.load %arg8[%c0_25, %c0_26] : memref<1x32xf32, #tpu.memory_space<vmem>>, vector<1x32xf32>
    %c0_27 = arith.constant 0 : index
    %c0_28 = arith.constant 0 : index
    %55 = vector.load %arg9[%c0_27, %c0_28] : memref<1x32xf32, #tpu.memory_space<vmem>>, vector<1x32xf32>
    %cst_29 = arith.constant dense<0.000000e+00> : vector<8xf32>
    %56 = vector.multi_reduction <add>, %53, %cst_29 [1] : vector<8x32xf32> to vector<8xf32>
    %57 = vector.shape_cast %56 : vector<8xf32> to vector<8x1xf32>
    %cst_30 = arith.constant 3.200000e+01 : f32
    %58 = vector.broadcast %cst_30 : f32 to vector<8x1xf32>
    %59 = arith.divf %57, %58 : vector<8x1xf32>
    %60 = vector.broadcast %59 : vector<8x1xf32> to vector<8x32xf32>
    %61 = arith.subf %53, %60 : vector<8x32xf32>
    %62 = arith.mulf %61, %61 : vector<8x32xf32>
    %cst_31 = arith.constant dense<0.000000e+00> : vector<8xf32>
    %63 = vector.multi_reduction <add>, %62, %cst_31 [1] : vector<8x32xf32> to vector<8xf32>
    %64 = vector.shape_cast %63 : vector<8xf32> to vector<8x1xf32>
    %cst_32 = arith.constant 3.200000e+01 : f32
    %65 = vector.broadcast %cst_32 : f32 to vector<8x1xf32>
    %66 = arith.divf %64, %65 : vector<8x1xf32>
    %67 = vector.broadcast %59 : vector<8x1xf32> to vector<8x32xf32>
    %68 = arith.subf %53, %67 : vector<8x32xf32>
    %cst_33 = arith.constant 9.99999974E-6 : f32
    %69 = vector.broadcast %cst_33 : f32 to vector<8x1xf32>
    %70 = arith.addf %66, %69 : vector<8x1xf32>
    %71 = math.rsqrt %70 : vector<8x1xf32>
    %72 = vector.broadcast %71 : vector<8x1xf32> to vector<8x32xf32>
    %73 = arith.mulf %68, %72 : vector<8x32xf32>
    %74 = vector.broadcast %54 : vector<1x32xf32> to vector<8x32xf32>
    %75 = arith.mulf %73, %74 : vector<8x32xf32>
    %76 = vector.broadcast %55 : vector<1x32xf32> to vector<8x32xf32>
    %77 = arith.addf %75, %76 : vector<8x32xf32>
    %c0_34 = arith.constant 0 : index
    %c0_35 = arith.constant 0 : index
    %78 = vector.load %arg10[%c0_34, %c0_35] : memref<32x32xf32, #tpu.memory_space<vmem>>, vector<32x32xf32>
    %cst_36 = arith.constant dense<0.000000e+00> : vector<8x32xf32>
    %79 = tpu.matmul %25, %78, %cst_36 {dimension_numbers = #tpu.dot_dimension_numbers<[1], [0], [0], [1], [0, 0, 1, 1], [], []>} : vector<8x32xf32>, vector<32x32xf32>, vector<8x32xf32> -> vector<8x32xf32>
    %c0_37 = arith.constant 0 : index
    %c0_38 = arith.constant 0 : index
    %80 = vector.load %arg13[%c0_37, %c0_38] : memref<1x32xf32, #tpu.memory_space<vmem>>, vector<1x32xf32>
    %81 = vector.broadcast %80 : vector<1x32xf32> to vector<8x32xf32>
    %82 = arith.addf %79, %81 : vector<8x32xf32>
    %83 = vector.shape_cast %82 : vector<8x32xf32> to vector<1x8x32xf32>
    %c0_39 = arith.constant 0 : index
    %c0_40 = arith.constant 0 : index
    %84 = vector.load %arg11[%c0_39, %c0_40] : memref<32x32xf32, #tpu.memory_space<vmem>>, vector<32x32xf32>
    %cst_41 = arith.constant dense<0.000000e+00> : vector<8x32xf32>
    %85 = tpu.matmul %51, %84, %cst_41 {dimension_numbers = #tpu.dot_dimension_numbers<[1], [0], [0], [1], [0, 0, 1, 1], [], []>} : vector<8x32xf32>, vector<32x32xf32>, vector<8x32xf32> -> vector<8x32xf32>
    %c0_42 = arith.constant 0 : index
    %c0_43 = arith.constant 0 : index
    %86 = vector.load %arg14[%c0_42, %c0_43] : memref<1x32xf32, #tpu.memory_space<vmem>>, vector<1x32xf32>
    %87 = vector.broadcast %86 : vector<1x32xf32> to vector<8x32xf32>
    %88 = arith.addf %85, %87 : vector<8x32xf32>
    %89 = vector.shape_cast %88 : vector<8x32xf32> to vector<1x8x32xf32>
    %c0_44 = arith.constant 0 : index
    %c0_45 = arith.constant 0 : index
    %90 = vector.load %arg12[%c0_44, %c0_45] : memref<32x32xf32, #tpu.memory_space<vmem>>, vector<32x32xf32>
    %cst_46 = arith.constant dense<0.000000e+00> : vector<8x32xf32>
    %91 = tpu.matmul %77, %90, %cst_46 {dimension_numbers = #tpu.dot_dimension_numbers<[1], [0], [0], [1], [0, 0, 1, 1], [], []>} : vector<8x32xf32>, vector<32x32xf32>, vector<8x32xf32> -> vector<8x32xf32>
    %c0_47 = arith.constant 0 : index
    %c0_48 = arith.constant 0 : index
    %92 = vector.load %arg15[%c0_47, %c0_48] : memref<1x32xf32, #tpu.memory_space<vmem>>, vector<1x32xf32>
    %93 = vector.broadcast %92 : vector<1x32xf32> to vector<8x32xf32>
    %94 = arith.addf %91, %93 : vector<8x32xf32>
    %95 = vector.shape_cast %94 : vector<8x32xf32> to vector<1x8x32xf32>
    %96 = vector.extract_strided_slice %83 {offsets = [0, 0, 0], sizes = [1, 8, 8], strides = [1, 1, 1]} : vector<1x8x32xf32> to vector<1x8x8xf32>
    %97 = vector.extract_strided_slice %89 {offsets = [0, 0, 0], sizes = [1, 8, 8], strides = [1, 1, 1]} : vector<1x8x32xf32> to vector<1x8x8xf32>
    %98 = vector.extract_strided_slice %95 {offsets = [0, 0, 0], sizes = [1, 8, 8], strides = [1, 1, 1]} : vector<1x8x32xf32> to vector<1x8x8xf32>
    "tpu.trace_start"() <{level = 10 : i32, message = "bld,bmd->blm"}> : () -> ()
    %cst_49 = arith.constant dense<0.000000e+00> : vector<1x8x8xf32>
    %99 = tpu.matmul %96, %97, %cst_49 {dimension_numbers = #tpu.dot_dimension_numbers<[2], [2], [1], [1], [0, 0, 0, 1, 1, 1], [0], [0]>} : vector<1x8x8xf32>, vector<1x8x8xf32>, vector<1x8x8xf32> -> vector<1x8x8xf32>
    "tpu.trace_stop"() : () -> ()
    %cst_50 = arith.constant dense<0xFF800000> : vector<1x8xf32>
    %100 = vector.multi_reduction <maximumf>, %99, %cst_50 [2] : vector<1x8x8xf32> to vector<1x8xf32>
    %101 = vector.shape_cast %100 : vector<1x8xf32> to vector<1x8x1xf32>
    %102 = vector.broadcast %101 : vector<1x8x1xf32> to vector<1x8x8xf32>
    %103 = arith.subf %99, %102 : vector<1x8x8xf32>
    %104 = math.exp %103 : vector<1x8x8xf32>
    %cst_51 = arith.constant dense<0.000000e+00> : vector<1x8xf32>
    %105 = vector.multi_reduction <add>, %104, %cst_51 [2] : vector<1x8x8xf32> to vector<1x8xf32>
    %106 = vector.shape_cast %105 : vector<1x8xf32> to vector<1x8x1xf32>
    %107 = vector.broadcast %106 : vector<1x8x1xf32> to vector<1x8x8xf32>
    %108 = arith.divf %104, %107 : vector<1x8x8xf32>
    "tpu.trace_start"() <{level = 10 : i32, message = "blm,bmd->bld"}> : () -> ()
    %cst_52 = arith.constant dense<0.000000e+00> : vector<1x8x8xf32>
    %109 = tpu.matmul %108, %98, %cst_52 {dimension_numbers = #tpu.dot_dimension_numbers<[2], [1], [1], [2], [0, 0, 0, 1, 1, 2], [0], [0]>} : vector<1x8x8xf32>, vector<1x8x8xf32>, vector<1x8x8xf32> -> vector<1x8x8xf32>
    "tpu.trace_stop"() : () -> ()
    %110 = vector.extract_strided_slice %83 {offsets = [0, 0, 8], sizes = [1, 8, 8], strides = [1, 1, 1]} : vector<1x8x32xf32> to vector<1x8x8xf32>
    %111 = vector.extract_strided_slice %89 {offsets = [0, 0, 8], sizes = [1, 8, 8], strides = [1, 1, 1]} : vector<1x8x32xf32> to vector<1x8x8xf32>
    %112 = vector.extract_strided_slice %95 {offsets = [0, 0, 8], sizes = [1, 8, 8], strides = [1, 1, 1]} : vector<1x8x32xf32> to vector<1x8x8xf32>
    "tpu.trace_start"() <{level = 10 : i32, message = "bld,bmd->blm"}> : () -> ()
    %cst_53 = arith.constant dense<0.000000e+00> : vector<1x8x8xf32>
    %113 = tpu.matmul %110, %111, %cst_53 {dimension_numbers = #tpu.dot_dimension_numbers<[2], [2], [1], [1], [0, 0, 0, 1, 1, 1], [0], [0]>} : vector<1x8x8xf32>, vector<1x8x8xf32>, vector<1x8x8xf32> -> vector<1x8x8xf32>
    "tpu.trace_stop"() : () -> ()
    %cst_54 = arith.constant dense<0xFF800000> : vector<1x8xf32>
    %114 = vector.multi_reduction <maximumf>, %113, %cst_54 [2] : vector<1x8x8xf32> to vector<1x8xf32>
    %115 = vector.shape_cast %114 : vector<1x8xf32> to vector<1x8x1xf32>
    %116 = vector.broadcast %115 : vector<1x8x1xf32> to vector<1x8x8xf32>
    %117 = arith.subf %113, %116 : vector<1x8x8xf32>
    %118 = math.exp %117 : vector<1x8x8xf32>
    %cst_55 = arith.constant dense<0.000000e+00> : vector<1x8xf32>
    %119 = vector.multi_reduction <add>, %118, %cst_55 [2] : vector<1x8x8xf32> to vector<1x8xf32>
    %120 = vector.shape_cast %119 : vector<1x8xf32> to vector<1x8x1xf32>
    %121 = vector.broadcast %120 : vector<1x8x1xf32> to vector<1x8x8xf32>
    %122 = arith.divf %118, %121 : vector<1x8x8xf32>
    "tpu.trace_start"() <{level = 10 : i32, message = "blm,bmd->bld"}> : () -> ()
    %cst_56 = arith.constant dense<0.000000e+00> : vector<1x8x8xf32>
    %123 = tpu.matmul %122, %112, %cst_56 {dimension_numbers = #tpu.dot_dimension_numbers<[2], [1], [1], [2], [0, 0, 0, 1, 1, 2], [0], [0]>} : vector<1x8x8xf32>, vector<1x8x8xf32>, vector<1x8x8xf32> -> vector<1x8x8xf32>
    "tpu.trace_stop"() : () -> ()
    %124 = vector.extract_strided_slice %83 {offsets = [0, 0, 16], sizes = [1, 8, 8], strides = [1, 1, 1]} : vector<1x8x32xf32> to vector<1x8x8xf32>
    %125 = vector.extract_strided_slice %89 {offsets = [0, 0, 16], sizes = [1, 8, 8], strides = [1, 1, 1]} : vector<1x8x32xf32> to vector<1x8x8xf32>
    %126 = vector.extract_strided_slice %95 {offsets = [0, 0, 16], sizes = [1, 8, 8], strides = [1, 1, 1]} : vector<1x8x32xf32> to vector<1x8x8xf32>
    "tpu.trace_start"() <{level = 10 : i32, message = "bld,bmd->blm"}> : () -> ()
    %cst_57 = arith.constant dense<0.000000e+00> : vector<1x8x8xf32>
    %127 = tpu.matmul %124, %125, %cst_57 {dimension_numbers = #tpu.dot_dimension_numbers<[2], [2], [1], [1], [0, 0, 0, 1, 1, 1], [0], [0]>} : vector<1x8x8xf32>, vector<1x8x8xf32>, vector<1x8x8xf32> -> vector<1x8x8xf32>
    "tpu.trace_stop"() : () -> ()
    %cst_58 = arith.constant dense<0xFF800000> : vector<1x8xf32>
    %128 = vector.multi_reduction <maximumf>, %127, %cst_58 [2] : vector<1x8x8xf32> to vector<1x8xf32>
    %129 = vector.shape_cast %128 : vector<1x8xf32> to vector<1x8x1xf32>
    %130 = vector.broadcast %129 : vector<1x8x1xf32> to vector<1x8x8xf32>
    %131 = arith.subf %127, %130 : vector<1x8x8xf32>
    %132 = math.exp %131 : vector<1x8x8xf32>
    %cst_59 = arith.constant dense<0.000000e+00> : vector<1x8xf32>
    %133 = vector.multi_reduction <add>, %132, %cst_59 [2] : vector<1x8x8xf32> to vector<1x8xf32>
    %134 = vector.shape_cast %133 : vector<1x8xf32> to vector<1x8x1xf32>
    %135 = vector.broadcast %134 : vector<1x8x1xf32> to vector<1x8x8xf32>
    %136 = arith.divf %132, %135 : vector<1x8x8xf32>
    "tpu.trace_start"() <{level = 10 : i32, message = "blm,bmd->bld"}> : () -> ()
    %cst_60 = arith.constant dense<0.000000e+00> : vector<1x8x8xf32>
    %137 = tpu.matmul %136, %126, %cst_60 {dimension_numbers = #tpu.dot_dimension_numbers<[2], [1], [1], [2], [0, 0, 0, 1, 1, 2], [0], [0]>} : vector<1x8x8xf32>, vector<1x8x8xf32>, vector<1x8x8xf32> -> vector<1x8x8xf32>
    "tpu.trace_stop"() : () -> ()
    %138 = vector.extract_strided_slice %83 {offsets = [0, 0, 24], sizes = [1, 8, 8], strides = [1, 1, 1]} : vector<1x8x32xf32> to vector<1x8x8xf32>
    %139 = vector.extract_strided_slice %89 {offsets = [0, 0, 24], sizes = [1, 8, 8], strides = [1, 1, 1]} : vector<1x8x32xf32> to vector<1x8x8xf32>
    %140 = vector.extract_strided_slice %95 {offsets = [0, 0, 24], sizes = [1, 8, 8], strides = [1, 1, 1]} : vector<1x8x32xf32> to vector<1x8x8xf32>
    "tpu.trace_start"() <{level = 10 : i32, message = "bld,bmd->blm"}> : () -> ()
    %cst_61 = arith.constant dense<0.000000e+00> : vector<1x8x8xf32>
    %141 = tpu.matmul %138, %139, %cst_61 {dimension_numbers = #tpu.dot_dimension_numbers<[2], [2], [1], [1], [0, 0, 0, 1, 1, 1], [0], [0]>} : vector<1x8x8xf32>, vector<1x8x8xf32>, vector<1x8x8xf32> -> vector<1x8x8xf32>
    "tpu.trace_stop"() : () -> ()
    %cst_62 = arith.constant dense<0xFF800000> : vector<1x8xf32>
    %142 = vector.multi_reduction <maximumf>, %141, %cst_62 [2] : vector<1x8x8xf32> to vector<1x8xf32>
    %143 = vector.shape_cast %142 : vector<1x8xf32> to vector<1x8x1xf32>
    %144 = vector.broadcast %143 : vector<1x8x1xf32> to vector<1x8x8xf32>
    %145 = arith.subf %141, %144 : vector<1x8x8xf32>
    %146 = math.exp %145 : vector<1x8x8xf32>
    %cst_63 = arith.constant dense<0.000000e+00> : vector<1x8xf32>
    %147 = vector.multi_reduction <add>, %146, %cst_63 [2] : vector<1x8x8xf32> to vector<1x8xf32>
    %148 = vector.shape_cast %147 : vector<1x8xf32> to vector<1x8x1xf32>
    %149 = vector.broadcast %148 : vector<1x8x1xf32> to vector<1x8x8xf32>
    %150 = arith.divf %146, %149 : vector<1x8x8xf32>
    "tpu.trace_start"() <{level = 10 : i32, message = "blm,bmd->bld"}> : () -> ()
    %cst_64 = arith.constant dense<0.000000e+00> : vector<1x8x8xf32>
    %151 = tpu.matmul %150, %140, %cst_64 {dimension_numbers = #tpu.dot_dimension_numbers<[2], [1], [1], [2], [0, 0, 0, 1, 1, 2], [0], [0]>} : vector<1x8x8xf32>, vector<1x8x8xf32>, vector<1x8x8xf32> -> vector<1x8x8xf32>
    "tpu.trace_stop"() : () -> ()
    %152 = tpu.concatenate %109, %123, %137, %151 in 2 : vector<1x8x8xf32>, vector<1x8x8xf32>, vector<1x8x8xf32>, vector<1x8x8xf32> -> vector<1x8x32xf32>
    %153 = vector.shape_cast %152 : vector<1x8x32xf32> to vector<8x32xf32>
    %c0_65 = arith.constant 0 : index
    %c0_66 = arith.constant 0 : index
    %154 = vector.load %arg16[%c0_65, %c0_66] : memref<32x32xf32, #tpu.memory_space<vmem>>, vector<32x32xf32>
    %cst_67 = arith.constant dense<0.000000e+00> : vector<8x32xf32>
    %155 = tpu.matmul %153, %154, %cst_67 {dimension_numbers = #tpu.dot_dimension_numbers<[1], [0], [0], [1], [0, 0, 1, 1], [], []>} : vector<8x32xf32>, vector<32x32xf32>, vector<8x32xf32> -> vector<8x32xf32>
    %c0_68 = arith.constant 0 : index
    %c0_69 = arith.constant 0 : index
    %156 = vector.load %arg17[%c0_68, %c0_69] : memref<1x32xf32, #tpu.memory_space<vmem>>, vector<1x32xf32>
    %157 = vector.broadcast %156 : vector<1x32xf32> to vector<8x32xf32>
    %158 = arith.addf %155, %157 : vector<8x32xf32>
    %c0_70 = arith.constant 0 : index
    %c0_71 = arith.constant 0 : index
    %c0_72 = arith.constant 0 : index
    %159 = vector.load %arg1[%c0_70, %c0_71, %c0_72] : memref<1x8x32xf32, #tpu.memory_space<vmem>>, vector<1x8x32xf32>
    %160 = vector.shape_cast %159 : vector<1x8x32xf32> to vector<8x32xf32>
    %161 = arith.addf %160, %158 : vector<8x32xf32>
    %162 = vector.shape_cast %161 : vector<8x32xf32> to vector<1x8x32xf32>
    %c0_73 = arith.constant 0 : index
    %c0_74 = arith.constant 0 : index
    %c0_75 = arith.constant 0 : index
    %163 = vector.load %arg18[%c0_73, %c0_74, %c0_75] : memref<1x8x32xf32, #tpu.memory_space<vmem>>, vector<1x8x32xf32>
    tpu.vector_store %arg18[%c0_73, %c0_74, %c0_75], %162 {strides = array<i32>} : memref<1x8x32xf32, #tpu.memory_space<vmem>>, vector<1x8x32xf32>,
    return
  }
  func.func @transform_0(%arg0: i32) -> (i32, i32, i32) {
    %c0_i32 = arith.constant 0 : i32
    %c0_i32_0 = arith.constant 0 : i32
    %c0_i32_1 = arith.constant 0 : i32
    return %arg0, %c0_i32, %c0_i32_0 : i32, i32, i32
  }
  func.func @transform_1(%arg0: i32) -> (i32, i32, i32) {
    %c0_i32 = arith.constant 0 : i32
    %c0_i32_0 = arith.constant 0 : i32
    %c0_i32_1 = arith.constant 0 : i32
    return %arg0, %c0_i32, %c0_i32_0 : i32, i32, i32
  }
  func.func @transform_2(%arg0: i32) -> (i32, i32, i32) {
    %c0_i32 = arith.constant 0 : i32
    %c0_i32_0 = arith.constant 0 : i32
    %c0_i32_1 = arith.constant 0 : i32
    return %arg0, %c0_i32, %c0_i32_0 : i32, i32, i32
  }
  func.func @transform_3(%arg0: i32) -> (i32, i32) {
    %c0_i32 = arith.constant 0 : i32
    %c0_i32_0 = arith.constant 0 : i32
    %c0_i32_1 = arith.constant 0 : i32
    return %c0_i32, %c0_i32_0 : i32, i32
  }
  func.func @transform_4(%arg0: i32) -> (i32, i32) {
    %c0_i32 = arith.constant 0 : i32
    %c0_i32_0 = arith.constant 0 : i32
    %c0_i32_1 = arith.constant 0 : i32
    return %c0_i32, %c0_i32_0 : i32, i32
  }
  func.func @transform_5(%arg0: i32) -> (i32, i32) {
    %c0_i32 = arith.constant 0 : i32
    %c0_i32_0 = arith.constant 0 : i32
    %c0_i32_1 = arith.constant 0 : i32
    return %c0_i32, %c0_i32_0 : i32, i32
  }
  func.func @transform_6(%arg0: i32) -> (i32, i32) {
    %c0_i32 = arith.constant 0 : i32
    %c0_i32_0 = arith.constant 0 : i32
    %c0_i32_1 = arith.constant 0 : i32
    return %c0_i32, %c0_i32_0 : i32, i32
  }
  func.func @transform_7(%arg0: i32) -> (i32, i32) {
    %c0_i32 = arith.constant 0 : i32
    %c0_i32_0 = arith.constant 0 : i32
    %c0_i32_1 = arith.constant 0 : i32
    return %c0_i32, %c0_i32_0 : i32, i32
  }
  func.func @transform_8(%arg0: i32) -> (i32, i32) {
    %c0_i32 = arith.constant 0 : i32
    %c0_i32_0 = arith.constant 0 : i32
    %c0_i32_1 = arith.constant 0 : i32
    return %c0_i32, %c0_i32_0 : i32, i32
  }
  func.func @transform_9(%arg0: i32) -> (i32, i32) {
    %c0_i32 = arith.constant 0 : i32
    %c0_i32_0 = arith.constant 0 : i32
    %c0_i32_1 = arith.constant 0 : i32
    return %c0_i32, %c0_i32_0 : i32, i32
  }
  func.func @transform_10(%arg0: i32) -> (i32, i32) {
    %c0_i32 = arith.constant 0 : i32
    %c0_i32_0 = arith.constant 0 : i32
    %c0_i32_1 = arith.constant 0 : i32
    return %c0_i32, %c0_i32_0 : i32, i32
  }
  func.func @transform_11(%arg0: i32) -> (i32, i32) {
    %c0_i32 = arith.constant 0 : i32
    %c0_i32_0 = arith.constant 0 : i32
    %c0_i32_1 = arith.constant 0 : i32
    return %c0_i32, %c0_i32_0 : i32, i32
  }
  func.func @transform_12(%arg0: i32) -> (i32, i32) {
    %c0_i32 = arith.constant 0 : i32
    %c0_i32_0 = arith.constant 0 : i32
    %c0_i32_1 = arith.constant 0 : i32
    return %c0_i32, %c0_i32_0 : i32, i32
  }
  func.func @transform_13(%arg0: i32) -> (i32, i32) {
    %c0_i32 = arith.constant 0 : i32
    %c0_i32_0 = arith.constant 0 : i32
    %c0_i32_1 = arith.constant 0 : i32
    return %c0_i32, %c0_i32_0 : i32, i32
  }
  func.func @transform_14(%arg0: i32) -> (i32, i32) {
    %c0_i32 = arith.constant 0 : i32
    %c0_i32_0 = arith.constant 0 : i32
    %c0_i32_1 = arith.constant 0 : i32
    return %c0_i32, %c0_i32_0 : i32, i32
  }
  func.func @transform_15(%arg0: i32) -> (i32, i32) {
    %c0_i32 = arith.constant 0 : i32
    %c0_i32_0 = arith.constant 0 : i32
    %c0_i32_1 = arith.constant 0 : i32
    return %c0_i32, %c0_i32_0 : i32, i32
  }
  func.func @transform_16(%arg0: i32) -> (i32, i32) {
    %c0_i32 = arith.constant 0 : i32
    %c0_i32_0 = arith.constant 0 : i32
    %c0_i32_1 = arith.constant 0 : i32
    return %c0_i32, %c0_i32_0 : i32, i32
  }
  func.func @transform_17(%arg0: i32) -> (i32, i32, i32) {
    %c0_i32 = arith.constant 0 : i32
    %c0_i32_0 = arith.constant 0 : i32
    %c0_i32_1 = arith.constant 0 : i32
    return %arg0, %c0_i32, %c0_i32_0 : i32, i32, i32
  }
}

module attributes {stable_mosaic.version = 11 : i64} {
  func.func @_cross_attn_kernel(%arg0: i32, %arg1: memref<1x8x32xf32, #tpu.memory_space<vmem>>, %arg2: memref<1x8x32xf32, #tpu.memory_space<vmem>>, %arg3: memref<1x8x32xf32, #tpu.memory_space<vmem>>, %arg4: memref<1x32xf32, #tpu.memory_space<vmem>>, %arg5: memref<1x32xf32, #tpu.memory_space<vmem>>, %arg6: memref<1x32xf32, #tpu.memory_space<vmem>>, %arg7: memref<1x32xf32, #tpu.memory_space<vmem>>, %arg8: memref<1x32xf32, #tpu.memory_space<vmem>>, %arg9: memref<1x32xf32, #tpu.memory_space<vmem>>, %arg10: memref<32x32xf32, #tpu.memory_space<vmem>>, %arg11: memref<32x32xf32, #tpu.memory_space<vmem>>, %arg12: memref<32x32xf32, #tpu.memory_space<vmem>>, %arg13: memref<1x32xf32, #tpu.memory_space<vmem>>, %arg14: memref<1x32xf32, #tpu.memory_space<vmem>>, %arg15: memref<1x32xf32, #tpu.memory_space<vmem>>, %arg16: memref<32x32xf32, #tpu.memory_space<vmem>>, %arg17: memref<1x32xf32, #tpu.memory_space<vmem>>, %arg18: memref<1x8x32xf32, #tpu.memory_space<vmem>>) attributes {dimension_semantics = [#tpu.dimension_semantics<parallel>], iteration_bounds = array<i64: 4>, scalar_prefetch = 0 : i64, scratch_operands = 0 : i64, tpu.core_type = #tpu.core_type<tc>, window_params = [{transform_indices = @transform_0, window_bounds = array<i64: 1, 8, 32>}, {transform_indices = @transform_1, window_bounds = array<i64: 1, 8, 32>}, {transform_indices = @transform_2, window_bounds = array<i64: 1, 8, 32>}, {pipeline_mode = #tpu.pipeline_mode<synchronous>, transform_indices = @transform_3, window_bounds = array<i64: 1, 32>}, {pipeline_mode = #tpu.pipeline_mode<synchronous>, transform_indices = @transform_4, window_bounds = array<i64: 1, 32>}, {pipeline_mode = #tpu.pipeline_mode<synchronous>, transform_indices = @transform_5, window_bounds = array<i64: 1, 32>}, {pipeline_mode = #tpu.pipeline_mode<synchronous>, transform_indices = @transform_6, window_bounds = array<i64: 1, 32>}, {pipeline_mode = #tpu.pipeline_mode<synchronous>, transform_indices = @transform_7, window_bounds = array<i64: 1, 32>}, {pipeline_mode = #tpu.pipeline_mode<synchronous>, transform_indices = @transform_8, window_bounds = array<i64: 1, 32>}, {pipeline_mode = #tpu.pipeline_mode<synchronous>, transform_indices = @transform_9, window_bounds = array<i64: 32, 32>}, {pipeline_mode = #tpu.pipeline_mode<synchronous>, transform_indices = @transform_10, window_bounds = array<i64: 32, 32>}, {pipeline_mode = #tpu.pipeline_mode<synchronous>, transform_indices = @transform_11, window_bounds = array<i64: 32, 32>}, {pipeline_mode = #tpu.pipeline_mode<synchronous>, transform_indices = @transform_12, window_bounds = array<i64: 1, 32>}, {pipeline_mode = #tpu.pipeline_mode<synchronous>, transform_indices = @transform_13, window_bounds = array<i64: 1, 32>}, {pipeline_mode = #tpu.pipeline_mode<synchronous>, transform_indices = @transform_14, window_bounds = array<i64: 1, 32>}, {pipeline_mode = #tpu.pipeline_mode<synchronous>, transform_indices = @transform_15, window_bounds = array<i64: 32, 32>}, {pipeline_mode = #tpu.pipeline_mode<synchronous>, transform_indices = @transform_16, window_bounds = array<i64: 1, 32>}, {transform_indices = @transform_17, window_bounds = array<i64: 1, 8, 32>}]} {
    %c0 = arith.constant 0 : index
    %c0_0 = arith.constant 0 : index
    %c0_1 = arith.constant 0 : index
    %0 = vector.load %arg1[%c0, %c0_0, %c0_1] : memref<1x8x32xf32, #tpu.memory_space<vmem>>, vector<1x8x32xf32>
    %1 = vector.shape_cast %0 : vector<1x8x32xf32> to vector<8x32xf32>
    %c0_2 = arith.constant 0 : index
    %c0_3 = arith.constant 0 : index
    %2 = vector.load %arg4[%c0_2, %c0_3] : memref<1x32xf32, #tpu.memory_space<vmem>>, vector<1x32xf32>
    %c0_4 = arith.constant 0 : index
    %c0_5 = arith.constant 0 : index
    %3 = vector.load %arg5[%c0_4, %c0_5] : memref<1x32xf32, #tpu.memory_space<vmem>>, vector<1x32xf32>
    %cst = arith.constant dense<0.000000e+00> : vector<8xf32>
    %4 = vector.multi_reduction <add>, %1, %cst [1] : vector<8x32xf32> to vector<8xf32>
    %5 = vector.shape_cast %4 : vector<8xf32> to vector<8x1xf32>
    %cst_6 = arith.constant 3.200000e+01 : f32
    %6 = vector.broadcast %cst_6 : f32 to vector<8x1xf32>
    %7 = arith.divf %5, %6 : vector<8x1xf32>
    %8 = vector.broadcast %7 : vector<8x1xf32> to vector<8x32xf32>
    %9 = arith.subf %1, %8 : vector<8x32xf32>
    %10 = arith.mulf %9, %9 : vector<8x32xf32>
    %cst_7 = arith.constant dense<0.000000e+00> : vector<8xf32>
    %11 = vector.multi_reduction <add>, %10, %cst_7 [1] : vector<8x32xf32> to vector<8xf32>
    %12 = vector.shape_cast %11 : vector<8xf32> to vector<8x1xf32>
    %cst_8 = arith.constant 3.200000e+01 : f32
    %13 = vector.broadcast %cst_8 : f32 to vector<8x1xf32>
    %14 = arith.divf %12, %13 : vector<8x1xf32>
    %15 = vector.broadcast %7 : vector<8x1xf32> to vector<8x32xf32>
    %16 = arith.subf %1, %15 : vector<8x32xf32>
    %cst_9 = arith.constant 9.99999974E-6 : f32
    %17 = vector.broadcast %cst_9 : f32 to vector<8x1xf32>
    %18 = arith.addf %14, %17 : vector<8x1xf32>
    %19 = math.rsqrt %18 : vector<8x1xf32>
    %20 = vector.broadcast %19 : vector<8x1xf32> to vector<8x32xf32>
    %21 = arith.mulf %16, %20 : vector<8x32xf32>
    %22 = vector.broadcast %2 : vector<1x32xf32> to vector<8x32xf32>
    %23 = arith.mulf %21, %22 : vector<8x32xf32>
    %24 = vector.broadcast %3 : vector<1x32xf32> to vector<8x32xf32>
    %25 = arith.addf %23, %24 : vector<8x32xf32>
    %c0_10 = arith.constant 0 : index
    %c0_11 = arith.constant 0 : index
    %c0_12 = arith.constant 0 : index
    %26 = vector.load %arg2[%c0_10, %c0_11, %c0_12] : memref<1x8x32xf32, #tpu.memory_space<vmem>>, vector<1x8x32xf32>
    %27 = vector.shape_cast %26 : vector<1x8x32xf32> to vector<8x32xf32>
    %c0_13 = arith.constant 0 : index
    %c0_14 = arith.constant 0 : index
    %28 = vector.load %arg6[%c0_13, %c0_14] : memref<1x32xf32, #tpu.memory_space<vmem>>, vector<1x32xf32>
    %c0_15 = arith.constant 0 : index
    %c0_16 = arith.constant 0 : index
    %29 = vector.load %arg7[%c0_15, %c0_16] : memref<1x32xf32, #tpu.memory_space<vmem>>, vector<1x32xf32>
    %cst_17 = arith.constant dense<0.000000e+00> : vector<8xf32>
    %30 = vector.multi_reduction <add>, %27, %cst_17 [1] : vector<8x32xf32> to vector<8xf32>
    %31 = vector.shape_cast %30 : vector<8xf32> to vector<8x1xf32>
    %cst_18 = arith.constant 3.200000e+01 : f32
    %32 = vector.broadcast %cst_18 : f32 to vector<8x1xf32>
    %33 = arith.divf %31, %32 : vector<8x1xf32>
    %34 = vector.broadcast %33 : vector<8x1xf32> to vector<8x32xf32>
    %35 = arith.subf %27, %34 : vector<8x32xf32>
    %36 = arith.mulf %35, %35 : vector<8x32xf32>
    %cst_19 = arith.constant dense<0.000000e+00> : vector<8xf32>
    %37 = vector.multi_reduction <add>, %36, %cst_19 [1] : vector<8x32xf32> to vector<8xf32>
    %38 = vector.shape_cast %37 : vector<8xf32> to vector<8x1xf32>
    %cst_20 = arith.constant 3.200000e+01 : f32
    %39 = vector.broadcast %cst_20 : f32 to vector<8x1xf32>
    %40 = arith.divf %38, %39 : vector<8x1xf32>
    %41 = vector.broadcast %33 : vector<8x1xf32> to vector<8x32xf32>
    %42 = arith.subf %27, %41 : vector<8x32xf32>
    %cst_21 = arith.constant 9.99999974E-6 : f32
    %43 = vector.broadcast %cst_21 : f32 to vector<8x1xf32>
    %44 = arith.addf %40, %43 : vector<8x1xf32>
    %45 = math.rsqrt %44 : vector<8x1xf32>
    %46 = vector.broadcast %45 : vector<8x1xf32> to vector<8x32xf32>
    %47 = arith.mulf %42, %46 : vector<8x32xf32>
    %48 = vector.broadcast %28 : vector<1x32xf32> to vector<8x32xf32>
    %49 = arith.mulf %47, %48 : vector<8x32xf32>
    %50 = vector.broadcast %29 : vector<1x32xf32> to vector<8x32xf32>
    %51 = arith.addf %49, %50 : vector<8x32xf32>
    %c0_22 = arith.constant 0 : index
    %c0_23 = arith.constant 0 : index
    %c0_24 = arith.constant 0 : index
    %52 = vector.load %arg3[%c0_22, %c0_23, %c0_24] : memref<1x8x32xf32, #tpu.memory_space<vmem>>, vector<1x8x32xf32>
    %53 = vector.shape_cast %52 : vector<1x8x32xf32> to vector<8x32xf32>
    %c0_25 = arith.constant 0 : index
    %c0_26 = arith.constant 0 : index
    %54 = vector.load %arg8[%c0_25, %c0_26] : memref<1x32xf32, #tpu.memory_space<vmem>>, vector<1x32xf32>
    %c0_27 = arith.constant 0 : index
    %c0_28 = arith.constant 0 : index
    %55 = vector.load %arg9[%c0_27, %c0_28] : memref<1x32xf32, #tpu.memory_space<vmem>>, vector<1x32xf32>
    %cst_29 = arith.constant dense<0.000000e+00> : vector<8xf32>
    %56 = vector.multi_reduction <add>, %53, %cst_29 [1] : vector<8x32xf32> to vector<8xf32>
    %57 = vector.shape_cast %56 : vector<8xf32> to vector<8x1xf32>
    %cst_30 = arith.constant 3.200000e+01 : f32
    %58 = vector.broadcast %cst_30 : f32 to vector<8x1xf32>
    %59 = arith.divf %57, %58 : vector<8x1xf32>
    %60 = vector.broadcast %59 : vector<8x1xf32> to vector<8x32xf32>
    %61 = arith.subf %53, %60 : vector<8x32xf32>
    %62 = arith.mulf %61, %61 : vector<8x32xf32>
    %cst_31 = arith.constant dense<0.000000e+00> : vector<8xf32>
    %63 = vector.multi_reduction <add>, %62, %cst_31 [1] : vector<8x32xf32> to vector<8xf32>
    %64 = vector.shape_cast %63 : vector<8xf32> to vector<8x1xf32>
    %cst_32 = arith.constant 3.200000e+01 : f32
    %65 = vector.broadcast %cst_32 : f32 to vector<8x1xf32>
    %66 = arith.divf %64, %65 : vector<8x1xf32>
    %67 = vector.broadcast %59 : vector<8x1xf32> to vector<8x32xf32>
    %68 = arith.subf %53, %67 : vector<8x32xf32>
    %cst_33 = arith.constant 9.99999974E-6 : f32
    %69 = vector.broadcast %cst_33 : f32 to vector<8x1xf32>
    %70 = arith.addf %66, %69 : vector<8x1xf32>
    %71 = math.rsqrt %70 : vector<8x1xf32>
    %72 = vector.broadcast %71 : vector<8x1xf32> to vector<8x32xf32>
    %73 = arith.mulf %68, %72 : vector<8x32xf32>
    %74 = vector.broadcast %54 : vector<1x32xf32> to vector<8x32xf32>
    %75 = arith.mulf %73, %74 : vector<8x32xf32>
    %76 = vector.broadcast %55 : vector<1x32xf32> to vector<8x32xf32>
    %77 = arith.addf %75, %76 : vector<8x32xf32>
    %c0_34 = arith.constant 0 : index
    %c0_35 = arith.constant 0 : index
    %78 = vector.load %arg10[%c0_34, %c0_35] : memref<32x32xf32, #tpu.memory_space<vmem>>, vector<32x32xf32>
    %cst_36 = arith.constant dense<0.000000e+00> : vector<8x32xf32>
    %79 = tpu.matmul %25, %78, %cst_36 {dimension_numbers = #tpu.dot_dimension_numbers<[1], [0], [0], [1], [0, 0, 1, 1], [], []>} : vector<8x32xf32>, vector<32x32xf32>, vector<8x32xf32> -> vector<8x32xf32>
    %c0_37 = arith.constant 0 : index
    %c0_38 = arith.constant 0 : index
    %80 = vector.load %arg13[%c0_37, %c0_38] : memref<1x32xf32, #tpu.memory_space<vmem>>, vector<1x32xf32>
    %81 = vector.broadcast %80 : vector<1x32xf32> to vector<8x32xf32>
    %82 = arith.addf %79, %81 : vector<8x32xf32>
    %83 = vector.shape_cast %82 : vector<8x32xf32> to vector<1x8x32xf32>
    %c0_39 = arith.constant 0 : index
    %c0_40 = arith.constant 0 : index
    %84 = vector.load %arg11[%c0_39, %c0_40] : memref<32x32xf32, #tpu.memory_space<vmem>>, vector<32x32xf32>
    %cst_41 = arith.constant dense<0.000000e+00> : vector<8x32xf32>
    %85 = tpu.matmul %51, %84, %cst_41 {dimension_numbers = #tpu.dot_dimension_numbers<[1], [0], [0], [1], [0, 0, 1, 1], [], []>} : vector<8x32xf32>, vector<32x32xf32>, vector<8x32xf32> -> vector<8x32xf32>
    %c0_42 = arith.constant 0 : index
    %c0_43 = arith.constant 0 : index
    %86 = vector.load %arg14[%c0_42, %c0_43] : memref<1x32xf32, #tpu.memory_space<vmem>>, vector<1x32xf32>
    %87 = vector.broadcast %86 : vector<1x32xf32> to vector<8x32xf32>
    %88 = arith.addf %85, %87 : vector<8x32xf32>
    %89 = vector.shape_cast %88 : vector<8x32xf32> to vector<1x8x32xf32>
    %c0_44 = arith.constant 0 : index
    %c0_45 = arith.constant 0 : index
    %90 = vector.load %arg12[%c0_44, %c0_45] : memref<32x32xf32, #tpu.memory_space<vmem>>, vector<32x32xf32>
    %cst_46 = arith.constant dense<0.000000e+00> : vector<8x32xf32>
    %91 = tpu.matmul %77, %90, %cst_46 {dimension_numbers = #tpu.dot_dimension_numbers<[1], [0], [0], [1], [0, 0, 1, 1], [], []>} : vector<8x32xf32>, vector<32x32xf32>, vector<8x32xf32> -> vector<8x32xf32>
    %c0_47 = arith.constant 0 : index
    %c0_48 = arith.constant 0 : index
    %92 = vector.load %arg15[%c0_47, %c0_48] : memref<1x32xf32, #tpu.memory_space<vmem>>, vector<1x32xf32>
    %93 = vector.broadcast %92 : vector<1x32xf32> to vector<8x32xf32>
    %94 = arith.addf %91, %93 : vector<8x32xf32>
    %95 = vector.shape_cast %94 : vector<8x32xf32> to vector<1x8x32xf32>
    %96 = vector.extract_strided_slice %83 {offsets = [0, 0, 0], sizes = [1, 8, 8], strides = [1, 1, 1]} : vector<1x8x32xf32> to vector<1x8x8xf32>
    %97 = vector.extract_strided_slice %89 {offsets = [0, 0, 0], sizes = [1, 8, 8], strides = [1, 1, 1]} : vector<1x8x32xf32> to vector<1x8x8xf32>
    %98 = vector.extract_strided_slice %95 {offsets = [0, 0, 0], sizes = [1, 8, 8], strides = [1, 1, 1]} : vector<1x8x32xf32> to vector<1x8x8xf32>
    "tpu.trace_start"() <{level = 10 : i32, message = "bld,bmd->blm"}> : () -> ()
    %cst_49 = arith.constant dense<0.000000e+00> : vector<1x8x8xf32>
    %99 = tpu.matmul %96, %97, %cst_49 {dimension_numbers = #tpu.dot_dimension_numbers<[2], [2], [1], [1], [0, 0, 0, 1, 1, 1], [0], [0]>} : vector<1x8x8xf32>, vector<1x8x8xf32>, vector<1x8x8xf32> -> vector<1x8x8xf32>
    "tpu.trace_stop"() : () -> ()
    %cst_50 = arith.constant dense<0xFF800000> : vector<1x8xf32>
    %100 = vector.multi_reduction <maximumf>, %99, %cst_50 [2] : vector<1x8x8xf32> to vector<1x8xf32>
    %101 = vector.shape_cast %100 : vector<1x8xf32> to vector<1x8x1xf32>
    %102 = vector.broadcast %101 : vector<1x8x1xf32> to vector<1x8x8xf32>
    %103 = arith.subf %99, %102 : vector<1x8x8xf32>
    %104 = math.exp %103 : vector<1x8x8xf32>
    %cst_51 = arith.constant dense<0.000000e+00> : vector<1x8xf32>
    %105 = vector.multi_reduction <add>, %104, %cst_51 [2] : vector<1x8x8xf32> to vector<1x8xf32>
    %106 = vector.shape_cast %105 : vector<1x8xf32> to vector<1x8x1xf32>
    %107 = vector.broadcast %106 : vector<1x8x1xf32> to vector<1x8x8xf32>
    %108 = arith.divf %104, %107 : vector<1x8x8xf32>
    "tpu.trace_start"() <{level = 10 : i32, message = "blm,bmd->bld"}> : () -> ()
    %cst_52 = arith.constant dense<0.000000e+00> : vector<1x8x8xf32>
    %109 = tpu.matmul %108, %98, %cst_52 {dimension_numbers = #tpu.dot_dimension_numbers<[2], [1], [1], [2], [0, 0, 0, 1, 1, 2], [0], [0]>} : vector<1x8x8xf32>, vector<1x8x8xf32>, vector<1x8x8xf32> -> vector<1x8x8xf32>
    "tpu.trace_stop"() : () -> ()
    %110 = vector.extract_strided_slice %83 {offsets = [0, 0, 8], sizes = [1, 8, 8], strides = [1, 1, 1]} : vector<1x8x32xf32> to vector<1x8x8xf32>
    %111 = vector.extract_strided_slice %89 {offsets = [0, 0, 8], sizes = [1, 8, 8], strides = [1, 1, 1]} : vector<1x8x32xf32> to vector<1x8x8xf32>
    %112 = vector.extract_strided_slice %95 {offsets = [0, 0, 8], sizes = [1, 8, 8], strides = [1, 1, 1]} : vector<1x8x32xf32> to vector<1x8x8xf32>
    "tpu.trace_start"() <{level = 10 : i32, message = "bld,bmd->blm"}> : () -> ()
    %cst_53 = arith.constant dense<0.000000e+00> : vector<1x8x8xf32>
    %113 = tpu.matmul %110, %111, %cst_53 {dimension_numbers = #tpu.dot_dimension_numbers<[2], [2], [1], [1], [0, 0, 0, 1, 1, 1], [0], [0]>} : vector<1x8x8xf32>, vector<1x8x8xf32>, vector<1x8x8xf32> -> vector<1x8x8xf32>
    "tpu.trace_stop"() : () -> ()
    %cst_54 = arith.constant dense<0xFF800000> : vector<1x8xf32>
    %114 = vector.multi_reduction <maximumf>, %113, %cst_54 [2] : vector<1x8x8xf32> to vector<1x8xf32>
    %115 = vector.shape_cast %114 : vector<1x8xf32> to vector<1x8x1xf32>
    %116 = vector.broadcast %115 : vector<1x8x1xf32> to vector<1x8x8xf32>
    %117 = arith.subf %113, %116 : vector<1x8x8xf32>
    %118 = math.exp %117 : vector<1x8x8xf32>
    %cst_55 = arith.constant dense<0.000000e+00> : vector<1x8xf32>
    %119 = vector.multi_reduction <add>, %118, %cst_55 [2] : vector<1x8x8xf32> to vector<1x8xf32>
    %120 = vector.shape_cast %119 : vector<1x8xf32> to vector<1x8x1xf32>
    %121 = vector.broadcast %120 : vector<1x8x1xf32> to vector<1x8x8xf32>
    %122 = arith.divf %118, %121 : vector<1x8x8xf32>
    "tpu.trace_start"() <{level = 10 : i32, message = "blm,bmd->bld"}> : () -> ()
    %cst_56 = arith.constant dense<0.000000e+00> : vector<1x8x8xf32>
    %123 = tpu.matmul %122, %112, %cst_56 {dimension_numbers = #tpu.dot_dimension_numbers<[2], [1], [1], [2], [0, 0, 0, 1, 1, 2], [0], [0]>} : vector<1x8x8xf32>, vector<1x8x8xf32>, vector<1x8x8xf32> -> vector<1x8x8xf32>
    "tpu.trace_stop"() : () -> ()
    %124 = vector.extract_strided_slice %83 {offsets = [0, 0, 16], sizes = [1, 8, 8], strides = [1, 1, 1]} : vector<1x8x32xf32> to vector<1x8x8xf32>
    %125 = vector.extract_strided_slice %89 {offsets = [0, 0, 16], sizes = [1, 8, 8], strides = [1, 1, 1]} : vector<1x8x32xf32> to vector<1x8x8xf32>
    %126 = vector.extract_strided_slice %95 {offsets = [0, 0, 16], sizes = [1, 8, 8], strides = [1, 1, 1]} : vector<1x8x32xf32> to vector<1x8x8xf32>
    "tpu.trace_start"() <{level = 10 : i32, message = "bld,bmd->blm"}> : () -> ()
    %cst_57 = arith.constant dense<0.000000e+00> : vector<1x8x8xf32>
    %127 = tpu.matmul %124, %125, %cst_57 {dimension_numbers = #tpu.dot_dimension_numbers<[2], [2], [1], [1], [0, 0, 0, 1, 1, 1], [0], [0]>} : vector<1x8x8xf32>, vector<1x8x8xf32>, vector<1x8x8xf32> -> vector<1x8x8xf32>
    "tpu.trace_stop"() : () -> ()
    %cst_58 = arith.constant dense<0xFF800000> : vector<1x8xf32>
    %128 = vector.multi_reduction <maximumf>, %127, %cst_58 [2] : vector<1x8x8xf32> to vector<1x8xf32>
    %129 = vector.shape_cast %128 : vector<1x8xf32> to vector<1x8x1xf32>
    %130 = vector.broadcast %129 : vector<1x8x1xf32> to vector<1x8x8xf32>
    %131 = arith.subf %127, %130 : vector<1x8x8xf32>
    %132 = math.exp %131 : vector<1x8x8xf32>
    %cst_59 = arith.constant dense<0.000000e+00> : vector<1x8xf32>
    %133 = vector.multi_reduction <add>, %132, %cst_59 [2] : vector<1x8x8xf32> to vector<1x8xf32>
    %134 = vector.shape_cast %133 : vector<1x8xf32> to vector<1x8x1xf32>
    %135 = vector.broadcast %134 : vector<1x8x1xf32> to vector<1x8x8xf32>
    %136 = arith.divf %132, %135 : vector<1x8x8xf32>
    "tpu.trace_start"() <{level = 10 : i32, message = "blm,bmd->bld"}> : () -> ()
    %cst_60 = arith.constant dense<0.000000e+00> : vector<1x8x8xf32>
    %137 = tpu.matmul %136, %126, %cst_60 {dimension_numbers = #tpu.dot_dimension_numbers<[2], [1], [1], [2], [0, 0, 0, 1, 1, 2], [0], [0]>} : vector<1x8x8xf32>, vector<1x8x8xf32>, vector<1x8x8xf32> -> vector<1x8x8xf32>
    "tpu.trace_stop"() : () -> ()
    %138 = vector.extract_strided_slice %83 {offsets = [0, 0, 24], sizes = [1, 8, 8], strides = [1, 1, 1]} : vector<1x8x32xf32> to vector<1x8x8xf32>
    %139 = vector.extract_strided_slice %89 {offsets = [0, 0, 24], sizes = [1, 8, 8], strides = [1, 1, 1]} : vector<1x8x32xf32> to vector<1x8x8xf32>
    %140 = vector.extract_strided_slice %95 {offsets = [0, 0, 24], sizes = [1, 8, 8], strides = [1, 1, 1]} : vector<1x8x32xf32> to vector<1x8x8xf32>
    "tpu.trace_start"() <{level = 10 : i32, message = "bld,bmd->blm"}> : () -> ()
    %cst_61 = arith.constant dense<0.000000e+00> : vector<1x8x8xf32>
    %141 = tpu.matmul %138, %139, %cst_61 {dimension_numbers = #tpu.dot_dimension_numbers<[2], [2], [1], [1], [0, 0, 0, 1, 1, 1], [0], [0]>} : vector<1x8x8xf32>, vector<1x8x8xf32>, vector<1x8x8xf32> -> vector<1x8x8xf32>
    "tpu.trace_stop"() : () -> ()
    %cst_62 = arith.constant dense<0xFF800000> : vector<1x8xf32>
    %142 = vector.multi_reduction <maximumf>, %141, %cst_62 [2] : vector<1x8x8xf32> to vector<1x8xf32>
    %143 = vector.shape_cast %142 : vector<1x8xf32> to vector<1x8x1xf32>
    %144 = vector.broadcast %143 : vector<1x8x1xf32> to vector<1x8x8xf32>
    %145 = arith.subf %141, %144 : vector<1x8x8xf32>
    %146 = math.exp %145 : vector<1x8x8xf32>
    %cst_63 = arith.constant dense<0.000000e+00> : vector<1x8xf32>
    %147 = vector.multi_reduction <add>, %146, %cst_63 [2] : vector<1x8x8xf32> to vector<1x8xf32>
    %148 = vector.shape_cast %147 : vector<1x8xf32> to vector<1x8x1xf32>
    %149 = vector.broadcast %148 : vector<1x8x1xf32> to vector<1x8x8xf32>
    %150 = arith.divf %146, %149 : vector<1x8x8xf32>
    "tpu.trace_start"() <{level = 10 : i32, message = "blm,bmd->bld"}> : () -> ()
    %cst_64 = arith.constant dense<0.000000e+00> : vector<1x8x8xf32>
    %151 = tpu.matmul %150, %140, %cst_64 {dimension_numbers = #tpu.dot_dimension_numbers<[2], [1], [1], [2], [0, 0, 0, 1, 1, 2], [0], [0]>} : vector<1x8x8xf32>, vector<1x8x8xf32>, vector<1x8x8xf32> -> vector<1x8x8xf32>
    "tpu.trace_stop"() : () -> ()
    %152 = tpu.concatenate %109, %123, %137, %151 in 2 : vector<1x8x8xf32>, vector<1x8x8xf32>, vector<1x8x8xf32>, vector<1x8x8xf32> -> vector<1x8x32xf32>
    %153 = vector.shape_cast %152 : vector<1x8x32xf32> to vector<8x32xf32>
    %c0_65 = arith.constant 0 : index
    %c0_66 = arith.constant 0 : index
    %154 = vector.load %arg16[%c0_65, %c0_66] : memref<32x32xf32, #tpu.memory_space<vmem>>, vector<32x32xf32>
    %cst_67 = arith.constant dense<0.000000e+00> : vector<8x32xf32>
    %155 = tpu.matmul %153, %154, %cst_67 {dimension_numbers = #tpu.dot_dimension_numbers<[1], [0], [0], [1], [0, 0, 1, 1], [], []>} : vector<8x32xf32>, vector<32x32xf32>, vector<8x32xf32> -> vector<8x32xf32>
    %c0_68 = arith.constant 0 : index
    %c0_69 = arith.constant 0 : index
    %156 = vector.load %arg17[%c0_68, %c0_69] : memref<1x32xf32, #tpu.memory_space<vmem>>, vector<1x32xf32>
    %157 = vector.broadcast %156 : vector<1x32xf32> to vector<8x32xf32>
    %158 = arith.addf %155, %157 : vector<8x32xf32>
    %c0_70 = arith.constant 0 : index
    %c0_71 = arith.constant 0 : index
    %c0_72 = arith.constant 0 : index
    %159 = vector.load %arg1[%c0_70, %c0_71, %c0_72] : memref<1x8x32xf32, #tpu.memory_space<vmem>>, vector<1x8x32xf32>
    %160 = vector.shape_cast %159 : vector<1x8x32xf32> to vector<8x32xf32>
    %161 = arith.addf %160, %158 : vector<8x32xf32>
    %162 = vector.shape_cast %161 : vector<8x32xf32> to vector<1x8x32xf32>
    %c0_73 = arith.constant 0 : index
    %c0_74 = arith.constant 0 : index
    %c0_75 = arith.constant 0 : index
    %163 = vector.load %arg18[%c0_73, %c0_74, %c0_75] : memref<1x8x32xf32, #tpu.memory_space<vmem>>, vector<1x8x32xf32>
    tpu.vector_store %arg18[%c0_73, %c0_74, %c0_75], %162 {strides = array<i32>} : memref<1x8x32xf32, #tpu.memory_space<vmem>>, vector<1x8x32xf32>,
    return
  }
  func.func @transform_0(%arg0: i32) -> (i32, i32, i32) {
    %c0_i32 = arith.constant 0 : i32
    %c0_i32_0 = arith.constant 0 : i32
    %c0_i32_1 = arith.constant 0 : i32
    return %arg0, %c0_i32, %c0_i32_0 : i32, i32, i32
  }
  func.func @transform_1(%arg0: i32) -> (i32, i32, i32) {
    %c0_i32 = arith.constant 0 : i32
    %c0_i32_0 = arith.constant 0 : i32
    %c0_i32_1 = arith.constant 0 : i32
    return %arg0, %c0_i32, %c0_i32_0 : i32, i32, i32
  }
  func.func @transform_2(%arg0: i32) -> (i32, i32, i32) {
    %c0_i32 = arith.constant 0 : i32
    %c0_i32_0 = arith.constant 0 : i32
    %c0_i32_1 = arith.constant 0 : i32
    return %arg0, %c0_i32, %c0_i32_0 : i32, i32, i32
  }
  func.func @transform_3(%arg0: i32) -> (i32, i32) {
    %c0_i32 = arith.constant 0 : i32
    %c0_i32_0 = arith.constant 0 : i32
    %c0_i32_1 = arith.constant 0 : i32
    return %c0_i32, %c0_i32_0 : i32, i32
  }
  func.func @transform_4(%arg0: i32) -> (i32, i32) {
    %c0_i32 = arith.constant 0 : i32
    %c0_i32_0 = arith.constant 0 : i32
    %c0_i32_1 = arith.constant 0 : i32
    return %c0_i32, %c0_i32_0 : i32, i32
  }
  func.func @transform_5(%arg0: i32) -> (i32, i32) {
    %c0_i32 = arith.constant 0 : i32
    %c0_i32_0 = arith.constant 0 : i32
    %c0_i32_1 = arith.constant 0 : i32
    return %c0_i32, %c0_i32_0 : i32, i32
  }
  func.func @transform_6(%arg0: i32) -> (i32, i32) {
    %c0_i32 = arith.constant 0 : i32
    %c0_i32_0 = arith.constant 0 : i32
    %c0_i32_1 = arith.constant 0 : i32
    return %c0_i32, %c0_i32_0 : i32, i32
  }
  func.func @transform_7(%arg0: i32) -> (i32, i32) {
    %c0_i32 = arith.constant 0 : i32
    %c0_i32_0 = arith.constant 0 : i32
    %c0_i32_1 = arith.constant 0 : i32
    return %c0_i32, %c0_i32_0 : i32, i32
  }
  func.func @transform_8(%arg0: i32) -> (i32, i32) {
    %c0_i32 = arith.constant 0 : i32
    %c0_i32_0 = arith.constant 0 : i32
    %c0_i32_1 = arith.constant 0 : i32
    return %c0_i32, %c0_i32_0 : i32, i32
  }
  func.func @transform_9(%arg0: i32) -> (i32, i32) {
    %c0_i32 = arith.constant 0 : i32
    %c0_i32_0 = arith.constant 0 : i32
    %c0_i32_1 = arith.constant 0 : i32
    return %c0_i32, %c0_i32_0 : i32, i32
  }
  func.func @transform_10(%arg0: i32) -> (i32, i32) {
    %c0_i32 = arith.constant 0 : i32
    %c0_i32_0 = arith.constant 0 : i32
    %c0_i32_1 = arith.constant 0 : i32
    return %c0_i32, %c0_i32_0 : i32, i32
  }
  func.func @transform_11(%arg0: i32) -> (i32, i32) {
    %c0_i32 = arith.constant 0 : i32
    %c0_i32_0 = arith.constant 0 : i32
    %c0_i32_1 = arith.constant 0 : i32
    return %c0_i32, %c0_i32_0 : i32, i32
  }
  func.func @transform_12(%arg0: i32) -> (i32, i32) {
    %c0_i32 = arith.constant 0 : i32
    %c0_i32_0 = arith.constant 0 : i32
    %c0_i32_1 = arith.constant 0 : i32
    return %c0_i32, %c0_i32_0 : i32, i32
  }
  func.func @transform_13(%arg0: i32) -> (i32, i32) {
    %c0_i32 = arith.constant 0 : i32
    %c0_i32_0 = arith.constant 0 : i32
    %c0_i32_1 = arith.constant 0 : i32
    return %c0_i32, %c0_i32_0 : i32, i32
  }
  func.func @transform_14(%arg0: i32) -> (i32, i32) {
    %c0_i32 = arith.constant 0 : i32
    %c0_i32_0 = arith.constant 0 : i32
    %c0_i32_1 = arith.constant 0 : i32
    return %c0_i32, %c0_i32_0 : i32, i32
  }
  func.func @transform_15(%arg0: i32) -> (i32, i32) {
    %c0_i32 = arith.constant 0 : i32
    %c0_i32_0 = arith.constant 0 : i32
    %c0_i32_1 = arith.constant 0 : i32
    return %c0_i32, %c0_i32_0 : i32, i32
  }
  func.func @transform_16(%arg0: i32) -> (i32, i32) {
    %c0_i32 = arith.constant 0 : i32
    %c0_i32_0 = arith.constant 0 : i32
    %c0_i32_1 = arith.constant 0 : i32
    return %c0_i32, %c0_i32_0 : i32, i32
  }
  func.func @transform_17(%arg0: i32) -> (i32, i32, i32) {
    %c0_i32 = arith.constant 0 : i32
    %c0_i32_0 = arith.constant 0 : i32
    %c0_i32_1 = arith.constant 0 : i32
    return %arg0, %c0_i32, %c0_i32_0 : i32, i32, i32
  }
}

</mosaic_0001>

<llo_original>
// kernel: tpu_custom_call.1
$region0: #{tpu_custom_call.1}
  #allocation0 [shape = 'u32[]', space=smem, size = 0x4, offset = 0x4, fixed_abs, tag = 'smem constant byte address 0x4 - core index']
  #allocation1 [shape = 'u32[72,128]{1,0:T(1,128)}', space=vmem, size = 0x9000, scoped, tag = 'internal scratch']
  %s0 = inlined_call_operand.hbm [shape: f32[4,8,32], index: 0, kind: input, shape index: {}]
  %s1 = inlined_call_operand.hbm [shape: f32[4,8,32], index: 1, kind: input, shape index: {}]
  %s2 = inlined_call_operand.hbm [shape: f32[4,8,32], index: 2, kind: input, shape index: {}]
  %s3 = inlined_call_operand.vmem [shape: f32[1,32], index: 3, kind: input, shape index: {}]
  %s4 = inlined_call_operand.vmem [shape: f32[1,32], index: 4, kind: input, shape index: {}]
  %s5 = inlined_call_operand.vmem [shape: f32[1,32], index: 5, kind: input, shape index: {}]
  %s6 = inlined_call_operand.vmem [shape: f32[1,32], index: 6, kind: input, shape index: {}]
  %s7 = inlined_call_operand.vmem [shape: f32[1,32], index: 7, kind: input, shape index: {}]
  %s8 = inlined_call_operand.vmem [shape: f32[1,32], index: 8, kind: input, shape index: {}]
  %s9 = inlined_call_operand.hbm [shape: f32[32,32], index: 9, kind: input, shape index: {}]
  %s10 = inlined_call_operand.hbm [shape: f32[32,32], index: 10, kind: input, shape index: {}]
  %s11 = inlined_call_operand.hbm [shape: f32[32,32], index: 11, kind: input, shape index: {}]
  %s12 = inlined_call_operand.vmem [shape: f32[1,32], index: 12, kind: input, shape index: {}]
  %s13 = inlined_call_operand.vmem [shape: f32[1,32], index: 13, kind: input, shape index: {}]
  %s14 = inlined_call_operand.vmem [shape: f32[1,32], index: 14, kind: input, shape index: {}]
  %s15 = inlined_call_operand.hbm [shape: f32[32,32], index: 15, kind: input, shape index: {}]
  %s16 = inlined_call_operand.vmem [shape: f32[1,32], index: 16, kind: input, shape index: {}]
  %s17 = inlined_call_operand.hbm [shape: f32[4,8,32], index: 17, kind: output, shape index: {}]
  %s18 = sld [smem:[#allocation0]]
  $region129: #{tpu_custom_call.1} parent=0
    _
  %s20 = ssub.s32 1, %s18
  %s21 = scalar_select 0, %s20, %s18
  $region1: #{tpu_custom_call.1} parent=0
    #allocation2 [shape = 'u8[8192]{0}', space=vmem, size = 0x2000, scoped, tag = 'input window, operand 0']
    #allocation3 [shape = 's32[2]{0}', space=sflag, size = 0x8, scoped, tag = 'scoped memory for tpu_custom_call.1']
    #allocation4 [shape = 's32[2]{0}', space=sflag, size = 0x8, scoped, tag = 'scoped memory for tpu_custom_call.1']
    #allocation5 [shape = 'u8[8192]{0}', space=vmem, size = 0x2000, scoped, tag = 'input window, operand 1']
    #allocation6 [shape = 's32[2]{0}', space=sflag, size = 0x8, scoped, tag = 'scoped memory for tpu_custom_call.1']
    #allocation7 [shape = 'u8[8192]{0}', space=vmem, size = 0x2000, scoped, tag = 'input window, operand 2']
    #allocation8 [shape = 'u8[16384]{0}', space=vmem, size = 0x4000, scoped, tag = 'input window, operand 9, single buffered']
    #allocation9 [shape = 's32[1]{0}', space=sflag, size = 0x4, scoped, tag = 'scoped memory for tpu_custom_call.1']
    #allocation10 [shape = 'u8[16384]{0}', space=vmem, size = 0x4000, scoped, tag = 'input window, operand 10, single buffered']
    #allocation11 [shape = 'u8[16384]{0}', space=vmem, size = 0x4000, scoped, tag = 'input window, operand 11, single buffered']
    #allocation12 [shape = 's32[1]{0}', space=sflag, size = 0x4, scoped, tag = 'scoped memory for tpu_custom_call.1']
    #allocation13 [shape = 'u8[16384]{0}', space=vmem, size = 0x4000, scoped, tag = 'input window, operand 15, single buffered']
    #allocation14 [shape = 'u8[8192]{0}', space=vmem, size = 0x2000, scoped, tag = 'output window, operand 0']
    %22 = vsyncpa [#allocation3], 0
    %s23 = scalar_lea.sflag [#allocation3], 1
    %24 = vsyncpa %s23, 0
    %25 = vsyncpa [#allocation6], 0
    %s26 = scalar_lea.sflag [#allocation6], 1
    %27 = vsyncpa %s26, 0
    %28 = vsyncpa [#allocation9], 0
    %29 = vsyncpa [#allocation12], 0
    %30 = vsyncpa [#allocation4], 0
    %s31 = scalar_lea.sflag [#allocation4], 1
    %32 = vsyncpa %s31, 0
    loop: start=0, step=1, limit=6
    $region2: #{tpu_custom_call.1} parent=1 // loop_pre_header
      _
    $region3: #{tpu_custom_call.1} parent=1 // loop_header
      %s34 = sphi 0, %s38
      %p35 = scmp.ge.s32.totalorder %s34, 6
      %s44 = sphi 0, %s46
      %s47 = sphi 0, %s44
      %s48 = sphi 0, %s47
      %s64 = sphi 0, %s48
      %s70 = sphi 0, %s72
      %s73 = sphi 0, %s70
      %s74 = sphi 0, %s73
      %s90 = sphi 0, %s74
      %s96 = sphi 0, %s98
      %s99 = sphi 0, %s96
      %s100 = sphi 0, %s99
      %s116 = sphi 0, %s100
      %s120 = sphi 0, %s120
      %s122 = sphi 0, %s120
      %s123 = sphi 0, %s122
      %s137 = sphi 0, %s123
      %s141 = sphi 0, %s141
      %s143 = sphi 0, %s141
      %s144 = sphi 0, %s143
      %s158 = sphi 0, %s144
      %s162 = sphi 0, %s162
      %s164 = sphi 0, %s162
      %s165 = sphi 0, %s164
      %s179 = sphi 0, %s165
      %s183 = sphi 0, %s183
      %s185 = sphi 0, %s183
      %s186 = sphi 0, %s185
      %s200 = sphi 0, %s186
      %s204 = sphi 0, %s204
      %s206 = sphi 0, %s204
      %s207 = sphi 0, %s206
      %s221 = sphi 0, %s207
      %s225 = sphi 0, %s225
      %s227 = sphi 0, %s225
      %s228 = sphi 0, %s227
      %s242 = sphi 0, %s228
      %s246 = sphi 0, %s246
      %s248 = sphi 0, %s246
      %s249 = sphi 0, %s248
      %s263 = sphi 0, %s249
      %s267 = sphi 0, %s267
      %s269 = sphi 0, %s267
      %s270 = sphi 0, %s269
      %s284 = sphi 0, %s270
      %s288 = sphi 0, %s288
      %s290 = sphi 0, %s288
      %s291 = sphi 0, %s290
      %s305 = sphi 0, %s291
      %s309 = sphi 0, %s309
      %s311 = sphi 0, %s309
      %s312 = sphi 0, %s311
      %s326 = sphi 0, %s312
      %s330 = sphi 0, %s330
      %s332 = sphi 0, %s330
      %s333 = sphi 0, %s332
      %s347 = sphi 0, %s333
      %s351 = sphi 0, %s351
      %s353 = sphi 0, %s351
      %s354 = sphi 0, %s353
      %s368 = sphi 0, %s354
      %s372 = sphi 0, %s372
      %s374 = sphi 0, %s372
      %s375 = sphi 0, %s374
      %s389 = sphi 0, %s375
      %s393 = sphi 0, %s393
      %s395 = sphi 0, %s393
      %s396 = sphi 0, %s395
      %s410 = sphi 0, %s396
      %s416 = sphi 0, %s418
      %s419 = sphi 0, %s416
      %s420 = sphi 0, %s419
      %s436 = sphi 0, %s420
    $region4: #{tpu_custom_call.1} parent=1 // loop_header_branch
      %37 = sbr.rel (%p35) target = $region8
    $region5: #{tpu_custom_call.1} parent=1 // loop_body
      %s39 = ssub.s32 %s34, 1
      %s40 = ssub.s32 %s34, 2
      %s41 = sadd.s32 %s34, 1
      %s42 = ssub.s32 %s34, %s41
      %p43 = scmp.eq.s32.totalorder %s42, 0
      %s45 = sadd.s32 %s44, 1
      %s46 = scalar_select %p43, %s44, %s45
      %p49 = pneg %p43
      %p50 = scmp.eq.s32.totalorder %s34, 3
      %p51 = por %p49, %p50
      %p52 = scmp.ne.s32.totalorder %s44, %s47
      %p53 = scmp.eq.s32.totalorder %s34, 0
      %p54 = por %p52, %p53
      %p55 = scmp.ne.s32.totalorder %s44, %s47
      %p56 = scmp.eq.s32.totalorder %s39, 3
      %p57 = por %p55, %p56
      %p58 = scmp.ne.s32.totalorder %s47, %s48
      %p59 = scmp.eq.s32.totalorder %s39, 0
      %p60 = por %p58, %p59
      %p61 = scmp.ne.s32.totalorder %s47, %s48
      %p62 = scmp.eq.s32.totalorder %s40, 3
      %p63 = por %p61, %p62
      %p65 = scmp.ne.s32.totalorder %s48, %s64
      %p66 = scmp.eq.s32.totalorder %s40, 0
      %p67 = por %p65, %p66
      %s68 = ssub.s32 %s34, %s41
      %p69 = scmp.eq.s32.totalorder %s68, 0
      %s71 = sadd.s32 %s70, 1
      %s72 = scalar_select %p69, %s70, %s71
      %p75 = pneg %p69
      %p76 = scmp.eq.s32.totalorder %s34, 3
      %p77 = por %p75, %p76
      %p78 = scmp.ne.s32.totalorder %s70, %s73
      %p79 = scmp.eq.s32.totalorder %s34, 0
      %p80 = por %p78, %p79
      %p81 = scmp.ne.s32.totalorder %s70, %s73
      %p82 = scmp.eq.s32.totalorder %s39, 3
      %p83 = por %p81, %p82
      %p84 = scmp.ne.s32.totalorder %s73, %s74
      %p85 = scmp.eq.s32.totalorder %s39, 0
      %p86 = por %p84, %p85
      %p87 = scmp.ne.s32.totalorder %s73, %s74
      %p88 = scmp.eq.s32.totalorder %s40, 3
      %p89 = por %p87, %p88
      %p91 = scmp.ne.s32.totalorder %s74, %s90
      %p92 = scmp.eq.s32.totalorder %s40, 0
      %p93 = por %p91, %p92
      %s94 = ssub.s32 %s34, %s41
      %p95 = scmp.eq.s32.totalorder %s94, 0
      %s97 = sadd.s32 %s96, 1
      %s98 = scalar_select %p95, %s96, %s97
      %p101 = pneg %p95
      %p102 = scmp.eq.s32.totalorder %s34, 3
      %p103 = por %p101, %p102
      %p104 = scmp.ne.s32.totalorder %s96, %s99
      %p105 = scmp.eq.s32.totalorder %s34, 0
      %p106 = por %p104, %p105
      %p107 = scmp.ne.s32.totalorder %s96, %s99
      %p108 = scmp.eq.s32.totalorder %s39, 3
      %p109 = por %p107, %p108
      %p110 = scmp.ne.s32.totalorder %s99, %s100
      %p111 = scmp.eq.s32.totalorder %s39, 0
      %p112 = por %p110, %p111
      %p113 = scmp.ne.s32.totalorder %s99, %s100
      %p114 = scmp.eq.s32.totalorder %s40, 3
      %p115 = por %p113, %p114
      %p117 = scmp.ne.s32.totalorder %s100, %s116
      %p118 = scmp.eq.s32.totalorder %s40, 0
      %p119 = por %p117, %p118
      %s121 = sadd.s32 %s120, 1
      %p124 = scmp.eq.s32.totalorder %s34, 3
      %p125 = scmp.ne.s32.totalorder %s120, %s122
      %p126 = scmp.eq.s32.totalorder %s34, 0
      %p127 = por %p125, %p126
      %p128 = scmp.ne.s32.totalorder %s120, %s122
      %p129 = scmp.eq.s32.totalorder %s39, 3
      %p130 = por %p128, %p129
      %p131 = scmp.ne.s32.totalorder %s122, %s123
      %p132 = scmp.eq.s32.totalorder %s39, 0
      %p133 = por %p131, %p132
      %p134 = scmp.ne.s32.totalorder %s122, %s123
      %p135 = scmp.eq.s32.totalorder %s40, 3
      %p136 = por %p134, %p135
      %p138 = scmp.ne.s32.totalorder %s123, %s137
      %p139 = scmp.eq.s32.totalorder %s40, 0
      %p140 = por %p138, %p139
      %s142 = sadd.s32 %s141, 1
      %p145 = scmp.eq.s32.totalorder %s34, 3
      %p146 = scmp.ne.s32.totalorder %s141, %s143
      %p147 = scmp.eq.s32.totalorder %s34, 0
      %p148 = por %p146, %p147
      %p149 = scmp.ne.s32.totalorder %s141, %s143
      %p150 = scmp.eq.s32.totalorder %s39, 3
      %p151 = por %p149, %p150
      %p152 = scmp.ne.s32.totalorder %s143, %s144
      %p153 = scmp.eq.s32.totalorder %s39, 0
      %p154 = por %p152, %p153
      %p155 = scmp.ne.s32.totalorder %s143, %s144
      %p156 = scmp.eq.s32.totalorder %s40, 3
      %p157 = por %p155, %p156
      %p159 = scmp.ne.s32.totalorder %s144, %s158
      %p160 = scmp.eq.s32.totalorder %s40, 0
      %p161 = por %p159, %p160
      %s163 = sadd.s32 %s162, 1
      %p166 = scmp.eq.s32.totalorder %s34, 3
      %p167 = scmp.ne.s32.totalorder %s162, %s164
      %p168 = scmp.eq.s32.totalorder %s34, 0
      %p169 = por %p167, %p168
      %p170 = scmp.ne.s32.totalorder %s162, %s164
      %p171 = scmp.eq.s32.totalorder %s39, 3
      %p172 = por %p170, %p171
      %p173 = scmp.ne.s32.totalorder %s164, %s165
      %p174 = scmp.eq.s32.totalorder %s39, 0
      %p175 = por %p173, %p174
      %p176 = scmp.ne.s32.totalorder %s164, %s165
      %p177 = scmp.eq.s32.totalorder %s40, 3
      %p178 = por %p176, %p177
      %p180 = scmp.ne.s32.totalorder %s165, %s179
      %p181 = scmp.eq.s32.totalorder %s40, 0
      %p182 = por %p180, %p181
      %s184 = sadd.s32 %s183, 1
      %p187 = scmp.eq.s32.totalorder %s34, 3
      %p188 = scmp.ne.s32.totalorder %s183, %s185
      %p189 = scmp.eq.s32.totalorder %s34, 0
      %p190 = por %p188, %p189
      %p191 = scmp.ne.s32.totalorder %s183, %s185
      %p192 = scmp.eq.s32.totalorder %s39, 3
      %p193 = por %p191, %p192
      %p194 = scmp.ne.s32.totalorder %s185, %s186
      %p195 = scmp.eq.s32.totalorder %s39, 0
      %p196 = por %p194, %p195
      %p197 = scmp.ne.s32.totalorder %s185, %s186
      %p198 = scmp.eq.s32.totalorder %s40, 3
      %p199 = por %p197, %p198
      %p201 = scmp.ne.s32.totalorder %s186, %s200
      %p202 = scmp.eq.s32.totalorder %s40, 0
      %p203 = por %p201, %p202
      %s205 = sadd.s32 %s204, 1
      %p208 = scmp.eq.s32.totalorder %s34, 3
      %p209 = scmp.ne.s32.totalorder %s204, %s206
      %p210 = scmp.eq.s32.totalorder %s34, 0
      %p211 = por %p209, %p210
      %p212 = scmp.ne.s32.totalorder %s204, %s206
      %p213 = scmp.eq.s32.totalorder %s39, 3
      %p214 = por %p212, %p213
      %p215 = scmp.ne.s32.totalorder %s206, %s207
      %p216 = scmp.eq.s32.totalorder %s39, 0
      %p217 = por %p215, %p216
      %p218 = scmp.ne.s32.totalorder %s206, %s207
      %p219 = scmp.eq.s32.totalorder %s40, 3
      %p220 = por %p218, %p219
      %p222 = scmp.ne.s32.totalorder %s207, %s221
      %p223 = scmp.eq.s32.totalorder %s40, 0
      %p224 = por %p222, %p223
      %s226 = sadd.s32 %s225, 1
      %p229 = scmp.eq.s32.totalorder %s34, 3
      %p230 = scmp.ne.s32.totalorder %s225, %s227
      %p231 = scmp.eq.s32.totalorder %s34, 0
      %p232 = por %p230, %p231
      %p233 = scmp.ne.s32.totalorder %s225, %s227
      %p234 = scmp.eq.s32.totalorder %s39, 3
      %p235 = por %p233, %p234
      %p236 = scmp.ne.s32.totalorder %s227, %s228
      %p237 = scmp.eq.s32.totalorder %s39, 0
      %p238 = por %p236, %p237
      %p239 = scmp.ne.s32.totalorder %s227, %s228
      %p240 = scmp.eq.s32.totalorder %s40, 3
      %p241 = por %p239, %p240
      %p243 = scmp.ne.s32.totalorder %s228, %s242
      %p244 = scmp.eq.s32.totalorder %s40, 0
      %p245 = por %p243, %p244
      %s247 = sadd.s32 %s246, 1
      %p250 = scmp.eq.s32.totalorder %s34, 3
      %p251 = scmp.ne.s32.totalorder %s246, %s248
      %p252 = scmp.eq.s32.totalorder %s34, 0
      %p253 = por %p251, %p252
      %p254 = scmp.ne.s32.totalorder %s246, %s248
      %p255 = scmp.eq.s32.totalorder %s39, 3
      %p256 = por %p254, %p255
      %p257 = scmp.ne.s32.totalorder %s248, %s249
      %p258 = scmp.eq.s32.totalorder %s39, 0
      %p259 = por %p257, %p258
      %p260 = scmp.ne.s32.totalorder %s248, %s249
      %p261 = scmp.eq.s32.totalorder %s40, 3
      %p262 = por %p260, %p261
      %p264 = scmp.ne.s32.totalorder %s249, %s263
      %p265 = scmp.eq.s32.totalorder %s40, 0
      %p266 = por %p264, %p265
      %s268 = sadd.s32 %s267, 1
      %p271 = scmp.eq.s32.totalorder %s34, 3
      %p272 = scmp.ne.s32.totalorder %s267, %s269
      %p273 = scmp.eq.s32.totalorder %s34, 0
      %p274 = por %p272, %p273
      %p275 = scmp.ne.s32.totalorder %s267, %s269
      %p276 = scmp.eq.s32.totalorder %s39, 3
      %p277 = por %p275, %p276
      %p278 = scmp.ne.s32.totalorder %s269, %s270
      %p279 = scmp.eq.s32.totalorder %s39, 0
      %p280 = por %p278, %p279
      %p281 = scmp.ne.s32.totalorder %s269, %s270
      %p282 = scmp.eq.s32.totalorder %s40, 3
      %p283 = por %p281, %p282
      %p285 = scmp.ne.s32.totalorder %s270, %s284
      %p286 = scmp.eq.s32.totalorder %s40, 0
      %p287 = por %p285, %p286
      %s289 = sadd.s32 %s288, 1
      %p292 = scmp.eq.s32.totalorder %s34, 3
      %p293 = scmp.ne.s32.totalorder %s288, %s290
      %p294 = scmp.eq.s32.totalorder %s34, 0
      %p295 = por %p293, %p294
      %p296 = scmp.ne.s32.totalorder %s288, %s290
      %p297 = scmp.eq.s32.totalorder %s39, 3
      %p298 = por %p296, %p297
      %p299 = scmp.ne.s32.totalorder %s290, %s291
      %p300 = scmp.eq.s32.totalorder %s39, 0
      %p301 = por %p299, %p300
      %p302 = scmp.ne.s32.totalorder %s290, %s291
      %p303 = scmp.eq.s32.totalorder %s40, 3
      %p304 = por %p302, %p303
      %p306 = scmp.ne.s32.totalorder %s291, %s305
      %p307 = scmp.eq.s32.totalorder %s40, 0
      %p308 = por %p306, %p307
      %s310 = sadd.s32 %s309, 1
      %p313 = scmp.eq.s32.totalorder %s34, 3
      %p314 = scmp.ne.s32.totalorder %s309, %s311
      %p315 = scmp.eq.s32.totalorder %s34, 0
      %p316 = por %p314, %p315
      %p317 = scmp.ne.s32.totalorder %s309, %s311
      %p318 = scmp.eq.s32.totalorder %s39, 3
      %p319 = por %p317, %p318
      %p320 = scmp.ne.s32.totalorder %s311, %s312
      %p321 = scmp.eq.s32.totalorder %s39, 0
      %p322 = por %p320, %p321
      %p323 = scmp.ne.s32.totalorder %s311, %s312
      %p324 = scmp.eq.s32.totalorder %s40, 3
      %p325 = por %p323, %p324
      %p327 = scmp.ne.s32.totalorder %s312, %s326
      %p328 = scmp.eq.s32.totalorder %s40, 0
      %p329 = por %p327, %p328
      %s331 = sadd.s32 %s330, 1
      %p334 = scmp.eq.s32.totalorder %s34, 3
      %p335 = scmp.ne.s32.totalorder %s330, %s332
      %p336 = scmp.eq.s32.totalorder %s34, 0
      %p337 = por %p335, %p336
      %p338 = scmp.ne.s32.totalorder %s330, %s332
      %p339 = scmp.eq.s32.totalorder %s39, 3
      %p340 = por %p338, %p339
      %p341 = scmp.ne.s32.totalorder %s332, %s333
      %p342 = scmp.eq.s32.totalorder %s39, 0
      %p343 = por %p341, %p342
      %p344 = scmp.ne.s32.totalorder %s332, %s333
      %p345 = scmp.eq.s32.totalorder %s40, 3
      %p346 = por %p344, %p345
      %p348 = scmp.ne.s32.totalorder %s333, %s347
      %p349 = scmp.eq.s32.totalorder %s40, 0
      %p350 = por %p348, %p349
      %s352 = sadd.s32 %s351, 1
      %p355 = scmp.eq.s32.totalorder %s34, 3
      %p356 = scmp.ne.s32.totalorder %s351, %s353
      %p357 = scmp.eq.s32.totalorder %s34, 0
      %p358 = por %p356, %p357
      %p359 = scmp.ne.s32.totalorder %s351, %s353
      %p360 = scmp.eq.s32.totalorder %s39, 3
      %p361 = por %p359, %p360
      %p362 = scmp.ne.s32.totalorder %s353, %s354
      %p363 = scmp.eq.s32.totalorder %s39, 0
      %p364 = por %p362, %p363
      %p365 = scmp.ne.s32.totalorder %s353, %s354
      %p366 = scmp.eq.s32.totalorder %s40, 3
      %p367 = por %p365, %p366
      %p369 = scmp.ne.s32.totalorder %s354, %s368
      %p370 = scmp.eq.s32.totalorder %s40, 0
      %p371 = por %p369, %p370
      %s373 = sadd.s32 %s372, 1
      %p376 = scmp.eq.s32.totalorder %s34, 3
      %p377 = scmp.ne.s32.totalorder %s372, %s374
      %p378 = scmp.eq.s32.totalorder %s34, 0
      %p379 = por %p377, %p378
      %p380 = scmp.ne.s32.totalorder %s372, %s374
      %p381 = scmp.eq.s32.totalorder %s39, 3
      %p382 = por %p380, %p381
      %p383 = scmp.ne.s32.totalorder %s374, %s375
      %p384 = scmp.eq.s32.totalorder %s39, 0
      %p385 = por %p383, %p384
      %p386 = scmp.ne.s32.totalorder %s374, %s375
      %p387 = scmp.eq.s32.totalorder %s40, 3
      %p388 = por %p386, %p387
      %p390 = scmp.ne.s32.totalorder %s375, %s389
      %p391 = scmp.eq.s32.totalorder %s40, 0
      %p392 = por %p390, %p391
      %s394 = sadd.s32 %s393, 1
      %p397 = scmp.eq.s32.totalorder %s34, 3
      %p398 = scmp.ne.s32.totalorder %s393, %s395
      %p399 = scmp.eq.s32.totalorder %s34, 0
      %p400 = por %p398, %p399
      %p401 = scmp.ne.s32.totalorder %s393, %s395
      %p402 = scmp.eq.s32.totalorder %s39, 3
      %p403 = por %p401, %p402
      %p404 = scmp.ne.s32.totalorder %s395, %s396
      %p405 = scmp.eq.s32.totalorder %s39, 0
      %p406 = por %p404, %p405
      %p407 = scmp.ne.s32.totalorder %s395, %s396
      %p408 = scmp.eq.s32.totalorder %s40, 3
      %p409 = por %p407, %p408
      %p411 = scmp.ne.s32.totalorder %s396, %s410
      %p412 = scmp.eq.s32.totalorder %s40, 0
      %p413 = por %p411, %p412
      %s414 = ssub.s32 %s34, %s41
      %p415 = scmp.eq.s32.totalorder %s414, 0
      %s417 = sadd.s32 %s416, 1
      %s418 = scalar_select %p415, %s416, %s417
      %p421 = pneg %p415
      %p422 = scmp.eq.s32.totalorder %s34, 3
      %p423 = por %p421, %p422
      %p424 = scmp.ne.s32.totalorder %s416, %s419
      %p425 = scmp.eq.s32.totalorder %s34, 0
      %p426 = por %p424, %p425
      %p427 = scmp.ne.s32.totalorder %s416, %s419
      %p428 = scmp.eq.s32.totalorder %s39, 3
      %p429 = por %p427, %p428
      %p430 = scmp.ne.s32.totalorder %s419, %s420
      %p431 = scmp.eq.s32.totalorder %s39, 0
      %p432 = por %p430, %p431
      %p433 = scmp.ne.s32.totalorder %s419, %s420
      %p434 = scmp.eq.s32.totalorder %s40, 3
      %p435 = por %p433, %p434
      %p437 = scmp.ne.s32.totalorder %s420, %s436
      %p438 = scmp.eq.s32.totalorder %s40, 0
      %p439 = por %p437, %p438
      %p440 = scmp.le.s32.totalorder 1, %s34
      %p441 = scmp.lt.s32.totalorder %s34, 5
      %p442 = pnand %p440, %p441
      %p443 = pneg %p442
      // Predicated region
      $region9: #{tpu_custom_call.1} parent=5 // pred_check
        _
      $region10: #{tpu_custom_call.1} parent=5 // pred_check_branch
        %445 = sbr.rel (%p442) target = $region12
      $region11: #{tpu_custom_call.1} parent=5 // pred_region
        %s446 = ssub.s32 %s34, 1
        // Predicated region
        $region13: #{tpu_custom_call.1} parent=11 // pred_check
          %p447 = pneg %p133
        $region14: #{tpu_custom_call.1} parent=11 // pred_check_branch
          %449 = sbr.rel (%p447) target = $region16
        $region15: #{tpu_custom_call.1} parent=11 // pred_region
          _
        $region16: #{tpu_custom_call.1} parent=11 // pred_fallthru
          _
        // Predicated region
        $region17: #{tpu_custom_call.1} parent=11 // pred_check
          %p450 = pneg %p154
        $region18: #{tpu_custom_call.1} parent=11 // pred_check_branch
          %452 = sbr.rel (%p450) target = $region20
        $region19: #{tpu_custom_call.1} parent=11 // pred_region
          _
        $region20: #{tpu_custom_call.1} parent=11 // pred_fallthru
          _
        // Predicated region
        $region21: #{tpu_custom_call.1} parent=11 // pred_check
          %p453 = pneg %p175
        $region22: #{tpu_custom_call.1} parent=11 // pred_check_branch
          %455 = sbr.rel (%p453) target = $region24
        $region23: #{tpu_custom_call.1} parent=11 // pred_region
          _
        $region24: #{tpu_custom_call.1} parent=11 // pred_fallthru
          _
        // Predicated region
        $region25: #{tpu_custom_call.1} parent=11 // pred_check
          %p456 = pneg %p196
        $region26: #{tpu_custom_call.1} parent=11 // pred_check_branch
          %458 = sbr.rel (%p456) target = $region28
        $region27: #{tpu_custom_call.1} parent=11 // pred_region
          _
        $region28: #{tpu_custom_call.1} parent=11 // pred_fallthru
          _
        // Predicated region
        $region29: #{tpu_custom_call.1} parent=11 // pred_check
          %p459 = pneg %p217
        $region30: #{tpu_custom_call.1} parent=11 // pred_check_branch
          %461 = sbr.rel (%p459) target = $region32
        $region31: #{tpu_custom_call.1} parent=11 // pred_region
          _
        $region32: #{tpu_custom_call.1} parent=11 // pred_fallthru
          _
        // Predicated region
        $region33: #{tpu_custom_call.1} parent=11 // pred_check
          %p462 = pneg %p238
        $region34: #{tpu_custom_call.1} parent=11 // pred_check_branch
          %464 = sbr.rel (%p462) target = $region36
        $region35: #{tpu_custom_call.1} parent=11 // pred_region
          _
        $region36: #{tpu_custom_call.1} parent=11 // pred_fallthru
          _
        // Predicated region
        $region37: #{tpu_custom_call.1} parent=11 // pred_check
          %p465 = pneg %p259
        $region38: #{tpu_custom_call.1} parent=11 // pred_check_branch
          %467 = sbr.rel (%p465) target = $region40
        $region39: #{tpu_custom_call.1} parent=11 // pred_region
          %469 = vsyncadd [#allocation9], 0
          %s470 = sshll.u32 %s9, 4
          %s471 = int_to_ptr.hbm [resolvable:$true] %s470
          %s472 = sshll.u32 [#allocation8], 4
          %s473 = int_to_ptr.vmem [resolvable:$true] %s472
          %478 = dma.hbm_to_vmem [thread:$0]  %s471, 512, %s473, [#allocation9], 128, 128, 8
        $region40: #{tpu_custom_call.1} parent=11 // pred_fallthru
          _
        // Predicated region
        $region41: #{tpu_custom_call.1} parent=11 // pred_check
          %p479 = pneg %p280
        $region42: #{tpu_custom_call.1} parent=11 // pred_check_branch
          %481 = sbr.rel (%p479) target = $region44
        $region43: #{tpu_custom_call.1} parent=11 // pred_region
          %483 = vsyncadd [#allocation9], 0
          %s484 = sshll.u32 %s10, 4
          %s485 = int_to_ptr.hbm [resolvable:$true] %s484
          %s486 = sshll.u32 [#allocation10], 4
          %s487 = int_to_ptr.vmem [resolvable:$true] %s486
          %492 = dma.hbm_to_vmem [thread:$0]  %s485, 512, %s487, [#allocation9], 128, 128, 8
        $region44: #{tpu_custom_call.1} parent=11 // pred_fallthru
          _
        // Predicated region
        $region45: #{tpu_custom_call.1} parent=11 // pred_check
          %p493 = pneg %p301
        $region46: #{tpu_custom_call.1} parent=11 // pred_check_branch
          %495 = sbr.rel (%p493) target = $region48
        $region47: #{tpu_custom_call.1} parent=11 // pred_region
          %497 = vsyncadd [#allocation12], 0
          %s498 = sshll.u32 %s11, 4
          %s499 = int_to_ptr.hbm [resolvable:$true] %s498
          %s500 = sshll.u32 [#allocation11], 4
          %s501 = int_to_ptr.vmem [resolvable:$true] %s500
          %506 = dma.hbm_to_vmem [thread:$0]  %s499, 512, %s501, [#allocation12], 128, 128, 8
        $region48: #{tpu_custom_call.1} parent=11 // pred_fallthru
          _
        // Predicated region
        $region49: #{tpu_custom_call.1} parent=11 // pred_check
          %p507 = pneg %p322
        $region50: #{tpu_custom_call.1} parent=11 // pred_check_branch
          %509 = sbr.rel (%p507) target = $region52
        $region51: #{tpu_custom_call.1} parent=11 // pred_region
          _
        $region52: #{tpu_custom_call.1} parent=11 // pred_fallthru
          _
        // Predicated region
        $region53: #{tpu_custom_call.1} parent=11 // pred_check
          %p510 = pneg %p343
        $region54: #{tpu_custom_call.1} parent=11 // pred_check_branch
          %512 = sbr.rel (%p510) target = $region56
        $region55: #{tpu_custom_call.1} parent=11 // pred_region
          _
        $region56: #{tpu_custom_call.1} parent=11 // pred_fallthru
          _
        // Predicated region
        $region57: #{tpu_custom_call.1} parent=11 // pred_check
          %p513 = pneg %p364
        $region58: #{tpu_custom_call.1} parent=11 // pred_check_branch
          %515 = sbr.rel (%p513) target = $region60
        $region59: #{tpu_custom_call.1} parent=11 // pred_region
          _
        $region60: #{tpu_custom_call.1} parent=11 // pred_fallthru
          _
        // Predicated region
        $region61: #{tpu_custom_call.1} parent=11 // pred_check
          %p516 = pneg %p385
        $region62: #{tpu_custom_call.1} parent=11 // pred_check_branch
          %518 = sbr.rel (%p516) target = $region64
        $region63: #{tpu_custom_call.1} parent=11 // pred_region
          %520 = vsyncadd [#allocation12], 0
          %s521 = sshll.u32 %s15, 4
          %s522 = int_to_ptr.hbm [resolvable:$true] %s521
          %s523 = sshll.u32 [#allocation13], 4
          %s524 = int_to_ptr.vmem [resolvable:$true] %s523
          %529 = dma.hbm_to_vmem [thread:$0]  %s522, 512, %s524, [#allocation12], 128, 128, 8
        $region64: #{tpu_custom_call.1} parent=11 // pred_fallthru
          _
        // Predicated region
        $region65: #{tpu_custom_call.1} parent=11 // pred_check
          %p530 = pneg %p406
        $region66: #{tpu_custom_call.1} parent=11 // pred_check_branch
          %532 = sbr.rel (%p530) target = $region68
        $region67: #{tpu_custom_call.1} parent=11 // pred_region
          _
        $region68: #{tpu_custom_call.1} parent=11 // pred_fallthru
          _
      $region12: #{tpu_custom_call.1} parent=5 // pred_fallthru
        _
      %p533 = scmp.lt.s32.totalorder %s34, 4
      // Predicated region
      $region69: #{tpu_custom_call.1} parent=5 // pred_check
        %p534 = pneg %p533
      $region70: #{tpu_custom_call.1} parent=5 // pred_check_branch
        %536 = sbr.rel (%p534) target = $region72
      $region71: #{tpu_custom_call.1} parent=5 // pred_region
        // Predicated region
        $region73: #{tpu_custom_call.1} parent=71 // pred_check
          %p537 = pneg %p54
        $region74: #{tpu_custom_call.1} parent=71 // pred_check_branch
          %539 = sbr.rel (%p537) target = $region76
        $region75: #{tpu_custom_call.1} parent=71 // pred_region
          %s540 = sand.u32 %s44, 1
          %s541 = scalar_lea.sflag [#allocation3], %s540
          %s542 = sand.u32 %s44, 1
          %s543 = smul.addr %s542, 8
          %s544 = scalar_lea.vmem [#allocation2], %s543
          %546 = vsyncadd %s541, 0
          %s547 = smul.addr %s34, 8
          %s548 = scalar_lea.hbm %s0, %s547
          %s550 = sshll.u32 %s548, 4
          %s551 = int_to_ptr.hbm [resolvable:$true] %s550
          %s552 = sshll.u32 %s544, 4
          %s553 = int_to_ptr.vmem [resolvable:$true] %s552
          %555 = dma.hbm_to_vmem [thread:$0]  %s551, 128, %s553, %s541
        $region76: #{tpu_custom_call.1} parent=71 // pred_fallthru
          _
        // Predicated region
        $region77: #{tpu_custom_call.1} parent=71 // pred_check
          %p556 = pneg %p80
        $region78: #{tpu_custom_call.1} parent=71 // pred_check_branch
          %558 = sbr.rel (%p556) target = $region80
        $region79: #{tpu_custom_call.1} parent=71 // pred_region
          %s559 = sand.u32 %s34, 1
          %s560 = scalar_lea.sflag [#allocation6], %s559
          %s561 = sand.u32 %s70, 1
          %s562 = smul.addr %s561, 8
          %s563 = scalar_lea.vmem [#allocation5], %s562
          %565 = vsyncadd %s560, 0
          %s566 = smul.addr %s34, 8
          %s567 = scalar_lea.hbm %s1, %s566
          %s569 = sshll.u32 %s567, 4
          %s570 = int_to_ptr.hbm [resolvable:$true] %s569
          %s571 = sshll.u32 %s563, 4
          %s572 = int_to_ptr.vmem [resolvable:$true] %s571
          %574 = dma.hbm_to_vmem [thread:$0]  %s570, 128, %s572, %s560
        $region80: #{tpu_custom_call.1} parent=71 // pred_fallthru
          _
        // Predicated region
        $region81: #{tpu_custom_call.1} parent=71 // pred_check
          %p575 = pneg %p106
        $region82: #{tpu_custom_call.1} parent=71 // pred_check_branch
          %577 = sbr.rel (%p575) target = $region84
        $region83: #{tpu_custom_call.1} parent=71 // pred_region
          %s578 = sand.u32 %s34, 1
          %s579 = scalar_lea.sflag [#allocation6], %s578
          %s580 = sand.u32 %s96, 1
          %s581 = smul.addr %s580, 8
          %s582 = scalar_lea.vmem [#allocation7], %s581
          %584 = vsyncadd %s579, 0
          %s585 = smul.addr %s34, 8
          %s586 = scalar_lea.hbm %s2, %s585
          %s588 = sshll.u32 %s586, 4
          %s589 = int_to_ptr.hbm [resolvable:$true] %s588
          %s590 = sshll.u32 %s582, 4
          %s591 = int_to_ptr.vmem [resolvable:$true] %s590
          %593 = dma.hbm_to_vmem [thread:$0]  %s589, 128, %s591, %s579
        $region84: #{tpu_custom_call.1} parent=71 // pred_fallthru
          _
      $region72: #{tpu_custom_call.1} parent=5 // pred_fallthru
        _
      %p594 = scmp.le.s32.totalorder 1, %s34
      %p595 = scmp.lt.s32.totalorder %s34, 5
      %p596 = pnand %p594, %p595
      %p597 = pneg %p596
      // Predicated region
      $region85: #{tpu_custom_call.1} parent=5 // pred_check
        _
      $region86: #{tpu_custom_call.1} parent=5 // pred_check_branch
        %599 = sbr.rel (%p596) target = $region88
      $region87: #{tpu_custom_call.1} parent=5 // pred_region
        %s600 = ssub.s32 %s34, 1
        %s601 = sand.u32 %s47, 1
        %s602 = scalar_lea.sflag [#allocation3], %s601
        %s603 = sand.u32 %s47, 1
        %s604 = smul.addr %s603, 8
        %s605 = scalar_lea.vmem [#allocation2], %s604
        // Predicated region
        $region89: #{tpu_custom_call.1} parent=87 // pred_check
          %p606 = pneg %p60
        $region90: #{tpu_custom_call.1} parent=87 // pred_check_branch
          %608 = sbr.rel (%p606) target = $region92
        $region91: #{tpu_custom_call.1} parent=87 // pred_region
          %610 = dma.done %s602, 128
        $region92: #{tpu_custom_call.1} parent=87 // pred_fallthru
          _
        %s611 = sand.u32 %s39, 1
        %s612 = scalar_lea.sflag [#allocation6], %s611
        %s613 = sand.u32 %s73, 1
        %s614 = smul.addr %s613, 8
        %s615 = scalar_lea.vmem [#allocation5], %s614
        // Predicated region
        $region93: #{tpu_custom_call.1} parent=87 // pred_check
          %p616 = pneg %p86
        $region94: #{tpu_custom_call.1} parent=87 // pred_check_branch
          %618 = sbr.rel (%p616) target = $region96
        $region95: #{tpu_custom_call.1} parent=87 // pred_region
          %620 = dma.done %s612, 128
        $region96: #{tpu_custom_call.1} parent=87 // pred_fallthru
          _
        %s621 = sand.u32 %s39, 1
        %s622 = scalar_lea.sflag [#allocation6], %s621
        %s623 = sand.u32 %s99, 1
        %s624 = smul.addr %s623, 8
        %s625 = scalar_lea.vmem [#allocation7], %s624
        // Predicated region
        $region97: #{tpu_custom_call.1} parent=87 // pred_check
          %p626 = pneg %p112
        $region98: #{tpu_custom_call.1} parent=87 // pred_check_branch
          %628 = sbr.rel (%p626) target = $region100
        $region99: #{tpu_custom_call.1} parent=87 // pred_region
          %630 = dma.done %s622, 128
        $region100: #{tpu_custom_call.1} parent=87 // pred_fallthru
          _
        // Predicated region
        $region101: #{tpu_custom_call.1} parent=87 // pred_check
          %p631 = pneg %p259
        $region102: #{tpu_custom_call.1} parent=87 // pred_check_branch
          %633 = sbr.rel (%p631) target = $region104
        $region103: #{tpu_custom_call.1} parent=87 // pred_region
          %635 = dma.done [#allocation9], 512
        $region104: #{tpu_custom_call.1} parent=87 // pred_fallthru
          _
        // Predicated region
        $region105: #{tpu_custom_call.1} parent=87 // pred_check
          %p636 = pneg %p280
        $region106: #{tpu_custom_call.1} parent=87 // pred_check_branch
          %638 = sbr.rel (%p636) target = $region108
        $region107: #{tpu_custom_call.1} parent=87 // pred_region
          %640 = dma.done [#allocation9], 512
        $region108: #{tpu_custom_call.1} parent=87 // pred_fallthru
          _
        // Predicated region
        $region109: #{tpu_custom_call.1} parent=87 // pred_check
          %p641 = pneg %p301
        $region110: #{tpu_custom_call.1} parent=87 // pred_check_branch
          %643 = sbr.rel (%p641) target = $region112
        $region111: #{tpu_custom_call.1} parent=87 // pred_region
          %645 = dma.done [#allocation12], 512
        $region112: #{tpu_custom_call.1} parent=87 // pred_fallthru
          _
        // Predicated region
        $region113: #{tpu_custom_call.1} parent=87 // pred_check
          %p646 = pneg %p385
        $region114: #{tpu_custom_call.1} parent=87 // pred_check_branch
          %648 = sbr.rel (%p646) target = $region116
        $region115: #{tpu_custom_call.1} parent=87 // pred_region
          %650 = dma.done [#allocation12], 512
        $region116: #{tpu_custom_call.1} parent=87 // pred_fallthru
          _
        %s651 = sand.u32 %s47, 1
        %s652 = scalar_lea.sflag [#allocation3], %s651
        %s653 = sand.u32 %s47, 1
        %s654 = smul.addr %s653, 8
        %s655 = scalar_lea.vmem [#allocation2], %s654
        %p656 = pneg %p60
        %p657 = pneg %p57
        %s658 = sand.u32 %s39, 1
        %s659 = scalar_lea.sflag [#allocation6], %s658
        %s660 = sand.u32 %s73, 1
        %s661 = smul.addr %s660, 8
        %s662 = scalar_lea.vmem [#allocation5], %s661
        %p663 = pneg %p86
        %p664 = pneg %p83
        %s665 = sand.u32 %s39, 1
        %s666 = scalar_lea.sflag [#allocation6], %s665
        %s667 = sand.u32 %s99, 1
        %s668 = smul.addr %s667, 8
        %s669 = scalar_lea.vmem [#allocation7], %s668
        %p670 = pneg %p112
        %p671 = pneg %p109
        %p672 = pneg %p133
        %p673 = pneg %p130
        %p674 = pneg %p154
        %p675 = pneg %p151
        %p676 = pneg %p175
        %p677 = pneg %p172
        %p678 = pneg %p196
        %p679 = pneg %p193
        %p680 = pneg %p217
        %p681 = pneg %p214
        %p682 = pneg %p238
        %p683 = pneg %p235
        %p684 = pneg %p259
        %p685 = pneg %p256
        %p686 = pneg %p280
        %p687 = pneg %p277
        %p688 = pneg %p301
        %p689 = pneg %p298
        %p690 = pneg %p322
        %p691 = pneg %p319
        %p692 = pneg %p343
        %p693 = pneg %p340
        %p694 = pneg %p364
        %p695 = pneg %p361
        %p696 = pneg %p385
        %p697 = pneg %p382
        %p698 = pneg %p406
        %p699 = pneg %p403
        %p700 = pneg %p432
        %p701 = pneg %p429
        %s702 = sand.u32 %s419, 1
        %s703 = scalar_lea.sflag [#allocation4], %s702
        %s704 = sand.u32 %s419, 1
        %s705 = smul.addr %s704, 8
        %s706 = scalar_lea.vmem [#allocation14], %s705
        %v707 = vld [vmem:[%s605] sm:$0xff]
        %v708 = vld [vmem:[%s3] sm:$0x1]
        %v709 = vld [vmem:[%s4] sm:$0x1]
        %vm710 = vcmask 261120
        %v711 = vsel %vm710, %v707, 0.0
        %712 = vadd.xlane.f32.xlu0 %v711
        %v713 = vpop.xlane.xlu0 %712
        %v714 = vrcp.pop 32.0
        %v715 = vmul.f32 32.0, %v714
        %v716 = vsub.f32 1.0, %v715
        %v717 = vmul.f32 %v714, %v716
        %v718 = vadd.f32 %v714, %v717
        %vm719 = vweird.f32 %v714
        %v720 = vsel %vm719, %v714, %v718
        %v721 = vmul.f32 %v713, %v720
        %v722 = vsub.f32 %v707, %v721
        %v723 = vmul.f32 %v722, %v722
        %v724 = vsel %vm710, %v723, 0.0
        %725 = vadd.xlane.f32.xlu0 %v724
        %v726 = vpop.xlane.xlu0 %725
        %v727 = vmul.f32 %v726, %v720
        %v728 = vadd.f32 %v727, 1e-05
        %v729 = vrsqrt.pop %v728
        %v730 = vmul.f32 %v729, %v728
        %v731 = vmul.f32 %v730, %v729
        %v732 = vmul.f32 0.5, %v731
        %v733 = vsub.f32 1.5, %v732
        %v734 = vmul.f32 %v729, %v733
        %vm735 = vweird.f32 %v728
        %vm736 = vweird.f32 %v729
        %vm737 = vmor %vm735, %vm736
        %v738 = vsel %vm737, %v729, %v734
        %v739 = vmul.f32 %v722, %v738
        %v741 = vperm.slane %v708, 0
        %v743 = vmul.f32 %v739, %v741
        %v745 = vperm.slane %v709, 0
        %v747 = vadd.f32 %v743, %v745
        %v748 = vld [vmem:[%s615] sm:$0xff]
        %v749 = vld [vmem:[%s5] sm:$0x1]
        %v750 = vld [vmem:[%s6] sm:$0x1]
        %v751 = vsel %vm710, %v748, 0.0
        %752 = vadd.xlane.f32.xlu0 %v751
        %v753 = vpop.xlane.xlu0 %752
        %v754 = vmul.f32 %v753, %v720
        %v755 = vsub.f32 %v748, %v754
        %v756 = vmul.f32 %v755, %v755
        %v757 = vsel %vm710, %v756, 0.0
        %758 = vadd.xlane.f32.xlu0 %v757
        %v759 = vpop.xlane.xlu0 %758
        %v760 = vmul.f32 %v759, %v720
        %v761 = vadd.f32 %v760, 1e-05
        %v762 = vrsqrt.pop %v761
        %v763 = vmul.f32 %v762, %v761
        %v764 = vmul.f32 %v763, %v762
        %v765 = vmul.f32 0.5, %v764
        %v766 = vsub.f32 1.5, %v765
        %v767 = vmul.f32 %v762, %v766
        %vm768 = vweird.f32 %v761
        %vm769 = vweird.f32 %v762
        %vm770 = vmor %vm768, %vm769
        %v771 = vsel %vm770, %v762, %v767
        %v772 = vmul.f32 %v755, %v771
        %v774 = vperm.slane %v749, 0
        %v776 = vmul.f32 %v772, %v774
        %v778 = vperm.slane %v750, 0
        %v780 = vadd.f32 %v776, %v778
        %v781 = vld [vmem:[%s625] sm:$0xff]
        %v782 = vld [vmem:[%s7] sm:$0x1]
        %v783 = vld [vmem:[%s8] sm:$0x1]
        %v784 = vsel %vm710, %v781, 0.0
        %785 = vadd.xlane.f32.xlu0 %v784
        %v786 = vpop.xlane.xlu0 %785
        %v787 = vmul.f32 %v786, %v720
        %v788 = vsub.f32 %v781, %v787
        %v789 = vmul.f32 %v788, %v788
        %v790 = vsel %vm710, %v789, 0.0
        %791 = vadd.xlane.f32.xlu0 %v790
        %v792 = vpop.xlane.xlu0 %791
        %v793 = vmul.f32 %v792, %v720
        %v794 = vadd.f32 %v793, 1e-05
        %v795 = vrsqrt.pop %v794
        %v796 = vmul.f32 %v795, %v794
        %v797 = vmul.f32 %v796, %v795
        %v798 = vmul.f32 0.5, %v797
        %v799 = vsub.f32 1.5, %v798
        %v800 = vmul.f32 %v795, %v799
        %vm801 = vweird.f32 %v794
        %vm802 = vweird.f32 %v795
        %vm803 = vmor %vm801, %vm802
        %v804 = vsel %vm803, %v795, %v800
        %v805 = vmul.f32 %v788, %v804
        %v807 = vperm.slane %v782, 0
        %v809 = vmul.f32 %v805, %v807
        %v811 = vperm.slane %v783, 0
        %v813 = vadd.f32 %v809, %v811
        %v814 = vld [vmem:[#allocation8] sm:$0xff]
        %v815 = vld [vmem:[#allocation8 + $0x8] sm:$0xff]
        %v816 = vld [vmem:[#allocation8 + $0x10] sm:$0xff]
        %v817 = vld [vmem:[#allocation8 + $0x18] sm:$0xff]
        %v818 = vld [vmem:[%s12] sm:$0x1]
        %v820 = vperm.slane %v818, 0
        %v823 = vsel %vm710, %v747, 0
        %825 = vmatpush.msra.mxu0 0.0
        %826 = vmatpush.msra.mxu0 0.0
        %827 = vmatpush.msra.mxu0 0.0
        %828 = vmatpush.msra.mxu0 0.0
        %829 = vmatpush.msra.mxu0 0.0
        %830 = vmatpush.msra.mxu0 0.0
        %831 = vmatpush.msra.mxu0 0.0
        %832 = vmatpush.msra.mxu0 0.0
        %833 = vmatpush.msra.mxu0 0.0
        %834 = vmatpush.msra.mxu0 0.0
        %835 = vmatpush.msra.mxu0 0.0
        %836 = vmatpush.msra.mxu0 0.0
        %837 = vmatpush.msra.mxu0 %v817
        %838 = vmatpush.msra.mxu0 %v816
        %839 = vmatpush.msra.mxu0 %v815
        %840 = vmatpush.msra.mxu0 %v814
        %841 = vmatmul.f32.gmra.mxu0 %v823
        %v842 = vpop.f32.mrf.mxu0
        %v843 = vadd.f32 %v820, %v842
        %844 = vdwg.mxu0
        %v845 = vld [vmem:[#allocation10] sm:$0xff]
        %v846 = vld [vmem:[#allocation10 + $0x8] sm:$0xff]
        %v847 = vld [vmem:[#allocation10 + $0x10] sm:$0xff]
        %v848 = vld [vmem:[#allocation10 + $0x18] sm:$0xff]
        %v849 = vld [vmem:[%s13] sm:$0x1]
        %v851 = vperm.slane %v849, 0
        %v854 = vsel %vm710, %v780, 0
        %856 = vmatpush.msra.mxu0 0.0
        %857 = vmatpush.msra.mxu0 0.0
        %858 = vmatpush.msra.mxu0 0.0
        %859 = vmatpush.msra.mxu0 0.0
        %860 = vmatpush.msra.mxu0 0.0
        %861 = vmatpush.msra.mxu0 0.0
        %862 = vmatpush.msra.mxu0 0.0
        %863 = vmatpush.msra.mxu0 0.0
        %864 = vmatpush.msra.mxu0 0.0
        %865 = vmatpush.msra.mxu0 0.0
        %866 = vmatpush.msra.mxu0 0.0
        %867 = vmatpush.msra.mxu0 0.0
        %868 = vmatpush.msra.mxu0 %v848
        %869 = vmatpush.msra.mxu0 %v847
        %870 = vmatpush.msra.mxu0 %v846
        %871 = vmatpush.msra.mxu0 %v845
        %872 = vmatmul.f32.gmra.mxu0 %v854
        %v873 = vpop.f32.mrf.mxu0
        %v874 = vadd.f32 %v851, %v873
        %875 = vdwg.mxu0
        %v876 = vld [vmem:[#allocation11] sm:$0xff]
        %v877 = vld [vmem:[#allocation11 + $0x8] sm:$0xff]
        %v878 = vld [vmem:[#allocation11 + $0x10] sm:$0xff]
        %v879 = vld [vmem:[#allocation11 + $0x18] sm:$0xff]
        %v880 = vld [vmem:[%s14] sm:$0x1]
        %v882 = vperm.slane %v880, 0
        %v885 = vsel %vm710, %v813, 0
        %887 = vmatpush.msra.mxu0 0.0
        %888 = vmatpush.msra.mxu0 0.0
        %889 = vmatpush.msra.mxu0 0.0
        %890 = vmatpush.msra.mxu0 0.0
        %891 = vmatpush.msra.mxu0 0.0
        %892 = vmatpush.msra.mxu0 0.0
        %893 = vmatpush.msra.mxu0 0.0
        %894 = vmatpush.msra.mxu0 0.0
        %895 = vmatpush.msra.mxu0 0.0
        %896 = vmatpush.msra.mxu0 0.0
        %897 = vmatpush.msra.mxu0 0.0
        %898 = vmatpush.msra.mxu0 0.0
        %899 = vmatpush.msra.mxu0 %v879
        %900 = vmatpush.msra.mxu0 %v878
        %901 = vmatpush.msra.mxu0 %v877
        %902 = vmatpush.msra.mxu0 %v876
        %903 = vmatmul.f32.gmra.mxu0 %v885
        %v904 = vpop.f32.mrf.mxu0
        %v905 = vadd.f32 %v882, %v904
        %906 = vdwg.mxu0
        %vm907 = vcmask 64512
        %v909 = vsel %vm907, %v843, 0
        %v912 = vsel %vm907, %v874, 0
        %914 = vmatpush.xpose.msra.mxu0 0.0
        %915 = vmatpush.xpose.msra.mxu0 0.0
        %916 = vmatpush.xpose.msra.mxu0 0.0
        %917 = vmatpush.xpose.msra.mxu0 0.0
        %918 = vmatpush.xpose.msra.mxu0 0.0
        %919 = vmatpush.xpose.msra.mxu0 0.0
        %920 = vmatpush.xpose.msra.mxu0 0.0
        %921 = vmatpush.xpose.msra.mxu0 0.0
        %922 = vmatpush.xpose.msra.mxu0 0.0
        %923 = vmatpush.xpose.msra.mxu0 0.0
        %924 = vmatpush.xpose.msra.mxu0 0.0
        %925 = vmatpush.xpose.msra.mxu0 0.0
        %926 = vmatpush.xpose.msra.mxu0 0.0
        %927 = vmatpush.xpose.msra.mxu0 0.0
        %928 = vmatpush.xpose.msra.mxu0 0.0
        %929 = vmatpush.xpose.msra.mxu0 %v912
        %930 = vmatmul.f32.gmra.mxu0 %v909
        %v931 = vpop.f32.mrf.mxu0
        %v932 = vadd.f32 0.0, %v931
        %933 = vdwg.mxu0
        %v934 = vsel %vm907, %v932, -inf
        %935 = vmax.xlane.f32.xlu0 %v934
        %v936 = vpop.xlane.xlu0 %935
        %v937 = vsub.f32 %v932, %v936
        %v938 = vmul.f32 %v937, 1.442695
        %v939 = vpow.pop %v938
        %v940 = vsel %vm907, %v939, 0.0
        %941 = vadd.xlane.f32.xlu0 %v940
        %v942 = vpop.xlane.xlu0 %941
        %v943 = vrcp.pop %v942
        %v944 = vmul.f32 %v942, %v943
        %v945 = vsub.f32 1.0, %v944
        %v946 = vmul.f32 %v943, %v945
        %v947 = vadd.f32 %v943, %v946
        %vm948 = vweird.f32 %v942
        %vm949 = vweird.f32 %v943
        %vm950 = vmor %vm948, %vm949
        %v951 = vsel %vm950, %v943, %v947
        %v952 = vand.u32 2147483647, %v942
        %vm953 = vcmp.eq.f32.partialorder %v952, 8.507059e+37
        %v954 = vand.u32 %v942, 2147483648
        %v955 = vor.u32 1.1754944e-38, %v954
        %v956 = vsel %vm953, %v955, %v951
        %v957 = vmul.f32 %v939, %v956
        %v959 = vsel %vm907, %v957, 0
        %961 = vmatpush.msra.mxu0 0.0
        %962 = vmatpush.msra.mxu0 0.0
        %963 = vmatpush.msra.mxu0 0.0
        %964 = vmatpush.msra.mxu0 0.0
        %965 = vmatpush.msra.mxu0 0.0
        %966 = vmatpush.msra.mxu0 0.0
        %967 = vmatpush.msra.mxu0 0.0
        %968 = vmatpush.msra.mxu0 0.0
        %969 = vmatpush.msra.mxu0 0.0
        %970 = vmatpush.msra.mxu0 0.0
        %971 = vmatpush.msra.mxu0 0.0
        %972 = vmatpush.msra.mxu0 0.0
        %973 = vmatpush.msra.mxu0 0.0
        %974 = vmatpush.msra.mxu0 0.0
        %975 = vmatpush.msra.mxu0 0.0
        %976 = vmatpush.msra.mxu0 %v905
        %977 = vmatmul.f32.gmra.mxu0 %v959
        %v978 = vpop.f32.mrf.mxu0
        %v979 = vadd.f32 0.0, %v978
        %980 = vdwg.mxu0
        %981 = vrot.lane.b32.xlu0 %v843, 120
        %v982 = vpop.permute.xlu0 %981
        %983 = vrot.lane.b32.xlu0 %v874, 120
        %v984 = vpop.permute.xlu0 %983
        %v985 = vsel %vm907, %v982, 0
        %v987 = vsel %vm907, %v984, 0
        %989 = vmatpush.xpose.msra.mxu0 0.0
        %990 = vmatpush.xpose.msra.mxu0 0.0
        %991 = vmatpush.xpose.msra.mxu0 0.0
        %992 = vmatpush.xpose.msra.mxu0 0.0
        %993 = vmatpush.xpose.msra.mxu0 0.0
        %994 = vmatpush.xpose.msra.mxu0 0.0
        %995 = vmatpush.xpose.msra.mxu0 0.0
        %996 = vmatpush.xpose.msra.mxu0 0.0
        %997 = vmatpush.xpose.msra.mxu0 0.0
        %998 = vmatpush.xpose.msra.mxu0 0.0
        %999 = vmatpush.xpose.msra.mxu0 0.0
        %1000 = vmatpush.xpose.msra.mxu0 0.0
        %1001 = vmatpush.xpose.msra.mxu0 0.0
        %1002 = vmatpush.xpose.msra.mxu0 0.0
        %1003 = vmatpush.xpose.msra.mxu0 0.0
        %1004 = vmatpush.xpose.msra.mxu0 %v987
        %1005 = vmatmul.f32.gmra.mxu0 %v985
        %v1006 = vpop.f32.mrf.mxu0
        %v1007 = vadd.f32 0.0, %v1006
        %1008 = vdwg.mxu0
        %v1009 = vsel %vm907, %v1007, -inf
        %1010 = vmax.xlane.f32.xlu0 %v1009
        %v1011 = vpop.xlane.xlu0 %1010
        %v1012 = vsub.f32 %v1007, %v1011
        %v1013 = vmul.f32 %v1012, 1.442695
        %v1014 = vpow.pop %v1013
        %v1015 = vsel %vm907, %v1014, 0.0
        %1016 = vadd.xlane.f32.xlu0 %v1015
        %v1017 = vpop.xlane.xlu0 %1016
        %v1018 = vrcp.pop %v1017
        %v1019 = vmul.f32 %v1017, %v1018
        %v1020 = vsub.f32 1.0, %v1019
        %v1021 = vmul.f32 %v1018, %v1020
        %v1022 = vadd.f32 %v1018, %v1021
        %vm1023 = vweird.f32 %v1017
        %vm1024 = vweird.f32 %v1018
        %vm1025 = vmor %vm1023, %vm1024
        %v1026 = vsel %vm1025, %v1018, %v1022
        %v1027 = vand.u32 2147483647, %v1017
        %vm1028 = vcmp.eq.f32.partialorder %v1027, 8.507059e+37
        %v1029 = vand.u32 %v1017, 2147483648
        %v1030 = vor.u32 1.1754944e-38, %v1029
        %v1031 = vsel %vm1028, %v1030, %v1026
        %v1032 = vmul.f32 %v1014, %v1031
        %1034 = vrot.lane.b32.xlu0 %v905, 120
        %v1035 = vpop.permute.xlu0 %1034
        %v1038 = vsel %vm907, %v1032, 0
        %1040 = vmatpush.msra.mxu0 0.0
        %1041 = vmatpush.msra.mxu0 0.0
        %1042 = vmatpush.msra.mxu0 0.0
        %1043 = vmatpush.msra.mxu0 0.0
        %1044 = vmatpush.msra.mxu0 0.0
        %1045 = vmatpush.msra.mxu0 0.0
        %1046 = vmatpush.msra.mxu0 0.0
        %1047 = vmatpush.msra.mxu0 0.0
        %1048 = vmatpush.msra.mxu0 0.0
        %1049 = vmatpush.msra.mxu0 0.0
        %1050 = vmatpush.msra.mxu0 0.0
        %1051 = vmatpush.msra.mxu0 0.0
        %1052 = vmatpush.msra.mxu0 0.0
        %1053 = vmatpush.msra.mxu0 0.0
        %1054 = vmatpush.msra.mxu0 0.0
        %1055 = vmatpush.msra.mxu0 %v1035
        %1056 = vmatmul.f32.gmra.mxu0 %v1038
        %v1057 = vpop.f32.mrf.mxu0
        %v1058 = vadd.f32 0.0, %v1057
        %1059 = vdwg.mxu0
        %1060 = vrot.lane.b32.xlu0 %v843, 112
        %v1061 = vpop.permute.xlu0 %1060
        %1062 = vrot.lane.b32.xlu0 %v874, 112
        %v1063 = vpop.permute.xlu0 %1062
        %v1064 = vsel %vm907, %v1061, 0
        %v1066 = vsel %vm907, %v1063, 0
        %1068 = vmatpush.xpose.msra.mxu0 0.0
        %1069 = vmatpush.xpose.msra.mxu0 0.0
        %1070 = vmatpush.xpose.msra.mxu0 0.0
        %1071 = vmatpush.xpose.msra.mxu0 0.0
        %1072 = vmatpush.xpose.msra.mxu0 0.0
        %1073 = vmatpush.xpose.msra.mxu0 0.0
        %1074 = vmatpush.xpose.msra.mxu0 0.0
        %1075 = vmatpush.xpose.msra.mxu0 0.0
        %1076 = vmatpush.xpose.msra.mxu0 0.0
        %1077 = vmatpush.xpose.msra.mxu0 0.0
        %1078 = vmatpush.xpose.msra.mxu0 0.0
        %1079 = vmatpush.xpose.msra.mxu0 0.0
        %1080 = vmatpush.xpose.msra.mxu0 0.0
        %1081 = vmatpush.xpose.msra.mxu0 0.0
        %1082 = vmatpush.xpose.msra.mxu0 0.0
        %1083 = vmatpush.xpose.msra.mxu0 %v1066
        %1084 = vmatmul.f32.gmra.mxu0 %v1064
        %v1085 = vpop.f32.mrf.mxu0
        %v1086 = vadd.f32 0.0, %v1085
        %1087 = vdwg.mxu0
        %v1088 = vsel %vm907, %v1086, -inf
        %1089 = vmax.xlane.f32.xlu0 %v1088
        %v1090 = vpop.xlane.xlu0 %1089
        %v1091 = vsub.f32 %v1086, %v1090
        %v1092 = vmul.f32 %v1091, 1.442695
        %v1093 = vpow.pop %v1092
        %v1094 = vsel %vm907, %v1093, 0.0
        %1095 = vadd.xlane.f32.xlu0 %v1094
        %v1096 = vpop.xlane.xlu0 %1095
        %v1097 = vrcp.pop %v1096
        %v1098 = vmul.f32 %v1096, %v1097
        %v1099 = vsub.f32 1.0, %v1098
        %v1100 = vmul.f32 %v1097, %v1099
        %v1101 = vadd.f32 %v1097, %v1100
        %vm1102 = vweird.f32 %v1096
        %vm1103 = vweird.f32 %v1097
        %vm1104 = vmor %vm1102, %vm1103
        %v1105 = vsel %vm1104, %v1097, %v1101
        %v1106 = vand.u32 2147483647, %v1096
        %vm1107 = vcmp.eq.f32.partialorder %v1106, 8.507059e+37
        %v1108 = vand.u32 %v1096, 2147483648
        %v1109 = vor.u32 1.1754944e-38, %v1108
        %v1110 = vsel %vm1107, %v1109, %v1105
        %v1111 = vmul.f32 %v1093, %v1110
        %1112 = vrot.lane.b32.xlu0 %v905, 112
        %v1113 = vpop.permute.xlu0 %1112
        %v1116 = vsel %vm907, %v1111, 0
        %1118 = vmatpush.msra.mxu0 0.0
        %1119 = vmatpush.msra.mxu0 0.0
        %1120 = vmatpush.msra.mxu0 0.0
        %1121 = vmatpush.msra.mxu0 0.0
        %1122 = vmatpush.msra.mxu0 0.0
        %1123 = vmatpush.msra.mxu0 0.0
        %1124 = vmatpush.msra.mxu0 0.0
        %1125 = vmatpush.msra.mxu0 0.0
        %1126 = vmatpush.msra.mxu0 0.0
        %1127 = vmatpush.msra.mxu0 0.0
        %1128 = vmatpush.msra.mxu0 0.0
        %1129 = vmatpush.msra.mxu0 0.0
        %1130 = vmatpush.msra.mxu0 0.0
        %1131 = vmatpush.msra.mxu0 0.0
        %1132 = vmatpush.msra.mxu0 0.0
        %1133 = vmatpush.msra.mxu0 %v1113
        %1134 = vmatmul.f32.gmra.mxu0 %v1116
        %v1135 = vpop.f32.mrf.mxu0
        %v1136 = vadd.f32 0.0, %v1135
        %1137 = vdwg.mxu0
        %1138 = vrot.lane.b32.xlu0 %v843, 104
        %v1139 = vpop.permute.xlu0 %1138
        %1140 = vrot.lane.b32.xlu0 %v874, 104
        %v1141 = vpop.permute.xlu0 %1140
        %v1142 = vsel %vm907, %v1139, 0
        %v1144 = vsel %vm907, %v1141, 0
        %1146 = vmatpush.xpose.msra.mxu0 0.0
        %1147 = vmatpush.xpose.msra.mxu0 0.0
        %1148 = vmatpush.xpose.msra.mxu0 0.0
        %1149 = vmatpush.xpose.msra.mxu0 0.0
        %1150 = vmatpush.xpose.msra.mxu0 0.0
        %1151 = vmatpush.xpose.msra.mxu0 0.0
        %1152 = vmatpush.xpose.msra.mxu0 0.0
        %1153 = vmatpush.xpose.msra.mxu0 0.0
        %1154 = vmatpush.xpose.msra.mxu0 0.0
        %1155 = vmatpush.xpose.msra.mxu0 0.0
        %1156 = vmatpush.xpose.msra.mxu0 0.0
        %1157 = vmatpush.xpose.msra.mxu0 0.0
        %1158 = vmatpush.xpose.msra.mxu0 0.0
        %1159 = vmatpush.xpose.msra.mxu0 0.0
        %1160 = vmatpush.xpose.msra.mxu0 0.0
        %1161 = vmatpush.xpose.msra.mxu0 %v1144
        %1162 = vmatmul.f32.gmra.mxu0 %v1142
        %v1163 = vpop.f32.mrf.mxu0
        %v1164 = vadd.f32 0.0, %v1163
        %1165 = vdwg.mxu0
        %v1166 = vsel %vm907, %v1164, -inf
        %1167 = vmax.xlane.f32.xlu0 %v1166
        %v1168 = vpop.xlane.xlu0 %1167
        %v1169 = vsub.f32 %v1164, %v1168
        %v1170 = vmul.f32 %v1169, 1.442695
        %v1171 = vpow.pop %v1170
        %v1172 = vsel %vm907, %v1171, 0.0
        %1173 = vadd.xlane.f32.xlu0 %v1172
        %v1174 = vpop.xlane.xlu0 %1173
        %v1175 = vrcp.pop %v1174
        %v1176 = vmul.f32 %v1174, %v1175
        %v1177 = vsub.f32 1.0, %v1176
        %v1178 = vmul.f32 %v1175, %v1177
        %v1179 = vadd.f32 %v1175, %v1178
        %vm1180 = vweird.f32 %v1174
        %vm1181 = vweird.f32 %v1175
        %vm1182 = vmor %vm1180, %vm1181
        %v1183 = vsel %vm1182, %v1175, %v1179
        %v1184 = vand.u32 2147483647, %v1174
        %vm1185 = vcmp.eq.f32.partialorder %v1184, 8.507059e+37
        %v1186 = vand.u32 %v1174, 2147483648
        %v1187 = vor.u32 1.1754944e-38, %v1186
        %v1188 = vsel %vm1185, %v1187, %v1183
        %v1189 = vmul.f32 %v1171, %v1188
        %1190 = vrot.lane.b32.xlu0 %v905, 104
        %v1191 = vpop.permute.xlu0 %1190
        %v1194 = vsel %vm907, %v1189, 0
        %1196 = vmatpush.msra.mxu0 0.0
        %1197 = vmatpush.msra.mxu0 0.0
        %1198 = vmatpush.msra.mxu0 0.0
        %1199 = vmatpush.msra.mxu0 0.0
        %1200 = vmatpush.msra.mxu0 0.0
        %1201 = vmatpush.msra.mxu0 0.0
        %1202 = vmatpush.msra.mxu0 0.0
        %1203 = vmatpush.msra.mxu0 0.0
        %1204 = vmatpush.msra.mxu0 0.0
        %1205 = vmatpush.msra.mxu0 0.0
        %1206 = vmatpush.msra.mxu0 0.0
        %1207 = vmatpush.msra.mxu0 0.0
        %1208 = vmatpush.msra.mxu0 0.0
        %1209 = vmatpush.msra.mxu0 0.0
        %1210 = vmatpush.msra.mxu0 0.0
        %1211 = vmatpush.msra.mxu0 %v1191
        %1212 = vmatmul.f32.gmra.mxu0 %v1194
        %v1213 = vpop.f32.mrf.mxu0
        %v1214 = vadd.f32 0.0, %v1213
        %1215 = vdwg.mxu0
        %1217 = vrot.lane.b32.xlu0 %v1058, 8
        %v1218 = vpop.permute.xlu0 %1217
        %1221 = vrot.lane.b32.xlu0 %v1136, 16
        %v1222 = vpop.permute.xlu0 %1221
        %1225 = vrot.lane.b32.xlu0 %v1214, 24
        %v1226 = vpop.permute.xlu0 %1225
        %v1228 = vsel %vm907, %v979, %v1218
        %vm1229 = vcmask 130048
        %v1230 = vsel %vm1229, %v1228, %v1222
        %vm1231 = vcmask 195584
        %v1232 = vsel %vm1231, %v1230, %v1226
        %v1233 = vld [vmem:[#allocation13] sm:$0xff]
        %v1234 = vld [vmem:[#allocation13 + $0x8] sm:$0xff]
        %v1235 = vld [vmem:[#allocation13 + $0x10] sm:$0xff]
        %v1236 = vld [vmem:[#allocation13 + $0x18] sm:$0xff]
        %v1237 = vld [vmem:[%s16] sm:$0x1]
        %v1239 = vperm.slane %v1237, 0
        %v1242 = vsel %vm710, %v1232, 0
        %1244 = vmatpush.msra.mxu0 0.0
        %1245 = vmatpush.msra.mxu0 0.0
        %1246 = vmatpush.msra.mxu0 0.0
        %1247 = vmatpush.msra.mxu0 0.0
        %1248 = vmatpush.msra.mxu0 0.0
        %1249 = vmatpush.msra.mxu0 0.0
        %1250 = vmatpush.msra.mxu0 0.0
        %1251 = vmatpush.msra.mxu0 0.0
        %1252 = vmatpush.msra.mxu0 0.0
        %1253 = vmatpush.msra.mxu0 0.0
        %1254 = vmatpush.msra.mxu0 0.0
        %1255 = vmatpush.msra.mxu0 0.0
        %1256 = vmatpush.msra.mxu0 %v1236
        %1257 = vmatpush.msra.mxu0 %v1235
        %1258 = vmatpush.msra.mxu0 %v1234
        %1259 = vmatpush.msra.mxu0 %v1233
        %1260 = vmatmul.f32.gmra.mxu0 %v1242
        %v1261 = vpop.f32.mrf.mxu0
        %v1262 = vadd.f32 %v1239, %v1261
        %1263 = vdwg.mxu0
        %v1264 = vld [vmem:[%s605] sm:$0xff]
        %v1265 = vadd.f32 %v1264, %v1262
        %1266 = vst.msk [vmem:[%s706] sm:$0xff] %vm710, %v1265
        %s1267 = sand.u32 %s419, 1
        %s1268 = scalar_lea.sflag [#allocation4], %s1267
        %s1269 = sand.u32 %s419, 1
        %s1270 = smul.addr %s1269, 8
        %s1271 = scalar_lea.vmem [#allocation14], %s1270
        // Predicated region
        $region117: #{tpu_custom_call.1} parent=87 // pred_check
          %p1272 = pneg %p429
        $region118: #{tpu_custom_call.1} parent=87 // pred_check_branch
          %1274 = sbr.rel (%p1272) target = $region120
        $region119: #{tpu_custom_call.1} parent=87 // pred_region
          %1276 = vsyncadd %s1268, 0
          %s1277 = smul.addr %s39, 8
          %s1278 = scalar_lea.hbm %s17, %s1277
          %s1280 = sshll.u32 %s1271, 4
          %s1281 = int_to_ptr.vmem [resolvable:$true] %s1280
          %s1282 = sshll.u32 %s1278, 4
          %s1283 = int_to_ptr.hbm [resolvable:$true] %s1282
          %1285 = dma.vmem_to_hbm [thread:$0]  %s1281, 128, %s1283, %s1268
        $region120: #{tpu_custom_call.1} parent=87 // pred_fallthru
          _
      $region88: #{tpu_custom_call.1} parent=5 // pred_fallthru
        _
      %p1286 = scmp.le.s32.totalorder 2, %s34
      // Predicated region
      $region121: #{tpu_custom_call.1} parent=5 // pred_check
        %p1287 = pneg %p1286
      $region122: #{tpu_custom_call.1} parent=5 // pred_check_branch
        %1289 = sbr.rel (%p1287) target = $region124
      $region123: #{tpu_custom_call.1} parent=5 // pred_region
        %s1290 = ssub.s32 %s34, 2
        // Predicated region
        $region125: #{tpu_custom_call.1} parent=123 // pred_check
          %p1291 = pneg %p435
        $region126: #{tpu_custom_call.1} parent=123 // pred_check_branch
          %1293 = sbr.rel (%p1291) target = $region128
        $region127: #{tpu_custom_call.1} parent=123 // pred_region
          %s1294 = sand.u32 %s420, 1
          %s1295 = scalar_lea.sflag [#allocation4], %s1294
          %s1296 = sand.u32 %s420, 1
          %s1297 = smul.addr %s1296, 8
          %s1298 = scalar_lea.vmem [#allocation14], %s1297
          %1300 = dma.done %s1295, 128
        $region128: #{tpu_custom_call.1} parent=123 // pred_fallthru
          _
      $region124: #{tpu_custom_call.1} parent=5 // pred_fallthru
        _
    $region6: #{tpu_custom_call.1} parent=1 // loop_footer
      %s38 = sadd.s32 1, %s34
    $region7: #{tpu_custom_call.1} parent=1 // loop_footer_branch
      %33 = sbr.rel target = $region3
    $region8: #{tpu_custom_call.1} parent=1 // loop_exit
      _
    %1301 = vsyncpa [#allocation3], 1
    %s1302 = scalar_lea.sflag [#allocation3], 1
    %1303 = vsyncpa %s1302, 1
    %1304 = vsyncpa [#allocation6], 1
    %s1305 = scalar_lea.sflag [#allocation6], 1
    %1306 = vsyncpa %s1305, 1
    %1307 = vsyncpa [#allocation9], 1
    %1308 = vsyncpa [#allocation12], 1
    %1309 = vsyncpa [#allocation4], 1
    %s1310 = scalar_lea.sflag [#allocation4], 1
    %1311 = vsyncpa %s1310, 1

// kernel: tpu_custom_call.1
$region0: #{tpu_custom_call.1}
  #allocation0 [shape = 'u32[]', space=smem, size = 0x4, offset = 0x4, fixed_abs, tag = 'smem constant byte address 0x4 - core index']
  #allocation1 [shape = 'u32[72,128]{1,0:T(1,128)}', space=vmem, size = 0x9000, scoped, tag = 'internal scratch']
  %s0 = inlined_call_operand.hbm [shape: f32[4,8,32], index: 0, kind: input, shape index: {}]
  %s1 = inlined_call_operand.hbm [shape: f32[4,8,32], index: 1, kind: input, shape index: {}]
  %s2 = inlined_call_operand.hbm [shape: f32[4,8,32], index: 2, kind: input, shape index: {}]
  %s3 = inlined_call_operand.vmem [shape: f32[1,32], index: 3, kind: input, shape index: {}]
  %s4 = inlined_call_operand.vmem [shape: f32[1,32], index: 4, kind: input, shape index: {}]
  %s5 = inlined_call_operand.vmem [shape: f32[1,32], index: 5, kind: input, shape index: {}]
  %s6 = inlined_call_operand.vmem [shape: f32[1,32], index: 6, kind: input, shape index: {}]
  %s7 = inlined_call_operand.vmem [shape: f32[1,32], index: 7, kind: input, shape index: {}]
  %s8 = inlined_call_operand.vmem [shape: f32[1,32], index: 8, kind: input, shape index: {}]
  %s9 = inlined_call_operand.hbm [shape: f32[32,32], index: 9, kind: input, shape index: {}]
  %s10 = inlined_call_operand.hbm [shape: f32[32,32], index: 10, kind: input, shape index: {}]
  %s11 = inlined_call_operand.hbm [shape: f32[32,32], index: 11, kind: input, shape index: {}]
  %s12 = inlined_call_operand.vmem [shape: f32[1,32], index: 12, kind: input, shape index: {}]
  %s13 = inlined_call_operand.vmem [shape: f32[1,32], index: 13, kind: input, shape index: {}]
  %s14 = inlined_call_operand.vmem [shape: f32[1,32], index: 14, kind: input, shape index: {}]
  %s15 = inlined_call_operand.hbm [shape: f32[32,32], index: 15, kind: input, shape index: {}]
  %s16 = inlined_call_operand.vmem [shape: f32[1,32], index: 16, kind: input, shape index: {}]
  %s17 = inlined_call_operand.hbm [shape: f32[4,8,32], index: 17, kind: output, shape index: {}]
  %s18 = sld [smem:[#allocation0]]
  $region129: #{tpu_custom_call.1} parent=0
    _
  %s20 = ssub.s32 1, %s18
  %s21 = scalar_select 0, %s20, %s18
  $region1: #{tpu_custom_call.1} parent=0
    #allocation2 [shape = 'u8[8192]{0}', space=vmem, size = 0x2000, scoped, tag = 'input window, operand 0']
    #allocation3 [shape = 's32[2]{0}', space=sflag, size = 0x8, scoped, tag = 'scoped memory for tpu_custom_call.1']
    #allocation4 [shape = 's32[2]{0}', space=sflag, size = 0x8, scoped, tag = 'scoped memory for tpu_custom_call.1']
    #allocation5 [shape = 'u8[8192]{0}', space=vmem, size = 0x2000, scoped, tag = 'input window, operand 1']
    #allocation6 [shape = 's32[2]{0}', space=sflag, size = 0x8, scoped, tag = 'scoped memory for tpu_custom_call.1']
    #allocation7 [shape = 'u8[8192]{0}', space=vmem, size = 0x2000, scoped, tag = 'input window, operand 2']
    #allocation8 [shape = 'u8[16384]{0}', space=vmem, size = 0x4000, scoped, tag = 'input window, operand 9, single buffered']
    #allocation9 [shape = 's32[1]{0}', space=sflag, size = 0x4, scoped, tag = 'scoped memory for tpu_custom_call.1']
    #allocation10 [shape = 'u8[16384]{0}', space=vmem, size = 0x4000, scoped, tag = 'input window, operand 10, single buffered']
    #allocation11 [shape = 'u8[16384]{0}', space=vmem, size = 0x4000, scoped, tag = 'input window, operand 11, single buffered']
    #allocation12 [shape = 's32[1]{0}', space=sflag, size = 0x4, scoped, tag = 'scoped memory for tpu_custom_call.1']
    #allocation13 [shape = 'u8[16384]{0}', space=vmem, size = 0x4000, scoped, tag = 'input window, operand 15, single buffered']
    #allocation14 [shape = 'u8[8192]{0}', space=vmem, size = 0x2000, scoped, tag = 'output window, operand 0']
    %22 = vsyncpa [#allocation3], 0
    %s23 = scalar_lea.sflag [#allocation3], 1
    %24 = vsyncpa %s23, 0
    %25 = vsyncpa [#allocation6], 0
    %s26 = scalar_lea.sflag [#allocation6], 1
    %27 = vsyncpa %s26, 0
    %28 = vsyncpa [#allocation9], 0
    %29 = vsyncpa [#allocation12], 0
    %30 = vsyncpa [#allocation4], 0
    %s31 = scalar_lea.sflag [#allocation4], 1
    %32 = vsyncpa %s31, 0
    loop: start=0, step=1, limit=6
    $region2: #{tpu_custom_call.1} parent=1 // loop_pre_header
      _
    $region3: #{tpu_custom_call.1} parent=1 // loop_header
      %s34 = sphi 0, %s38
      %p35 = scmp.ge.s32.totalorder %s34, 6
      %s44 = sphi 0, %s46
      %s47 = sphi 0, %s44
      %s48 = sphi 0, %s47
      %s64 = sphi 0, %s48
      %s70 = sphi 0, %s72
      %s73 = sphi 0, %s70
      %s74 = sphi 0, %s73
      %s90 = sphi 0, %s74
      %s96 = sphi 0, %s98
      %s99 = sphi 0, %s96
      %s100 = sphi 0, %s99
      %s116 = sphi 0, %s100
      %s120 = sphi 0, %s120
      %s122 = sphi 0, %s120
      %s123 = sphi 0, %s122
      %s137 = sphi 0, %s123
      %s141 = sphi 0, %s141
      %s143 = sphi 0, %s141
      %s144 = sphi 0, %s143
      %s158 = sphi 0, %s144
      %s162 = sphi 0, %s162
      %s164 = sphi 0, %s162
      %s165 = sphi 0, %s164
      %s179 = sphi 0, %s165
      %s183 = sphi 0, %s183
      %s185 = sphi 0, %s183
      %s186 = sphi 0, %s185
      %s200 = sphi 0, %s186
      %s204 = sphi 0, %s204
      %s206 = sphi 0, %s204
      %s207 = sphi 0, %s206
      %s221 = sphi 0, %s207
      %s225 = sphi 0, %s225
      %s227 = sphi 0, %s225
      %s228 = sphi 0, %s227
      %s242 = sphi 0, %s228
      %s246 = sphi 0, %s246
      %s248 = sphi 0, %s246
      %s249 = sphi 0, %s248
      %s263 = sphi 0, %s249
      %s267 = sphi 0, %s267
      %s269 = sphi 0, %s267
      %s270 = sphi 0, %s269
      %s284 = sphi 0, %s270
      %s288 = sphi 0, %s288
      %s290 = sphi 0, %s288
      %s291 = sphi 0, %s290
      %s305 = sphi 0, %s291
      %s309 = sphi 0, %s309
      %s311 = sphi 0, %s309
      %s312 = sphi 0, %s311
      %s326 = sphi 0, %s312
      %s330 = sphi 0, %s330
      %s332 = sphi 0, %s330
      %s333 = sphi 0, %s332
      %s347 = sphi 0, %s333
      %s351 = sphi 0, %s351
      %s353 = sphi 0, %s351
      %s354 = sphi 0, %s353
      %s368 = sphi 0, %s354
      %s372 = sphi 0, %s372
      %s374 = sphi 0, %s372
      %s375 = sphi 0, %s374
      %s389 = sphi 0, %s375
      %s393 = sphi 0, %s393
      %s395 = sphi 0, %s393
      %s396 = sphi 0, %s395
      %s410 = sphi 0, %s396
      %s416 = sphi 0, %s418
      %s419 = sphi 0, %s416
      %s420 = sphi 0, %s419
      %s436 = sphi 0, %s420
    $region4: #{tpu_custom_call.1} parent=1 // loop_header_branch
      %37 = sbr.rel (%p35) target = $region8
    $region5: #{tpu_custom_call.1} parent=1 // loop_body
      %s39 = ssub.s32 %s34, 1
      %s40 = ssub.s32 %s34, 2
      %s41 = sadd.s32 %s34, 1
      %s42 = ssub.s32 %s34, %s41
      %p43 = scmp.eq.s32.totalorder %s42, 0
      %s45 = sadd.s32 %s44, 1
      %s46 = scalar_select %p43, %s44, %s45
      %p49 = pneg %p43
      %p50 = scmp.eq.s32.totalorder %s34, 3
      %p51 = por %p49, %p50
      %p52 = scmp.ne.s32.totalorder %s44, %s47
      %p53 = scmp.eq.s32.totalorder %s34, 0
      %p54 = por %p52, %p53
      %p55 = scmp.ne.s32.totalorder %s44, %s47
      %p56 = scmp.eq.s32.totalorder %s39, 3
      %p57 = por %p55, %p56
      %p58 = scmp.ne.s32.totalorder %s47, %s48
      %p59 = scmp.eq.s32.totalorder %s39, 0
      %p60 = por %p58, %p59
      %p61 = scmp.ne.s32.totalorder %s47, %s48
      %p62 = scmp.eq.s32.totalorder %s40, 3
      %p63 = por %p61, %p62
      %p65 = scmp.ne.s32.totalorder %s48, %s64
      %p66 = scmp.eq.s32.totalorder %s40, 0
      %p67 = por %p65, %p66
      %s68 = ssub.s32 %s34, %s41
      %p69 = scmp.eq.s32.totalorder %s68, 0
      %s71 = sadd.s32 %s70, 1
      %s72 = scalar_select %p69, %s70, %s71
      %p75 = pneg %p69
      %p76 = scmp.eq.s32.totalorder %s34, 3
      %p77 = por %p75, %p76
      %p78 = scmp.ne.s32.totalorder %s70, %s73
      %p79 = scmp.eq.s32.totalorder %s34, 0
      %p80 = por %p78, %p79
      %p81 = scmp.ne.s32.totalorder %s70, %s73
      %p82 = scmp.eq.s32.totalorder %s39, 3
      %p83 = por %p81, %p82
      %p84 = scmp.ne.s32.totalorder %s73, %s74
      %p85 = scmp.eq.s32.totalorder %s39, 0
      %p86 = por %p84, %p85
      %p87 = scmp.ne.s32.totalorder %s73, %s74
      %p88 = scmp.eq.s32.totalorder %s40, 3
      %p89 = por %p87, %p88
      %p91 = scmp.ne.s32.totalorder %s74, %s90
      %p92 = scmp.eq.s32.totalorder %s40, 0
      %p93 = por %p91, %p92
      %s94 = ssub.s32 %s34, %s41
      %p95 = scmp.eq.s32.totalorder %s94, 0
      %s97 = sadd.s32 %s96, 1
      %s98 = scalar_select %p95, %s96, %s97
      %p101 = pneg %p95
      %p102 = scmp.eq.s32.totalorder %s34, 3
      %p103 = por %p101, %p102
      %p104 = scmp.ne.s32.totalorder %s96, %s99
      %p105 = scmp.eq.s32.totalorder %s34, 0
      %p106 = por %p104, %p105
      %p107 = scmp.ne.s32.totalorder %s96, %s99
      %p108 = scmp.eq.s32.totalorder %s39, 3
      %p109 = por %p107, %p108
      %p110 = scmp.ne.s32.totalorder %s99, %s100
      %p111 = scmp.eq.s32.totalorder %s39, 0
      %p112 = por %p110, %p111
      %p113 = scmp.ne.s32.totalorder %s99, %s100
      %p114 = scmp.eq.s32.totalorder %s40, 3
      %p115 = por %p113, %p114
      %p117 = scmp.ne.s32.totalorder %s100, %s116
      %p118 = scmp.eq.s32.totalorder %s40, 0
      %p119 = por %p117, %p118
      %s121 = sadd.s32 %s120, 1
      %p124 = scmp.eq.s32.totalorder %s34, 3
      %p125 = scmp.ne.s32.totalorder %s120, %s122
      %p126 = scmp.eq.s32.totalorder %s34, 0
      %p127 = por %p125, %p126
      %p128 = scmp.ne.s32.totalorder %s120, %s122
      %p129 = scmp.eq.s32.totalorder %s39, 3
      %p130 = por %p128, %p129
      %p131 = scmp.ne.s32.totalorder %s122, %s123
      %p132 = scmp.eq.s32.totalorder %s39, 0
      %p133 = por %p131, %p132
      %p134 = scmp.ne.s32.totalorder %s122, %s123
      %p135 = scmp.eq.s32.totalorder %s40, 3
      %p136 = por %p134, %p135
      %p138 = scmp.ne.s32.totalorder %s123, %s137
      %p139 = scmp.eq.s32.totalorder %s40, 0
      %p140 = por %p138, %p139
      %s142 = sadd.s32 %s141, 1
      %p145 = scmp.eq.s32.totalorder %s34, 3
      %p146 = scmp.ne.s32.totalorder %s141, %s143
      %p147 = scmp.eq.s32.totalorder %s34, 0
      %p148 = por %p146, %p147
      %p149 = scmp.ne.s32.totalorder %s141, %s143
      %p150 = scmp.eq.s32.totalorder %s39, 3
      %p151 = por %p149, %p150
      %p152 = scmp.ne.s32.totalorder %s143, %s144
      %p153 = scmp.eq.s32.totalorder %s39, 0
      %p154 = por %p152, %p153
      %p155 = scmp.ne.s32.totalorder %s143, %s144
      %p156 = scmp.eq.s32.totalorder %s40, 3
      %p157 = por %p155, %p156
      %p159 = scmp.ne.s32.totalorder %s144, %s158
      %p160 = scmp.eq.s32.totalorder %s40, 0
      %p161 = por %p159, %p160
      %s163 = sadd.s32 %s162, 1
      %p166 = scmp.eq.s32.totalorder %s34, 3
      %p167 = scmp.ne.s32.totalorder %s162, %s164
      %p168 = scmp.eq.s32.totalorder %s34, 0
      %p169 = por %p167, %p168
      %p170 = scmp.ne.s32.totalorder %s162, %s164
      %p171 = scmp.eq.s32.totalorder %s39, 3
      %p172 = por %p170, %p171
      %p173 = scmp.ne.s32.totalorder %s164, %s165
      %p174 = scmp.eq.s32.totalorder %s39, 0
      %p175 = por %p173, %p174
      %p176 = scmp.ne.s32.totalorder %s164, %s165
      %p177 = scmp.eq.s32.totalorder %s40, 3
      %p178 = por %p176, %p177
      %p180 = scmp.ne.s32.totalorder %s165, %s179
      %p181 = scmp.eq.s32.totalorder %s40, 0
      %p182 = por %p180, %p181
      %s184 = sadd.s32 %s183, 1
      %p187 = scmp.eq.s32.totalorder %s34, 3
      %p188 = scmp.ne.s32.totalorder %s183, %s185
      %p189 = scmp.eq.s32.totalorder %s34, 0
      %p190 = por %p188, %p189
      %p191 = scmp.ne.s32.totalorder %s183, %s185
      %p192 = scmp.eq.s32.totalorder %s39, 3
      %p193 = por %p191, %p192
      %p194 = scmp.ne.s32.totalorder %s185, %s186
      %p195 = scmp.eq.s32.totalorder %s39, 0
      %p196 = por %p194, %p195
      %p197 = scmp.ne.s32.totalorder %s185, %s186
      %p198 = scmp.eq.s32.totalorder %s40, 3
      %p199 = por %p197, %p198
      %p201 = scmp.ne.s32.totalorder %s186, %s200
      %p202 = scmp.eq.s32.totalorder %s40, 0
      %p203 = por %p201, %p202
      %s205 = sadd.s32 %s204, 1
      %p208 = scmp.eq.s32.totalorder %s34, 3
      %p209 = scmp.ne.s32.totalorder %s204, %s206
      %p210 = scmp.eq.s32.totalorder %s34, 0
      %p211 = por %p209, %p210
      %p212 = scmp.ne.s32.totalorder %s204, %s206
      %p213 = scmp.eq.s32.totalorder %s39, 3
      %p214 = por %p212, %p213
      %p215 = scmp.ne.s32.totalorder %s206, %s207
      %p216 = scmp.eq.s32.totalorder %s39, 0
      %p217 = por %p215, %p216
      %p218 = scmp.ne.s32.totalorder %s206, %s207
      %p219 = scmp.eq.s32.totalorder %s40, 3
      %p220 = por %p218, %p219
      %p222 = scmp.ne.s32.totalorder %s207, %s221
      %p223 = scmp.eq.s32.totalorder %s40, 0
      %p224 = por %p222, %p223
      %s226 = sadd.s32 %s225, 1
      %p229 = scmp.eq.s32.totalorder %s34, 3
      %p230 = scmp.ne.s32.totalorder %s225, %s227
      %p231 = scmp.eq.s32.totalorder %s34, 0
      %p232 = por %p230, %p231
      %p233 = scmp.ne.s32.totalorder %s225, %s227
      %p234 = scmp.eq.s32.totalorder %s39, 3
      %p235 = por %p233, %p234
      %p236 = scmp.ne.s32.totalorder %s227, %s228
      %p237 = scmp.eq.s32.totalorder %s39, 0
      %p238 = por %p236, %p237
      %p239 = scmp.ne.s32.totalorder %s227, %s228
      %p240 = scmp.eq.s32.totalorder %s40, 3
      %p241 = por %p239, %p240
      %p243 = scmp.ne.s32.totalorder %s228, %s242
      %p244 = scmp.eq.s32.totalorder %s40, 0
      %p245 = por %p243, %p244
      %s247 = sadd.s32 %s246, 1
      %p250 = scmp.eq.s32.totalorder %s34, 3
      %p251 = scmp.ne.s32.totalorder %s246, %s248
      %p252 = scmp.eq.s32.totalorder %s34, 0
      %p253 = por %p251, %p252
      %p254 = scmp.ne.s32.totalorder %s246, %s248
      %p255 = scmp.eq.s32.totalorder %s39, 3
      %p256 = por %p254, %p255
      %p257 = scmp.ne.s32.totalorder %s248, %s249
      %p258 = scmp.eq.s32.totalorder %s39, 0
      %p259 = por %p257, %p258
      %p260 = scmp.ne.s32.totalorder %s248, %s249
      %p261 = scmp.eq.s32.totalorder %s40, 3
      %p262 = por %p260, %p261
      %p264 = scmp.ne.s32.totalorder %s249, %s263
      %p265 = scmp.eq.s32.totalorder %s40, 0
      %p266 = por %p264, %p265
      %s268 = sadd.s32 %s267, 1
      %p271 = scmp.eq.s32.totalorder %s34, 3
      %p272 = scmp.ne.s32.totalorder %s267, %s269
      %p273 = scmp.eq.s32.totalorder %s34, 0
      %p274 = por %p272, %p273
      %p275 = scmp.ne.s32.totalorder %s267, %s269
      %p276 = scmp.eq.s32.totalorder %s39, 3
      %p277 = por %p275, %p276
      %p278 = scmp.ne.s32.totalorder %s269, %s270
      %p279 = scmp.eq.s32.totalorder %s39, 0
      %p280 = por %p278, %p279
      %p281 = scmp.ne.s32.totalorder %s269, %s270
      %p282 = scmp.eq.s32.totalorder %s40, 3
      %p283 = por %p281, %p282
      %p285 = scmp.ne.s32.totalorder %s270, %s284
      %p286 = scmp.eq.s32.totalorder %s40, 0
      %p287 = por %p285, %p286
      %s289 = sadd.s32 %s288, 1
      %p292 = scmp.eq.s32.totalorder %s34, 3
      %p293 = scmp.ne.s32.totalorder %s288, %s290
      %p294 = scmp.eq.s32.totalorder %s34, 0
      %p295 = por %p293, %p294
      %p296 = scmp.ne.s32.totalorder %s288, %s290
      %p297 = scmp.eq.s32.totalorder %s39, 3
      %p298 = por %p296, %p297
      %p299 = scmp.ne.s32.totalorder %s290, %s291
      %p300 = scmp.eq.s32.totalorder %s39, 0
      %p301 = por %p299, %p300
      %p302 = scmp.ne.s32.totalorder %s290, %s291
      %p303 = scmp.eq.s32.totalorder %s40, 3
      %p304 = por %p302, %p303
      %p306 = scmp.ne.s32.totalorder %s291, %s305
      %p307 = scmp.eq.s32.totalorder %s40, 0
      %p308 = por %p306, %p307
      %s310 = sadd.s32 %s309, 1
      %p313 = scmp.eq.s32.totalorder %s34, 3
      %p314 = scmp.ne.s32.totalorder %s309, %s311
      %p315 = scmp.eq.s32.totalorder %s34, 0
      %p316 = por %p314, %p315
      %p317 = scmp.ne.s32.totalorder %s309, %s311
      %p318 = scmp.eq.s32.totalorder %s39, 3
      %p319 = por %p317, %p318
      %p320 = scmp.ne.s32.totalorder %s311, %s312
      %p321 = scmp.eq.s32.totalorder %s39, 0
      %p322 = por %p320, %p321
      %p323 = scmp.ne.s32.totalorder %s311, %s312
      %p324 = scmp.eq.s32.totalorder %s40, 3
      %p325 = por %p323, %p324
      %p327 = scmp.ne.s32.totalorder %s312, %s326
      %p328 = scmp.eq.s32.totalorder %s40, 0
      %p329 = por %p327, %p328
      %s331 = sadd.s32 %s330, 1
      %p334 = scmp.eq.s32.totalorder %s34, 3
      %p335 = scmp.ne.s32.totalorder %s330, %s332
      %p336 = scmp.eq.s32.totalorder %s34, 0
      %p337 = por %p335, %p336
      %p338 = scmp.ne.s32.totalorder %s330, %s332
      %p339 = scmp.eq.s32.totalorder %s39, 3
      %p340 = por %p338, %p339
      %p341 = scmp.ne.s32.totalorder %s332, %s333
      %p342 = scmp.eq.s32.totalorder %s39, 0
      %p343 = por %p341, %p342
      %p344 = scmp.ne.s32.totalorder %s332, %s333
      %p345 = scmp.eq.s32.totalorder %s40, 3
      %p346 = por %p344, %p345
      %p348 = scmp.ne.s32.totalorder %s333, %s347
      %p349 = scmp.eq.s32.totalorder %s40, 0
      %p350 = por %p348, %p349
      %s352 = sadd.s32 %s351, 1
      %p355 = scmp.eq.s32.totalorder %s34, 3
      %p356 = scmp.ne.s32.totalorder %s351, %s353
      %p357 = scmp.eq.s32.totalorder %s34, 0
      %p358 = por %p356, %p357
      %p359 = scmp.ne.s32.totalorder %s351, %s353
      %p360 = scmp.eq.s32.totalorder %s39, 3
      %p361 = por %p359, %p360
      %p362 = scmp.ne.s32.totalorder %s353, %s354
      %p363 = scmp.eq.s32.totalorder %s39, 0
      %p364 = por %p362, %p363
      %p365 = scmp.ne.s32.totalorder %s353, %s354
      %p366 = scmp.eq.s32.totalorder %s40, 3
      %p367 = por %p365, %p366
      %p369 = scmp.ne.s32.totalorder %s354, %s368
      %p370 = scmp.eq.s32.totalorder %s40, 0
      %p371 = por %p369, %p370
      %s373 = sadd.s32 %s372, 1
      %p376 = scmp.eq.s32.totalorder %s34, 3
      %p377 = scmp.ne.s32.totalorder %s372, %s374
      %p378 = scmp.eq.s32.totalorder %s34, 0
      %p379 = por %p377, %p378
      %p380 = scmp.ne.s32.totalorder %s372, %s374
      %p381 = scmp.eq.s32.totalorder %s39, 3
      %p382 = por %p380, %p381
      %p383 = scmp.ne.s32.totalorder %s374, %s375
      %p384 = scmp.eq.s32.totalorder %s39, 0
      %p385 = por %p383, %p384
      %p386 = scmp.ne.s32.totalorder %s374, %s375
      %p387 = scmp.eq.s32.totalorder %s40, 3
      %p388 = por %p386, %p387
      %p390 = scmp.ne.s32.totalorder %s375, %s389
      %p391 = scmp.eq.s32.totalorder %s40, 0
      %p392 = por %p390, %p391
      %s394 = sadd.s32 %s393, 1
      %p397 = scmp.eq.s32.totalorder %s34, 3
      %p398 = scmp.ne.s32.totalorder %s393, %s395
      %p399 = scmp.eq.s32.totalorder %s34, 0
      %p400 = por %p398, %p399
      %p401 = scmp.ne.s32.totalorder %s393, %s395
      %p402 = scmp.eq.s32.totalorder %s39, 3
      %p403 = por %p401, %p402
      %p404 = scmp.ne.s32.totalorder %s395, %s396
      %p405 = scmp.eq.s32.totalorder %s39, 0
      %p406 = por %p404, %p405
      %p407 = scmp.ne.s32.totalorder %s395, %s396
      %p408 = scmp.eq.s32.totalorder %s40, 3
      %p409 = por %p407, %p408
      %p411 = scmp.ne.s32.totalorder %s396, %s410
      %p412 = scmp.eq.s32.totalorder %s40, 0
      %p413 = por %p411, %p412
      %s414 = ssub.s32 %s34, %s41
      %p415 = scmp.eq.s32.totalorder %s414, 0
      %s417 = sadd.s32 %s416, 1
      %s418 = scalar_select %p415, %s416, %s417
      %p421 = pneg %p415
      %p422 = scmp.eq.s32.totalorder %s34, 3
      %p423 = por %p421, %p422
      %p424 = scmp.ne.s32.totalorder %s416, %s419
      %p425 = scmp.eq.s32.totalorder %s34, 0
      %p426 = por %p424, %p425
      %p427 = scmp.ne.s32.totalorder %s416, %s419
      %p428 = scmp.eq.s32.totalorder %s39, 3
      %p429 = por %p427, %p428
      %p430 = scmp.ne.s32.totalorder %s419, %s420
      %p431 = scmp.eq.s32.totalorder %s39, 0
      %p432 = por %p430, %p431
      %p433 = scmp.ne.s32.totalorder %s419, %s420
      %p434 = scmp.eq.s32.totalorder %s40, 3
      %p435 = por %p433, %p434
      %p437 = scmp.ne.s32.totalorder %s420, %s436
      %p438 = scmp.eq.s32.totalorder %s40, 0
      %p439 = por %p437, %p438
      %p440 = scmp.le.s32.totalorder 1, %s34
      %p441 = scmp.lt.s32.totalorder %s34, 5
      %p442 = pnand %p440, %p441
      %p443 = pneg %p442
      // Predicated region
      $region9: #{tpu_custom_call.1} parent=5 // pred_check
        _
      $region10: #{tpu_custom_call.1} parent=5 // pred_check_branch
        %445 = sbr.rel (%p442) target = $region12
      $region11: #{tpu_custom_call.1} parent=5 // pred_region
        %s446 = ssub.s32 %s34, 1
        // Predicated region
        $region13: #{tpu_custom_call.1} parent=11 // pred_check
          %p447 = pneg %p133
        $region14: #{tpu_custom_call.1} parent=11 // pred_check_branch
          %449 = sbr.rel (%p447) target = $region16
        $region15: #{tpu_custom_call.1} parent=11 // pred_region
          _
        $region16: #{tpu_custom_call.1} parent=11 // pred_fallthru
          _
        // Predicated region
        $region17: #{tpu_custom_call.1} parent=11 // pred_check
          %p450 = pneg %p154
        $region18: #{tpu_custom_call.1} parent=11 // pred_check_branch
          %452 = sbr.rel (%p450) target = $region20
        $region19: #{tpu_custom_call.1} parent=11 // pred_region
          _
        $region20: #{tpu_custom_call.1} parent=11 // pred_fallthru
          _
        // Predicated region
        $region21: #{tpu_custom_call.1} parent=11 // pred_check
          %p453 = pneg %p175
        $region22: #{tpu_custom_call.1} parent=11 // pred_check_branch
          %455 = sbr.rel (%p453) target = $region24
        $region23: #{tpu_custom_call.1} parent=11 // pred_region
          _
        $region24: #{tpu_custom_call.1} parent=11 // pred_fallthru
          _
        // Predicated region
        $region25: #{tpu_custom_call.1} parent=11 // pred_check
          %p456 = pneg %p196
        $region26: #{tpu_custom_call.1} parent=11 // pred_check_branch
          %458 = sbr.rel (%p456) target = $region28
        $region27: #{tpu_custom_call.1} parent=11 // pred_region
          _
        $region28: #{tpu_custom_call.1} parent=11 // pred_fallthru
          _
        // Predicated region
        $region29: #{tpu_custom_call.1} parent=11 // pred_check
          %p459 = pneg %p217
        $region30: #{tpu_custom_call.1} parent=11 // pred_check_branch
          %461 = sbr.rel (%p459) target = $region32
        $region31: #{tpu_custom_call.1} parent=11 // pred_region
          _
        $region32: #{tpu_custom_call.1} parent=11 // pred_fallthru
          _
        // Predicated region
        $region33: #{tpu_custom_call.1} parent=11 // pred_check
          %p462 = pneg %p238
        $region34: #{tpu_custom_call.1} parent=11 // pred_check_branch
          %464 = sbr.rel (%p462) target = $region36
        $region35: #{tpu_custom_call.1} parent=11 // pred_region
          _
        $region36: #{tpu_custom_call.1} parent=11 // pred_fallthru
          _
        // Predicated region
        $region37: #{tpu_custom_call.1} parent=11 // pred_check
          %p465 = pneg %p259
        $region38: #{tpu_custom_call.1} parent=11 // pred_check_branch
          %467 = sbr.rel (%p465) target = $region40
        $region39: #{tpu_custom_call.1} parent=11 // pred_region
          %469 = vsyncadd [#allocation9], 0
          %s470 = sshll.u32 %s9, 4
          %s471 = int_to_ptr.hbm [resolvable:$true] %s470
          %s472 = sshll.u32 [#allocation8], 4
          %s473 = int_to_ptr.vmem [resolvable:$true] %s472
          %478 = dma.hbm_to_vmem [thread:$0]  %s471, 512, %s473, [#allocation9], 128, 128, 8
        $region40: #{tpu_custom_call.1} parent=11 // pred_fallthru
          _
        // Predicated region
        $region41: #{tpu_custom_call.1} parent=11 // pred_check
          %p479 = pneg %p280
        $region42: #{tpu_custom_call.1} parent=11 // pred_check_branch
          %481 = sbr.rel (%p479) target = $region44
        $region43: #{tpu_custom_call.1} parent=11 // pred_region
          %483 = vsyncadd [#allocation9], 0
          %s484 = sshll.u32 %s10, 4
          %s485 = int_to_ptr.hbm [resolvable:$true] %s484
          %s486 = sshll.u32 [#allocation10], 4
          %s487 = int_to_ptr.vmem [resolvable:$true] %s486
          %492 = dma.hbm_to_vmem [thread:$0]  %s485, 512, %s487, [#allocation9], 128, 128, 8
        $region44: #{tpu_custom_call.1} parent=11 // pred_fallthru
          _
        // Predicated region
        $region45: #{tpu_custom_call.1} parent=11 // pred_check
          %p493 = pneg %p301
        $region46: #{tpu_custom_call.1} parent=11 // pred_check_branch
          %495 = sbr.rel (%p493) target = $region48
        $region47: #{tpu_custom_call.1} parent=11 // pred_region
          %497 = vsyncadd [#allocation12], 0
          %s498 = sshll.u32 %s11, 4
          %s499 = int_to_ptr.hbm [resolvable:$true] %s498
          %s500 = sshll.u32 [#allocation11], 4
          %s501 = int_to_ptr.vmem [resolvable:$true] %s500
          %506 = dma.hbm_to_vmem [thread:$0]  %s499, 512, %s501, [#allocation12], 128, 128, 8
        $region48: #{tpu_custom_call.1} parent=11 // pred_fallthru
          _
        // Predicated region
        $region49: #{tpu_custom_call.1} parent=11 // pred_check
          %p507 = pneg %p322
        $region50: #{tpu_custom_call.1} parent=11 // pred_check_branch
          %509 = sbr.rel (%p507) target = $region52
        $region51: #{tpu_custom_call.1} parent=11 // pred_region
          _
        $region52: #{tpu_custom_call.1} parent=11 // pred_fallthru
          _
        // Predicated region
        $region53: #{tpu_custom_call.1} parent=11 // pred_check
          %p510 = pneg %p343
        $region54: #{tpu_custom_call.1} parent=11 // pred_check_branch
          %512 = sbr.rel (%p510) target = $region56
        $region55: #{tpu_custom_call.1} parent=11 // pred_region
          _
        $region56: #{tpu_custom_call.1} parent=11 // pred_fallthru
          _
        // Predicated region
        $region57: #{tpu_custom_call.1} parent=11 // pred_check
          %p513 = pneg %p364
        $region58: #{tpu_custom_call.1} parent=11 // pred_check_branch
          %515 = sbr.rel (%p513) target = $region60
        $region59: #{tpu_custom_call.1} parent=11 // pred_region
          _
        $region60: #{tpu_custom_call.1} parent=11 // pred_fallthru
          _
        // Predicated region
        $region61: #{tpu_custom_call.1} parent=11 // pred_check
          %p516 = pneg %p385
        $region62: #{tpu_custom_call.1} parent=11 // pred_check_branch
          %518 = sbr.rel (%p516) target = $region64
        $region63: #{tpu_custom_call.1} parent=11 // pred_region
          %520 = vsyncadd [#allocation12], 0
          %s521 = sshll.u32 %s15, 4
          %s522 = int_to_ptr.hbm [resolvable:$true] %s521
          %s523 = sshll.u32 [#allocation13], 4
          %s524 = int_to_ptr.vmem [resolvable:$true] %s523
          %529 = dma.hbm_to_vmem [thread:$0]  %s522, 512, %s524, [#allocation12], 128, 128, 8
        $region64: #{tpu_custom_call.1} parent=11 // pred_fallthru
          _
        // Predicated region
        $region65: #{tpu_custom_call.1} parent=11 // pred_check
          %p530 = pneg %p406
        $region66: #{tpu_custom_call.1} parent=11 // pred_check_branch
          %532 = sbr.rel (%p530) target = $region68
        $region67: #{tpu_custom_call.1} parent=11 // pred_region
          _
        $region68: #{tpu_custom_call.1} parent=11 // pred_fallthru
          _
      $region12: #{tpu_custom_call.1} parent=5 // pred_fallthru
        _
      %p533 = scmp.lt.s32.totalorder %s34, 4
      // Predicated region
      $region69: #{tpu_custom_call.1} parent=5 // pred_check
        %p534 = pneg %p533
      $region70: #{tpu_custom_call.1} parent=5 // pred_check_branch
        %536 = sbr.rel (%p534) target = $region72
      $region71: #{tpu_custom_call.1} parent=5 // pred_region
        // Predicated region
        $region73: #{tpu_custom_call.1} parent=71 // pred_check
          %p537 = pneg %p54
        $region74: #{tpu_custom_call.1} parent=71 // pred_check_branch
          %539 = sbr.rel (%p537) target = $region76
        $region75: #{tpu_custom_call.1} parent=71 // pred_region
          %s540 = sand.u32 %s44, 1
          %s541 = scalar_lea.sflag [#allocation3], %s540
          %s542 = sand.u32 %s44, 1
          %s543 = smul.addr %s542, 8
          %s544 = scalar_lea.vmem [#allocation2], %s543
          %546 = vsyncadd %s541, 0
          %s547 = smul.addr %s34, 8
          %s548 = scalar_lea.hbm %s0, %s547
          %s550 = sshll.u32 %s548, 4
          %s551 = int_to_ptr.hbm [resolvable:$true] %s550
          %s552 = sshll.u32 %s544, 4
          %s553 = int_to_ptr.vmem [resolvable:$true] %s552
          %555 = dma.hbm_to_vmem [thread:$0]  %s551, 128, %s553, %s541
        $region76: #{tpu_custom_call.1} parent=71 // pred_fallthru
          _
        // Predicated region
        $region77: #{tpu_custom_call.1} parent=71 // pred_check
          %p556 = pneg %p80
        $region78: #{tpu_custom_call.1} parent=71 // pred_check_branch
          %558 = sbr.rel (%p556) target = $region80
        $region79: #{tpu_custom_call.1} parent=71 // pred_region
          %s559 = sand.u32 %s34, 1
          %s560 = scalar_lea.sflag [#allocation6], %s559
          %s561 = sand.u32 %s70, 1
          %s562 = smul.addr %s561, 8
          %s563 = scalar_lea.vmem [#allocation5], %s562
          %565 = vsyncadd %s560, 0
          %s566 = smul.addr %s34, 8
          %s567 = scalar_lea.hbm %s1, %s566
          %s569 = sshll.u32 %s567, 4
          %s570 = int_to_ptr.hbm [resolvable:$true] %s569
          %s571 = sshll.u32 %s563, 4
          %s572 = int_to_ptr.vmem [resolvable:$true] %s571
          %574 = dma.hbm_to_vmem [thread:$0]  %s570, 128, %s572, %s560
        $region80: #{tpu_custom_call.1} parent=71 // pred_fallthru
          _
        // Predicated region
        $region81: #{tpu_custom_call.1} parent=71 // pred_check
          %p575 = pneg %p106
        $region82: #{tpu_custom_call.1} parent=71 // pred_check_branch
          %577 = sbr.rel (%p575) target = $region84
        $region83: #{tpu_custom_call.1} parent=71 // pred_region
          %s578 = sand.u32 %s34, 1
          %s579 = scalar_lea.sflag [#allocation6], %s578
          %s580 = sand.u32 %s96, 1
          %s581 = smul.addr %s580, 8
          %s582 = scalar_lea.vmem [#allocation7], %s581
          %584 = vsyncadd %s579, 0
          %s585 = smul.addr %s34, 8
          %s586 = scalar_lea.hbm %s2, %s585
          %s588 = sshll.u32 %s586, 4
          %s589 = int_to_ptr.hbm [resolvable:$true] %s588
          %s590 = sshll.u32 %s582, 4
          %s591 = int_to_ptr.vmem [resolvable:$true] %s590
          %593 = dma.hbm_to_vmem [thread:$0]  %s589, 128, %s591, %s579
        $region84: #{tpu_custom_call.1} parent=71 // pred_fallthru
          _
      $region72: #{tpu_custom_call.1} parent=5 // pred_fallthru
        _
      %p594 = scmp.le.s32.totalorder 1, %s34
      %p595 = scmp.lt.s32.totalorder %s34, 5
      %p596 = pnand %p594, %p595
      %p597 = pneg %p596
      // Predicated region
      $region85: #{tpu_custom_call.1} parent=5 // pred_check
        _
      $region86: #{tpu_custom_call.1} parent=5 // pred_check_branch
        %599 = sbr.rel (%p596) target = $region88
      $region87: #{tpu_custom_call.1} parent=5 // pred_region
        %s600 = ssub.s32 %s34, 1
        %s601 = sand.u32 %s47, 1
        %s602 = scalar_lea.sflag [#allocation3], %s601
        %s603 = sand.u32 %s47, 1
        %s604 = smul.addr %s603, 8
        %s605 = scalar_lea.vmem [#allocation2], %s604
        // Predicated region
        $region89: #{tpu_custom_call.1} parent=87 // pred_check
          %p606 = pneg %p60
        $region90: #{tpu_custom_call.1} parent=87 // pred_check_branch
          %608 = sbr.rel (%p606) target = $region92
        $region91: #{tpu_custom_call.1} parent=87 // pred_region
          %610 = dma.done %s602, 128
        $region92: #{tpu_custom_call.1} parent=87 // pred_fallthru
          _
        %s611 = sand.u32 %s39, 1
        %s612 = scalar_lea.sflag [#allocation6], %s611
        %s613 = sand.u32 %s73, 1
        %s614 = smul.addr %s613, 8
        %s615 = scalar_lea.vmem [#allocation5], %s614
        // Predicated region
        $region93: #{tpu_custom_call.1} parent=87 // pred_check
          %p616 = pneg %p86
        $region94: #{tpu_custom_call.1} parent=87 // pred_check_branch
          %618 = sbr.rel (%p616) target = $region96
        $region95: #{tpu_custom_call.1} parent=87 // pred_region
          %620 = dma.done %s612, 128
        $region96: #{tpu_custom_call.1} parent=87 // pred_fallthru
          _
        %s621 = sand.u32 %s39, 1
        %s622 = scalar_lea.sflag [#allocation6], %s621
        %s623 = sand.u32 %s99, 1
        %s624 = smul.addr %s623, 8
        %s625 = scalar_lea.vmem [#allocation7], %s624
        // Predicated region
        $region97: #{tpu_custom_call.1} parent=87 // pred_check
          %p626 = pneg %p112
        $region98: #{tpu_custom_call.1} parent=87 // pred_check_branch
          %628 = sbr.rel (%p626) target = $region100
        $region99: #{tpu_custom_call.1} parent=87 // pred_region
          %630 = dma.done %s622, 128
        $region100: #{tpu_custom_call.1} parent=87 // pred_fallthru
          _
        // Predicated region
        $region101: #{tpu_custom_call.1} parent=87 // pred_check
          %p631 = pneg %p259
        $region102: #{tpu_custom_call.1} parent=87 // pred_check_branch
          %633 = sbr.rel (%p631) target = $region104
        $region103: #{tpu_custom_call.1} parent=87 // pred_region
          %635 = dma.done [#allocation9], 512
        $region104: #{tpu_custom_call.1} parent=87 // pred_fallthru
          _
        // Predicated region
        $region105: #{tpu_custom_call.1} parent=87 // pred_check
          %p636 = pneg %p280
        $region106: #{tpu_custom_call.1} parent=87 // pred_check_branch
          %638 = sbr.rel (%p636) target = $region108
        $region107: #{tpu_custom_call.1} parent=87 // pred_region
          %640 = dma.done [#allocation9], 512
        $region108: #{tpu_custom_call.1} parent=87 // pred_fallthru
          _
        // Predicated region
        $region109: #{tpu_custom_call.1} parent=87 // pred_check
          %p641 = pneg %p301
        $region110: #{tpu_custom_call.1} parent=87 // pred_check_branch
          %643 = sbr.rel (%p641) target = $region112
        $region111: #{tpu_custom_call.1} parent=87 // pred_region
          %645 = dma.done [#allocation12], 512
        $region112: #{tpu_custom_call.1} parent=87 // pred_fallthru
          _
        // Predicated region
        $region113: #{tpu_custom_call.1} parent=87 // pred_check
          %p646 = pneg %p385
        $region114: #{tpu_custom_call.1} parent=87 // pred_check_branch
          %648 = sbr.rel (%p646) target = $region116
        $region115: #{tpu_custom_call.1} parent=87 // pred_region
          %650 = dma.done [#allocation12], 512
        $region116: #{tpu_custom_call.1} parent=87 // pred_fallthru
          _
        %s651 = sand.u32 %s47, 1
        %s652 = scalar_lea.sflag [#allocation3], %s651
        %s653 = sand.u32 %s47, 1
        %s654 = smul.addr %s653, 8
        %s655 = scalar_lea.vmem [#allocation2], %s654
        %p656 = pneg %p60
        %p657 = pneg %p57
        %s658 = sand.u32 %s39, 1
        %s659 = scalar_lea.sflag [#allocation6], %s658
        %s660 = sand.u32 %s73, 1
        %s661 = smul.addr %s660, 8
        %s662 = scalar_lea.vmem [#allocation5], %s661
        %p663 = pneg %p86
        %p664 = pneg %p83
        %s665 = sand.u32 %s39, 1
        %s666 = scalar_lea.sflag [#allocation6], %s665
        %s667 = sand.u32 %s99, 1
        %s668 = smul.addr %s667, 8
        %s669 = scalar_lea.vmem [#allocation7], %s668
        %p670 = pneg %p112
        %p671 = pneg %p109
        %p672 = pneg %p133
        %p673 = pneg %p130
        %p674 = pneg %p154
        %p675 = pneg %p151
        %p676 = pneg %p175
        %p677 = pneg %p172
        %p678 = pneg %p196
        %p679 = pneg %p193
        %p680 = pneg %p217
        %p681 = pneg %p214
        %p682 = pneg %p238
        %p683 = pneg %p235
        %p684 = pneg %p259
        %p685 = pneg %p256
        %p686 = pneg %p280
        %p687 = pneg %p277
        %p688 = pneg %p301
        %p689 = pneg %p298
        %p690 = pneg %p322
        %p691 = pneg %p319
        %p692 = pneg %p343
        %p693 = pneg %p340
        %p694 = pneg %p364
        %p695 = pneg %p361
        %p696 = pneg %p385
        %p697 = pneg %p382
        %p698 = pneg %p406
        %p699 = pneg %p403
        %p700 = pneg %p432
        %p701 = pneg %p429
        %s702 = sand.u32 %s419, 1
        %s703 = scalar_lea.sflag [#allocation4], %s702
        %s704 = sand.u32 %s419, 1
        %s705 = smul.addr %s704, 8
        %s706 = scalar_lea.vmem [#allocation14], %s705
        %v707 = vld [vmem:[%s605] sm:$0xff]
        %v708 = vld [vmem:[%s3] sm:$0x1]
        %v709 = vld [vmem:[%s4] sm:$0x1]
        %vm710 = vcmask 261120
        %v711 = vsel %vm710, %v707, 0.0
        %712 = vadd.xlane.f32.xlu0 %v711
        %v713 = vpop.xlane.xlu0 %712
        %v714 = vrcp.pop 32.0
        %v715 = vmul.f32 32.0, %v714
        %v716 = vsub.f32 1.0, %v715
        %v717 = vmul.f32 %v714, %v716
        %v718 = vadd.f32 %v714, %v717
        %vm719 = vweird.f32 %v714
        %v720 = vsel %vm719, %v714, %v718
        %v721 = vmul.f32 %v713, %v720
        %v722 = vsub.f32 %v707, %v721
        %v723 = vmul.f32 %v722, %v722
        %v724 = vsel %vm710, %v723, 0.0
        %725 = vadd.xlane.f32.xlu0 %v724
        %v726 = vpop.xlane.xlu0 %725
        %v727 = vmul.f32 %v726, %v720
        %v728 = vadd.f32 %v727, 1e-05
        %v729 = vrsqrt.pop %v728
        %v730 = vmul.f32 %v729, %v728
        %v731 = vmul.f32 %v730, %v729
        %v732 = vmul.f32 0.5, %v731
        %v733 = vsub.f32 1.5, %v732
        %v734 = vmul.f32 %v729, %v733
        %vm735 = vweird.f32 %v728
        %vm736 = vweird.f32 %v729
        %vm737 = vmor %vm735, %vm736
        %v738 = vsel %vm737, %v729, %v734
        %v739 = vmul.f32 %v722, %v738
        %v741 = vperm.slane %v708, 0
        %v743 = vmul.f32 %v739, %v741
        %v745 = vperm.slane %v709, 0
        %v747 = vadd.f32 %v743, %v745
        %v748 = vld [vmem:[%s615] sm:$0xff]
        %v749 = vld [vmem:[%s5] sm:$0x1]
        %v750 = vld [vmem:[%s6] sm:$0x1]
        %v751 = vsel %vm710, %v748, 0.0
        %752 = vadd.xlane.f32.xlu0 %v751
        %v753 = vpop.xlane.xlu0 %752
        %v754 = vmul.f32 %v753, %v720
        %v755 = vsub.f32 %v748, %v754
        %v756 = vmul.f32 %v755, %v755
        %v757 = vsel %vm710, %v756, 0.0
        %758 = vadd.xlane.f32.xlu0 %v757
        %v759 = vpop.xlane.xlu0 %758
        %v760 = vmul.f32 %v759, %v720
        %v761 = vadd.f32 %v760, 1e-05
        %v762 = vrsqrt.pop %v761
        %v763 = vmul.f32 %v762, %v761
        %v764 = vmul.f32 %v763, %v762
        %v765 = vmul.f32 0.5, %v764
        %v766 = vsub.f32 1.5, %v765
        %v767 = vmul.f32 %v762, %v766
        %vm768 = vweird.f32 %v761
        %vm769 = vweird.f32 %v762
        %vm770 = vmor %vm768, %vm769
        %v771 = vsel %vm770, %v762, %v767
        %v772 = vmul.f32 %v755, %v771
        %v774 = vperm.slane %v749, 0
        %v776 = vmul.f32 %v772, %v774
        %v778 = vperm.slane %v750, 0
        %v780 = vadd.f32 %v776, %v778
        %v781 = vld [vmem:[%s625] sm:$0xff]
        %v782 = vld [vmem:[%s7] sm:$0x1]
        %v783 = vld [vmem:[%s8] sm:$0x1]
        %v784 = vsel %vm710, %v781, 0.0
        %785 = vadd.xlane.f32.xlu0 %v784
        %v786 = vpop.xlane.xlu0 %785
        %v787 = vmul.f32 %v786, %v720
        %v788 = vsub.f32 %v781, %v787
        %v789 = vmul.f32 %v788, %v788
        %v790 = vsel %vm710, %v789, 0.0
        %791 = vadd.xlane.f32.xlu0 %v790
        %v792 = vpop.xlane.xlu0 %791
        %v793 = vmul.f32 %v792, %v720
        %v794 = vadd.f32 %v793, 1e-05
        %v795 = vrsqrt.pop %v794
        %v796 = vmul.f32 %v795, %v794
        %v797 = vmul.f32 %v796, %v795
        %v798 = vmul.f32 0.5, %v797
        %v799 = vsub.f32 1.5, %v798
        %v800 = vmul.f32 %v795, %v799
        %vm801 = vweird.f32 %v794
        %vm802 = vweird.f32 %v795
        %vm803 = vmor %vm801, %vm802
        %v804 = vsel %vm803, %v795, %v800
        %v805 = vmul.f32 %v788, %v804
        %v807 = vperm.slane %v782, 0
        %v809 = vmul.f32 %v805, %v807
        %v811 = vperm.slane %v783, 0
        %v813 = vadd.f32 %v809, %v811
        %v814 = vld [vmem:[#allocation8] sm:$0xff]
        %v815 = vld [vmem:[#allocation8 + $0x8] sm:$0xff]
        %v816 = vld [vmem:[#allocation8 + $0x10] sm:$0xff]
        %v817 = vld [vmem:[#allocation8 + $0x18] sm:$0xff]
        %v818 = vld [vmem:[%s12] sm:$0x1]
        %v820 = vperm.slane %v818, 0
        %v823 = vsel %vm710, %v747, 0
        %825 = vmatpush.msra.mxu0 0.0
        %826 = vmatpush.msra.mxu0 0.0
        %827 = vmatpush.msra.mxu0 0.0
        %828 = vmatpush.msra.mxu0 0.0
        %829 = vmatpush.msra.mxu0 0.0
        %830 = vmatpush.msra.mxu0 0.0
        %831 = vmatpush.msra.mxu0 0.0
        %832 = vmatpush.msra.mxu0 0.0
        %833 = vmatpush.msra.mxu0 0.0
        %834 = vmatpush.msra.mxu0 0.0
        %835 = vmatpush.msra.mxu0 0.0
        %836 = vmatpush.msra.mxu0 0.0
        %837 = vmatpush.msra.mxu0 %v817
        %838 = vmatpush.msra.mxu0 %v816
        %839 = vmatpush.msra.mxu0 %v815
        %840 = vmatpush.msra.mxu0 %v814
        %841 = vmatmul.f32.gmra.mxu0 %v823
        %v842 = vpop.f32.mrf.mxu0
        %v843 = vadd.f32 %v820, %v842
        %844 = vdwg.mxu0
        %v845 = vld [vmem:[#allocation10] sm:$0xff]
        %v846 = vld [vmem:[#allocation10 + $0x8] sm:$0xff]
        %v847 = vld [vmem:[#allocation10 + $0x10] sm:$0xff]
        %v848 = vld [vmem:[#allocation10 + $0x18] sm:$0xff]
        %v849 = vld [vmem:[%s13] sm:$0x1]
        %v851 = vperm.slane %v849, 0
        %v854 = vsel %vm710, %v780, 0
        %856 = vmatpush.msra.mxu0 0.0
        %857 = vmatpush.msra.mxu0 0.0
        %858 = vmatpush.msra.mxu0 0.0
        %859 = vmatpush.msra.mxu0 0.0
        %860 = vmatpush.msra.mxu0 0.0
        %861 = vmatpush.msra.mxu0 0.0
        %862 = vmatpush.msra.mxu0 0.0
        %863 = vmatpush.msra.mxu0 0.0
        %864 = vmatpush.msra.mxu0 0.0
        %865 = vmatpush.msra.mxu0 0.0
        %866 = vmatpush.msra.mxu0 0.0
        %867 = vmatpush.msra.mxu0 0.0
        %868 = vmatpush.msra.mxu0 %v848
        %869 = vmatpush.msra.mxu0 %v847
        %870 = vmatpush.msra.mxu0 %v846
        %871 = vmatpush.msra.mxu0 %v845
        %872 = vmatmul.f32.gmra.mxu0 %v854
        %v873 = vpop.f32.mrf.mxu0
        %v874 = vadd.f32 %v851, %v873
        %875 = vdwg.mxu0
        %v876 = vld [vmem:[#allocation11] sm:$0xff]
        %v877 = vld [vmem:[#allocation11 + $0x8] sm:$0xff]
        %v878 = vld [vmem:[#allocation11 + $0x10] sm:$0xff]
        %v879 = vld [vmem:[#allocation11 + $0x18] sm:$0xff]
        %v880 = vld [vmem:[%s14] sm:$0x1]
        %v882 = vperm.slane %v880, 0
        %v885 = vsel %vm710, %v813, 0
        %887 = vmatpush.msra.mxu0 0.0
        %888 = vmatpush.msra.mxu0 0.0
        %889 = vmatpush.msra.mxu0 0.0
        %890 = vmatpush.msra.mxu0 0.0
        %891 = vmatpush.msra.mxu0 0.0
        %892 = vmatpush.msra.mxu0 0.0
        %893 = vmatpush.msra.mxu0 0.0
        %894 = vmatpush.msra.mxu0 0.0
        %895 = vmatpush.msra.mxu0 0.0
        %896 = vmatpush.msra.mxu0 0.0
        %897 = vmatpush.msra.mxu0 0.0
        %898 = vmatpush.msra.mxu0 0.0
        %899 = vmatpush.msra.mxu0 %v879
        %900 = vmatpush.msra.mxu0 %v878
        %901 = vmatpush.msra.mxu0 %v877
        %902 = vmatpush.msra.mxu0 %v876
        %903 = vmatmul.f32.gmra.mxu0 %v885
        %v904 = vpop.f32.mrf.mxu0
        %v905 = vadd.f32 %v882, %v904
        %906 = vdwg.mxu0
        %vm907 = vcmask 64512
        %v909 = vsel %vm907, %v843, 0
        %v912 = vsel %vm907, %v874, 0
        %914 = vmatpush.xpose.msra.mxu0 0.0
        %915 = vmatpush.xpose.msra.mxu0 0.0
        %916 = vmatpush.xpose.msra.mxu0 0.0
        %917 = vmatpush.xpose.msra.mxu0 0.0
        %918 = vmatpush.xpose.msra.mxu0 0.0
        %919 = vmatpush.xpose.msra.mxu0 0.0
        %920 = vmatpush.xpose.msra.mxu0 0.0
        %921 = vmatpush.xpose.msra.mxu0 0.0
        %922 = vmatpush.xpose.msra.mxu0 0.0
        %923 = vmatpush.xpose.msra.mxu0 0.0
        %924 = vmatpush.xpose.msra.mxu0 0.0
        %925 = vmatpush.xpose.msra.mxu0 0.0
        %926 = vmatpush.xpose.msra.mxu0 0.0
        %927 = vmatpush.xpose.msra.mxu0 0.0
        %928 = vmatpush.xpose.msra.mxu0 0.0
        %929 = vmatpush.xpose.msra.mxu0 %v912
        %930 = vmatmul.f32.gmra.mxu0 %v909
        %v931 = vpop.f32.mrf.mxu0
        %v932 = vadd.f32 0.0, %v931
        %933 = vdwg.mxu0
        %v934 = vsel %vm907, %v932, -inf
        %935 = vmax.xlane.f32.xlu0 %v934
        %v936 = vpop.xlane.xlu0 %935
        %v937 = vsub.f32 %v932, %v936
        %v938 = vmul.f32 %v937, 1.442695
        %v939 = vpow.pop %v938
        %v940 = vsel %vm907, %v939, 0.0
        %941 = vadd.xlane.f32.xlu0 %v940
        %v942 = vpop.xlane.xlu0 %941
        %v943 = vrcp.pop %v942
        %v944 = vmul.f32 %v942, %v943
        %v945 = vsub.f32 1.0, %v944
        %v946 = vmul.f32 %v943, %v945
        %v947 = vadd.f32 %v943, %v946
        %vm948 = vweird.f32 %v942
        %vm949 = vweird.f32 %v943
        %vm950 = vmor %vm948, %vm949
        %v951 = vsel %vm950, %v943, %v947
        %v952 = vand.u32 2147483647, %v942
        %vm953 = vcmp.eq.f32.partialorder %v952, 8.507059e+37
        %v954 = vand.u32 %v942, 2147483648
        %v955 = vor.u32 1.1754944e-38, %v954
        %v956 = vsel %vm953, %v955, %v951
        %v957 = vmul.f32 %v939, %v956
        %v959 = vsel %vm907, %v957, 0
        %961 = vmatpush.msra.mxu0 0.0
        %962 = vmatpush.msra.mxu0 0.0
        %963 = vmatpush.msra.mxu0 0.0
        %964 = vmatpush.msra.mxu0 0.0
        %965 = vmatpush.msra.mxu0 0.0
        %966 = vmatpush.msra.mxu0 0.0
        %967 = vmatpush.msra.mxu0 0.0
        %968 = vmatpush.msra.mxu0 0.0
        %969 = vmatpush.msra.mxu0 0.0
        %970 = vmatpush.msra.mxu0 0.0
        %971 = vmatpush.msra.mxu0 0.0
        %972 = vmatpush.msra.mxu0 0.0
        %973 = vmatpush.msra.mxu0 0.0
        %974 = vmatpush.msra.mxu0 0.0
        %975 = vmatpush.msra.mxu0 0.0
        %976 = vmatpush.msra.mxu0 %v905
        %977 = vmatmul.f32.gmra.mxu0 %v959
        %v978 = vpop.f32.mrf.mxu0
        %v979 = vadd.f32 0.0, %v978
        %980 = vdwg.mxu0
        %981 = vrot.lane.b32.xlu0 %v843, 120
        %v982 = vpop.permute.xlu0 %981
        %983 = vrot.lane.b32.xlu0 %v874, 120
        %v984 = vpop.permute.xlu0 %983
        %v985 = vsel %vm907, %v982, 0
        %v987 = vsel %vm907, %v984, 0
        %989 = vmatpush.xpose.msra.mxu0 0.0
        %990 = vmatpush.xpose.msra.mxu0 0.0
        %991 = vmatpush.xpose.msra.mxu0 0.0
        %992 = vmatpush.xpose.msra.mxu0 0.0
        %993 = vmatpush.xpose.msra.mxu0 0.0
        %994 = vmatpush.xpose.msra.mxu0 0.0
        %995 = vmatpush.xpose.msra.mxu0 0.0
        %996 = vmatpush.xpose.msra.mxu0 0.0
        %997 = vmatpush.xpose.msra.mxu0 0.0
        %998 = vmatpush.xpose.msra.mxu0 0.0
        %999 = vmatpush.xpose.msra.mxu0 0.0
        %1000 = vmatpush.xpose.msra.mxu0 0.0
        %1001 = vmatpush.xpose.msra.mxu0 0.0
        %1002 = vmatpush.xpose.msra.mxu0 0.0
        %1003 = vmatpush.xpose.msra.mxu0 0.0
        %1004 = vmatpush.xpose.msra.mxu0 %v987
        %1005 = vmatmul.f32.gmra.mxu0 %v985
        %v1006 = vpop.f32.mrf.mxu0
        %v1007 = vadd.f32 0.0, %v1006
        %1008 = vdwg.mxu0
        %v1009 = vsel %vm907, %v1007, -inf
        %1010 = vmax.xlane.f32.xlu0 %v1009
        %v1011 = vpop.xlane.xlu0 %1010
        %v1012 = vsub.f32 %v1007, %v1011
        %v1013 = vmul.f32 %v1012, 1.442695
        %v1014 = vpow.pop %v1013
        %v1015 = vsel %vm907, %v1014, 0.0
        %1016 = vadd.xlane.f32.xlu0 %v1015
        %v1017 = vpop.xlane.xlu0 %1016
        %v1018 = vrcp.pop %v1017
        %v1019 = vmul.f32 %v1017, %v1018
        %v1020 = vsub.f32 1.0, %v1019
        %v1021 = vmul.f32 %v1018, %v1020
        %v1022 = vadd.f32 %v1018, %v1021
        %vm1023 = vweird.f32 %v1017
        %vm1024 = vweird.f32 %v1018
        %vm1025 = vmor %vm1023, %vm1024
        %v1026 = vsel %vm1025, %v1018, %v1022
        %v1027 = vand.u32 2147483647, %v1017
        %vm1028 = vcmp.eq.f32.partialorder %v1027, 8.507059e+37
        %v1029 = vand.u32 %v1017, 2147483648
        %v1030 = vor.u32 1.1754944e-38, %v1029
        %v1031 = vsel %vm1028, %v1030, %v1026
        %v1032 = vmul.f32 %v1014, %v1031
        %1034 = vrot.lane.b32.xlu0 %v905, 120
        %v1035 = vpop.permute.xlu0 %1034
        %v1038 = vsel %vm907, %v1032, 0
        %1040 = vmatpush.msra.mxu0 0.0
        %1041 = vmatpush.msra.mxu0 0.0
        %1042 = vmatpush.msra.mxu0 0.0
        %1043 = vmatpush.msra.mxu0 0.0
        %1044 = vmatpush.msra.mxu0 0.0
        %1045 = vmatpush.msra.mxu0 0.0
        %1046 = vmatpush.msra.mxu0 0.0
        %1047 = vmatpush.msra.mxu0 0.0
        %1048 = vmatpush.msra.mxu0 0.0
        %1049 = vmatpush.msra.mxu0 0.0
        %1050 = vmatpush.msra.mxu0 0.0
        %1051 = vmatpush.msra.mxu0 0.0
        %1052 = vmatpush.msra.mxu0 0.0
        %1053 = vmatpush.msra.mxu0 0.0
        %1054 = vmatpush.msra.mxu0 0.0
        %1055 = vmatpush.msra.mxu0 %v1035
        %1056 = vmatmul.f32.gmra.mxu0 %v1038
        %v1057 = vpop.f32.mrf.mxu0
        %v1058 = vadd.f32 0.0, %v1057
        %1059 = vdwg.mxu0
        %1060 = vrot.lane.b32.xlu0 %v843, 112
        %v1061 = vpop.permute.xlu0 %1060
        %1062 = vrot.lane.b32.xlu0 %v874, 112
        %v1063 = vpop.permute.xlu0 %1062
        %v1064 = vsel %vm907, %v1061, 0
        %v1066 = vsel %vm907, %v1063, 0
        %1068 = vmatpush.xpose.msra.mxu0 0.0
        %1069 = vmatpush.xpose.msra.mxu0 0.0
        %1070 = vmatpush.xpose.msra.mxu0 0.0
        %1071 = vmatpush.xpose.msra.mxu0 0.0
        %1072 = vmatpush.xpose.msra.mxu0 0.0
        %1073 = vmatpush.xpose.msra.mxu0 0.0
        %1074 = vmatpush.xpose.msra.mxu0 0.0
        %1075 = vmatpush.xpose.msra.mxu0 0.0
        %1076 = vmatpush.xpose.msra.mxu0 0.0
        %1077 = vmatpush.xpose.msra.mxu0 0.0
        %1078 = vmatpush.xpose.msra.mxu0 0.0
        %1079 = vmatpush.xpose.msra.mxu0 0.0
        %1080 = vmatpush.xpose.msra.mxu0 0.0
        %1081 = vmatpush.xpose.msra.mxu0 0.0
        %1082 = vmatpush.xpose.msra.mxu0 0.0
        %1083 = vmatpush.xpose.msra.mxu0 %v1066
        %1084 = vmatmul.f32.gmra.mxu0 %v1064
        %v1085 = vpop.f32.mrf.mxu0
        %v1086 = vadd.f32 0.0, %v1085
        %1087 = vdwg.mxu0
        %v1088 = vsel %vm907, %v1086, -inf
        %1089 = vmax.xlane.f32.xlu0 %v1088
        %v1090 = vpop.xlane.xlu0 %1089
        %v1091 = vsub.f32 %v1086, %v1090
        %v1092 = vmul.f32 %v1091, 1.442695
        %v1093 = vpow.pop %v1092
        %v1094 = vsel %vm907, %v1093, 0.0
        %1095 = vadd.xlane.f32.xlu0 %v1094
        %v1096 = vpop.xlane.xlu0 %1095
        %v1097 = vrcp.pop %v1096
        %v1098 = vmul.f32 %v1096, %v1097
        %v1099 = vsub.f32 1.0, %v1098
        %v1100 = vmul.f32 %v1097, %v1099
        %v1101 = vadd.f32 %v1097, %v1100
        %vm1102 = vweird.f32 %v1096
        %vm1103 = vweird.f32 %v1097
        %vm1104 = vmor %vm1102, %vm1103
        %v1105 = vsel %vm1104, %v1097, %v1101
        %v1106 = vand.u32 2147483647, %v1096
        %vm1107 = vcmp.eq.f32.partialorder %v1106, 8.507059e+37
        %v1108 = vand.u32 %v1096, 2147483648
        %v1109 = vor.u32 1.1754944e-38, %v1108
        %v1110 = vsel %vm1107, %v1109, %v1105
        %v1111 = vmul.f32 %v1093, %v1110
        %1112 = vrot.lane.b32.xlu0 %v905, 112
        %v1113 = vpop.permute.xlu0 %1112
        %v1116 = vsel %vm907, %v1111, 0
        %1118 = vmatpush.msra.mxu0 0.0
        %1119 = vmatpush.msra.mxu0 0.0
        %1120 = vmatpush.msra.mxu0 0.0
        %1121 = vmatpush.msra.mxu0 0.0
        %1122 = vmatpush.msra.mxu0 0.0
        %1123 = vmatpush.msra.mxu0 0.0
        %1124 = vmatpush.msra.mxu0 0.0
        %1125 = vmatpush.msra.mxu0 0.0
        %1126 = vmatpush.msra.mxu0 0.0
        %1127 = vmatpush.msra.mxu0 0.0
        %1128 = vmatpush.msra.mxu0 0.0
        %1129 = vmatpush.msra.mxu0 0.0
        %1130 = vmatpush.msra.mxu0 0.0
        %1131 = vmatpush.msra.mxu0 0.0
        %1132 = vmatpush.msra.mxu0 0.0
        %1133 = vmatpush.msra.mxu0 %v1113
        %1134 = vmatmul.f32.gmra.mxu0 %v1116
        %v1135 = vpop.f32.mrf.mxu0
        %v1136 = vadd.f32 0.0, %v1135
        %1137 = vdwg.mxu0
        %1138 = vrot.lane.b32.xlu0 %v843, 104
        %v1139 = vpop.permute.xlu0 %1138
        %1140 = vrot.lane.b32.xlu0 %v874, 104
        %v1141 = vpop.permute.xlu0 %1140
        %v1142 = vsel %vm907, %v1139, 0
        %v1144 = vsel %vm907, %v1141, 0
        %1146 = vmatpush.xpose.msra.mxu0 0.0
        %1147 = vmatpush.xpose.msra.mxu0 0.0
        %1148 = vmatpush.xpose.msra.mxu0 0.0
        %1149 = vmatpush.xpose.msra.mxu0 0.0
        %1150 = vmatpush.xpose.msra.mxu0 0.0
        %1151 = vmatpush.xpose.msra.mxu0 0.0
        %1152 = vmatpush.xpose.msra.mxu0 0.0
        %1153 = vmatpush.xpose.msra.mxu0 0.0
        %1154 = vmatpush.xpose.msra.mxu0 0.0
        %1155 = vmatpush.xpose.msra.mxu0 0.0
        %1156 = vmatpush.xpose.msra.mxu0 0.0
        %1157 = vmatpush.xpose.msra.mxu0 0.0
        %1158 = vmatpush.xpose.msra.mxu0 0.0
        %1159 = vmatpush.xpose.msra.mxu0 0.0
        %1160 = vmatpush.xpose.msra.mxu0 0.0
        %1161 = vmatpush.xpose.msra.mxu0 %v1144
        %1162 = vmatmul.f32.gmra.mxu0 %v1142
        %v1163 = vpop.f32.mrf.mxu0
        %v1164 = vadd.f32 0.0, %v1163
        %1165 = vdwg.mxu0
        %v1166 = vsel %vm907, %v1164, -inf
        %1167 = vmax.xlane.f32.xlu0 %v1166
        %v1168 = vpop.xlane.xlu0 %1167
        %v1169 = vsub.f32 %v1164, %v1168
        %v1170 = vmul.f32 %v1169, 1.442695
        %v1171 = vpow.pop %v1170
        %v1172 = vsel %vm907, %v1171, 0.0
        %1173 = vadd.xlane.f32.xlu0 %v1172
        %v1174 = vpop.xlane.xlu0 %1173
        %v1175 = vrcp.pop %v1174
        %v1176 = vmul.f32 %v1174, %v1175
        %v1177 = vsub.f32 1.0, %v1176
        %v1178 = vmul.f32 %v1175, %v1177
        %v1179 = vadd.f32 %v1175, %v1178
        %vm1180 = vweird.f32 %v1174
        %vm1181 = vweird.f32 %v1175
        %vm1182 = vmor %vm1180, %vm1181
        %v1183 = vsel %vm1182, %v1175, %v1179
        %v1184 = vand.u32 2147483647, %v1174
        %vm1185 = vcmp.eq.f32.partialorder %v1184, 8.507059e+37
        %v1186 = vand.u32 %v1174, 2147483648
        %v1187 = vor.u32 1.1754944e-38, %v1186
        %v1188 = vsel %vm1185, %v1187, %v1183
        %v1189 = vmul.f32 %v1171, %v1188
        %1190 = vrot.lane.b32.xlu0 %v905, 104
        %v1191 = vpop.permute.xlu0 %1190
        %v1194 = vsel %vm907, %v1189, 0
        %1196 = vmatpush.msra.mxu0 0.0
        %1197 = vmatpush.msra.mxu0 0.0
        %1198 = vmatpush.msra.mxu0 0.0
        %1199 = vmatpush.msra.mxu0 0.0
        %1200 = vmatpush.msra.mxu0 0.0
        %1201 = vmatpush.msra.mxu0 0.0
        %1202 = vmatpush.msra.mxu0 0.0
        %1203 = vmatpush.msra.mxu0 0.0
        %1204 = vmatpush.msra.mxu0 0.0
        %1205 = vmatpush.msra.mxu0 0.0
        %1206 = vmatpush.msra.mxu0 0.0
        %1207 = vmatpush.msra.mxu0 0.0
        %1208 = vmatpush.msra.mxu0 0.0
        %1209 = vmatpush.msra.mxu0 0.0
        %1210 = vmatpush.msra.mxu0 0.0
        %1211 = vmatpush.msra.mxu0 %v1191
        %1212 = vmatmul.f32.gmra.mxu0 %v1194
        %v1213 = vpop.f32.mrf.mxu0
        %v1214 = vadd.f32 0.0, %v1213
        %1215 = vdwg.mxu0
        %1217 = vrot.lane.b32.xlu0 %v1058, 8
        %v1218 = vpop.permute.xlu0 %1217
        %1221 = vrot.lane.b32.xlu0 %v1136, 16
        %v1222 = vpop.permute.xlu0 %1221
        %1225 = vrot.lane.b32.xlu0 %v1214, 24
        %v1226 = vpop.permute.xlu0 %1225
        %v1228 = vsel %vm907, %v979, %v1218
        %vm1229 = vcmask 130048
        %v1230 = vsel %vm1229, %v1228, %v1222
        %vm1231 = vcmask 195584
        %v1232 = vsel %vm1231, %v1230, %v1226
        %v1233 = vld [vmem:[#allocation13] sm:$0xff]
        %v1234 = vld [vmem:[#allocation13 + $0x8] sm:$0xff]
        %v1235 = vld [vmem:[#allocation13 + $0x10] sm:$0xff]
        %v1236 = vld [vmem:[#allocation13 + $0x18] sm:$0xff]
        %v1237 = vld [vmem:[%s16] sm:$0x1]
        %v1239 = vperm.slane %v1237, 0
        %v1242 = vsel %vm710, %v1232, 0
        %1244 = vmatpush.msra.mxu0 0.0
        %1245 = vmatpush.msra.mxu0 0.0
        %1246 = vmatpush.msra.mxu0 0.0
        %1247 = vmatpush.msra.mxu0 0.0
        %1248 = vmatpush.msra.mxu0 0.0
        %1249 = vmatpush.msra.mxu0 0.0
        %1250 = vmatpush.msra.mxu0 0.0
        %1251 = vmatpush.msra.mxu0 0.0
        %1252 = vmatpush.msra.mxu0 0.0
        %1253 = vmatpush.msra.mxu0 0.0
        %1254 = vmatpush.msra.mxu0 0.0
        %1255 = vmatpush.msra.mxu0 0.0
        %1256 = vmatpush.msra.mxu0 %v1236
        %1257 = vmatpush.msra.mxu0 %v1235
        %1258 = vmatpush.msra.mxu0 %v1234
        %1259 = vmatpush.msra.mxu0 %v1233
        %1260 = vmatmul.f32.gmra.mxu0 %v1242
        %v1261 = vpop.f32.mrf.mxu0
        %v1262 = vadd.f32 %v1239, %v1261
        %1263 = vdwg.mxu0
        %v1264 = vld [vmem:[%s605] sm:$0xff]
        %v1265 = vadd.f32 %v1264, %v1262
        %1266 = vst.msk [vmem:[%s706] sm:$0xff] %vm710, %v1265
        %s1267 = sand.u32 %s419, 1
        %s1268 = scalar_lea.sflag [#allocation4], %s1267
        %s1269 = sand.u32 %s419, 1
        %s1270 = smul.addr %s1269, 8
        %s1271 = scalar_lea.vmem [#allocation14], %s1270
        // Predicated region
        $region117: #{tpu_custom_call.1} parent=87 // pred_check
          %p1272 = pneg %p429
        $region118: #{tpu_custom_call.1} parent=87 // pred_check_branch
          %1274 = sbr.rel (%p1272) target = $region120
        $region119: #{tpu_custom_call.1} parent=87 // pred_region
          %1276 = vsyncadd %s1268, 0
          %s1277 = smul.addr %s39, 8
          %s1278 = scalar_lea.hbm %s17, %s1277
          %s1280 = sshll.u32 %s1271, 4
          %s1281 = int_to_ptr.vmem [resolvable:$true] %s1280
          %s1282 = sshll.u32 %s1278, 4
          %s1283 = int_to_ptr.hbm [resolvable:$true] %s1282
          %1285 = dma.vmem_to_hbm [thread:$0]  %s1281, 128, %s1283, %s1268
        $region120: #{tpu_custom_call.1} parent=87 // pred_fallthru
          _
      $region88: #{tpu_custom_call.1} parent=5 // pred_fallthru
        _
      %p1286 = scmp.le.s32.totalorder 2, %s34
      // Predicated region
      $region121: #{tpu_custom_call.1} parent=5 // pred_check
        %p1287 = pneg %p1286
      $region122: #{tpu_custom_call.1} parent=5 // pred_check_branch
        %1289 = sbr.rel (%p1287) target = $region124
      $region123: #{tpu_custom_call.1} parent=5 // pred_region
        %s1290 = ssub.s32 %s34, 2
        // Predicated region
        $region125: #{tpu_custom_call.1} parent=123 // pred_check
          %p1291 = pneg %p435
        $region126: #{tpu_custom_call.1} parent=123 // pred_check_branch
          %1293 = sbr.rel (%p1291) target = $region128
        $region127: #{tpu_custom_call.1} parent=123 // pred_region
          %s1294 = sand.u32 %s420, 1
          %s1295 = scalar_lea.sflag [#allocation4], %s1294
          %s1296 = sand.u32 %s420, 1
          %s1297 = smul.addr %s1296, 8
          %s1298 = scalar_lea.vmem [#allocation14], %s1297
          %1300 = dma.done %s1295, 128
        $region128: #{tpu_custom_call.1} parent=123 // pred_fallthru
          _
      $region124: #{tpu_custom_call.1} parent=5 // pred_fallthru
        _
    $region6: #{tpu_custom_call.1} parent=1 // loop_footer
      %s38 = sadd.s32 1, %s34
    $region7: #{tpu_custom_call.1} parent=1 // loop_footer_branch
      %33 = sbr.rel target = $region3
    $region8: #{tpu_custom_call.1} parent=1 // loop_exit
      _
    %1301 = vsyncpa [#allocation3], 1
    %s1302 = scalar_lea.sflag [#allocation3], 1
    %1303 = vsyncpa %s1302, 1
    %1304 = vsyncpa [#allocation6], 1
    %s1305 = scalar_lea.sflag [#allocation6], 1
    %1306 = vsyncpa %s1305, 1
    %1307 = vsyncpa [#allocation9], 1
    %1308 = vsyncpa [#allocation12], 1
    %1309 = vsyncpa [#allocation4], 1
    %s1310 = scalar_lea.sflag [#allocation4], 1
    %1311 = vsyncpa %s1310, 1

</llo_original>
